<compile_context>
chip_gen: v6e
topology: v6e:2x2x1
jax: 0.10.0
libtpu: 0.0.40
codegen_flags: <defaults>
</compile_context>

<pallas_src>
import functools
import math

import jax
import jax.numpy as jnp
from jax.experimental import pallas as pl
from jax.experimental.pallas import tpu as pltpu


# --------------------------------------------------------------------------- #
# Kernel
# --------------------------------------------------------------------------- #
def _spectral_conv1d_kernel(
    x_ref,    # (N, TB*Cin)        compute dtype; column = b*Cin + i
    fwd_ref,  # (2*Mp, N)          compute dtype; rows [0:Mp)=cos, [Mp:2Mp)=sin
    inv_ref,  # (N, 2*Mp)          compute dtype; cols [0:Mp)=cos^T, [Mp:2Mp)=sin^T
    wa_ref,   # (2*Mp, Cout, Cin)  f32; [wa_scaled; wa_scaled]
    wb_ref,   # (2*Mp, Cout, Cin)  f32; [wb_scaled; -wb_scaled]
    o_ref,    # (N, TB*Cout)       output dtype; column = b*Cout + o
    *, tb, cin, cout, mp, compute_dtype):
  # ---- fused forward truncated rfft: ONE lane-dense MXU matmul ----
  #   xf[:Mp]  =  Re(rfft(x))   (cos rows)
  #   xf[Mp:]  = -Im(rfft(x))   (sin rows)
  xf = jnp.dot(fwd_ref[...], x_ref[...],
               preferred_element_type=jnp.float32)          # (2Mp, TB*Cin) f32

  # ---- per-mode complex channel mixing as batched dot_generals ----
  #   yre[m] = Xre[m] @ wa[m]^T + S[m] @ wb[m]^T
  #   yz [m] = S[m]   @ wa[m]^T - Xre[m] @ wb[m]^T
  # xa = [Xre; S], xb = [S; Xre]; the sign/ordering is folded into wa/wb stacks.
  xa = xf.reshape(2 * mp, tb, cin)
  xb = jnp.concatenate([xf[mp:], xf[:mp]], axis=0).reshape(2 * mp, tb, cin)
  dn = (((2,), (2,)), ((0,), (0,)))   # contract Cin, batch over the 2*Mp modes
  y = (jax.lax.dot_general(xa, wa_ref[...], dn,
                           preferred_element_type=jnp.float32)
       + jax.lax.dot_general(xb, wb_ref[...], dn,
                             preferred_element_type=jnp.float32))
  # y[:Mp] = yre, y[Mp:] = yz, shape (2Mp, TB, Cout)

  # ---- fused inverse rfft of the zero-padded spectrum: ONE MXU matmul ----
  #   out[n, (b,o)] = sum_m yre*cos[m,n] + yz*sin[m,n]
  y_flat = y.reshape(2 * mp, tb * cout).astype(compute_dtype)
  out = jnp.dot(inv_ref[...], y_flat,
                preferred_element_type=jnp.float32)          # (N, TB*Cout) f32
  o_ref[...] = out.astype(o_ref.dtype)


# --------------------------------------------------------------------------- #
# Host-side helpers (plain JAX glue)
# --------------------------------------------------------------------------- #
def _ceil_to(v, m):
  return -(-v // m) * m


def _dft_bases(n_len, modes):
  # Exact phases: (m*n) mod N in integer arithmetic (no f32 m*n rounding).
  # TODO(synk): use int64 for the m*n product if modes1*N approaches 2**31.
  n_idx = jnp.arange(n_len, dtype=jnp.int32)
  m_idx = jnp.arange(modes, dtype=jnp.int32)
  mn = (m_idx[:, None] * n_idx[None, :]) % n_len
  theta = (2.0 * math.pi / n_len) * mn.astype(jnp.float32)
  return jnp.cos(theta), jnp.sin(theta)          # each (M, N) f32


def precompute_spectral_conv1d_params(w_re, w_im, modes1, n_len,
                                      compute_dtype=jnp.bfloat16):
  """Per-parameter-set preprocessing (hoist out of the per-call path)."""
  cin, cout, m = w_re.shape
  mp = max(8, _ceil_to(m, 8))                      # pad modes to sublane multiple

  cos_f, sin_f = _dft_bases(n_len, m)
  pad_m = ((0, mp - m), (0, 0))
  cos_p = jnp.pad(cos_f, pad_m)
  sin_p = jnp.pad(sin_f, pad_m)
  fwd = jnp.concatenate([cos_p, sin_p], axis=0).astype(compute_dtype)      # (2Mp, N)
  inv = jnp.concatenate([cos_p.T, sin_p.T], axis=1).astype(compute_dtype)  # (N, 2Mp)

  # Hermitian doubling factor and 1/N irfft normalization folded into weights.
  k = jnp.arange(m, dtype=jnp.int32)
  dbl = jnp.where((k == 0) | ((n_len % 2 == 0) & (k == n_len // 2)), 1.0, 2.0)
  scale = (dbl / n_len).astype(jnp.float32)
  wa = jnp.transpose(w_re, (2, 1, 0)).astype(jnp.float32) * scale[:, None, None]
  wb = jnp.transpose(w_im, (2, 1, 0)).astype(jnp.float32) * scale[:, None, None]
  pad_w = ((0, mp - m), (0, 0), (0, 0))
  wa = jnp.pad(wa, pad_w)
  wb = jnp.pad(wb, pad_w)
  w_a_stack = jnp.concatenate([wa, wa], axis=0)    # (2Mp, Cout, Cin)
  w_b_stack = jnp.concatenate([wb, -wb], axis=0)   # (2Mp, Cout, Cin)

  return dict(fwd=fwd, inv=inv, wA=w_a_stack, wB=w_b_stack, mp=mp,
              cin=cin, cout=cout, n_len=n_len, compute_dtype=compute_dtype)


def _footprint_bytes(tb, *, n_len, cin, cout, mp, csize, osize):
  """Rough per-grid-step VMEM estimate (padded to (8,128) tiles), conservative."""
  lane, sub = 128, 8
  x_blk = _ceil_to(n_len, sub) * _ceil_to(tb * cin, lane) * csize
  o_blk = _ceil_to(n_len, sub) * _ceil_to(tb * cout, lane) * osize
  fwd = _ceil_to(2 * mp, sub) * _ceil_to(n_len, lane) * csize
  inv = _ceil_to(n_len, sub) * _ceil_to(2 * mp, lane) * csize
  wgt = 2 * (2 * mp) * _ceil_to(cout, sub) * _ceil_to(cin, lane) * 4
  # In-kernel f32 temporaries: xf, xa, xb, y, y_flat, f32 out slab before cast.
  tmp = (3 * 2 * mp * _ceil_to(tb * cin, lane)
         + 2 * 2 * mp * tb * _ceil_to(cout, lane)
         + _ceil_to(n_len, sub) * _ceil_to(tb * cout, lane)) * 4
  # x/out double-buffered; invariants also counted twice (covers the fallback
  # path without Buffered(1)).
  return 2 * (x_blk + o_blk) + 2 * (fwd + inv + wgt) + tmp


def _pick_batch_tile(batch, cin, cout, *, budget_bytes, footprint,
                     target_lanes, prefer_multi_step):
  """Largest lane-aligned batch tile that fits the VMEM budget."""
  divs = sorted((d for d in range(1, batch + 1) if batch % d == 0), reverse=True)

  def aligned(tb):
    # Sub-array blocks must keep the lane dim a multiple of 128.
    return tb == batch or ((tb * cin) % 128 == 0 and (tb * cout) % 128 == 0)

  valid = [tb for tb in divs if aligned(tb) and footprint(tb) <= budget_bytes]
  if not valid:
    # Best effort: smallest aligned tile (smallest footprint).
    aligned_divs = [tb for tb in divs if aligned(tb)]
    return aligned_divs[-1] if aligned_divs else batch

  within = [tb for tb in valid if tb * max(cin, cout) <= target_lanes]
  tb = within[0] if within else valid[-1]
  if prefer_multi_step and batch // tb < 2:
    multi = [t for t in valid if batch // t >= 2]
    if multi:
      tb = multi[0]
  # TODO(synk): pad the batch dim when B*Cin / B*Cout < 128 so the single-tile
  # fallback can still emit lane-dense (unmasked) stores.
  return tb


# --------------------------------------------------------------------------- #
# Public entry point
# --------------------------------------------------------------------------- #
def spectral_conv1d(x, w_re, w_im, modes1, *, compute_dtype=jnp.bfloat16,
                    params=None):
  """Pallas TPU forward of SpectralConv1d.

  x: (B, N, Cin) f32; w_re/w_im: (Cin, Cout, modes1) f32. Returns (B, N, Cout).
  `compute_dtype` controls the MXU input dtype of the DFT matmuls (bf16
  recommended on all generations; mixing stays f32).
  """
  batch, n_len, cin = x.shape
  cout = w_re.shape[1]
  assert modes1 <= n_len // 2 + 1

  if params is None:
    params = precompute_spectral_conv1d_params(w_re, w_im, modes1, n_len,
                                               compute_dtype)
  compute_dtype = params["compute_dtype"]
  mp = params["mp"]

  # ---- generation-aware VMEM budget / tiling ----
  try:
    vmem_cap = int(pltpu.get_tpu_info().vmem_capacity_bytes)
  except Exception:                       # conservative default, safe everywhere
    vmem_cap = 64 * 2 ** 20
  csize = jnp.dtype(compute_dtype).itemsize
  osize = jnp.dtype(x.dtype).itemsize
  big_vmem = vmem_cap >= 100 * 2 ** 20    # v5e/v6e (128 MiB) vs v7x (64 MiB/TC)
  target_lanes = 512 if big_vmem else 256
  prefer_multi_step = not big_vmem        # 2-TC parts: keep >=2 steps for sharding
  footprint = functools.partial(_footprint_bytes, n_len=n_len, cin=cin,
                                cout=cout, mp=mp, csize=csize, osize=osize)
  tb = _pick_batch_tile(batch, cin, cout, budget_bytes=int(0.65 * vmem_cap),
                        footprint=footprint, target_lanes=target_lanes,
                        prefer_multi_step=prefer_multi_step)
  grid = (batch // tb,)
  vmem_limit = max(32 * 2 ** 20, int(0.9 * vmem_cap))   # never above physical

  # Batch-fold: (B, N, Cin) -> (N, B*Cin) so the DFT matmuls are lane-dense.
  # TODO(synk): a fused caller can supply/consume the (N, B, C) layout directly
  # to drop these transposes (they are pure layout plumbing).
  x_flat = jnp.transpose(x, (1, 0, 2)).reshape(n_len, batch * cin)
  x_flat = x_flat.astype(compute_dtype)

  kernel = functools.partial(_spectral_conv1d_kernel, tb=tb, cin=cin, cout=cout,
                             mp=mp, compute_dtype=compute_dtype)

  def call(buffered):
    def const_spec(shape):
      nd = len(shape)
      kw = dict(pipeline_mode=pl.Buffered(1)) if buffered else {}
      return pl.BlockSpec(shape, lambda *_: (0,) * nd, **kw)

    return pl.pallas_call(
        kernel,
        out_shape=jax.ShapeDtypeStruct((n_len, batch * cout), x.dtype),
        grid_spec=pltpu.PrefetchScalarGridSpec(
            num_scalar_prefetch=0,
            grid=grid,
            in_specs=[
                pl.BlockSpec((n_len, tb * cin), lambda t: (0, t)),
                const_spec((2 * mp, n_len)),        # fwd basis  (grid-invariant)
                const_spec((n_len, 2 * mp)),        # inv basis  (grid-invariant)
                const_spec((2 * mp, cout, cin)),    # wA         (grid-invariant)
                const_spec((2 * mp, cout, cin)),    # wB         (grid-invariant)
            ],
            out_specs=pl.BlockSpec((n_len, tb * cout), lambda t: (0, t)),
        ),
        compiler_params=pltpu.CompilerParams(
            dimension_semantics=("parallel",),
            vmem_limit_bytes=vmem_limit),
    )(x_flat, params["fwd"], params["inv"], params["wA"], params["wB"])

  try:
    out_flat = call(buffered=True)    # single-buffer the grid-invariant operands
  except Exception:
    out_flat = call(buffered=False)   # fallback: default double-buffering

  # (N, B*Cout) -> (B, N, Cout): layout plumbing only.
  return jnp.transpose(out_flat.reshape(n_len, batch, cout), (1, 0, 2))


# --------------------------------------------------------------------------- #
# Pure-JAX reference (mirrors the PyTorch forward exactly)
# --------------------------------------------------------------------------- #
def spectral_conv1d_ref(x, w_re, w_im, modes1):
  bsz, n_len, _ = x.shape
  cout = w_re.shape[1]
  xp = jnp.transpose(x, (0, 2, 1))                          # (B, Cin, N)
  x_ft = jnp.fft.rfft(xp)                                   # (B, Cin, N//2+1)
  w = (w_re + 1j * w_im).astype(jnp.complex64)              # (Cin, Cout, M)
  y = jnp.einsum('bix,iox->box', x_ft[:, :, :modes1], w)    # (B, Cout, M)
  out_ft = jnp.zeros((bsz, cout, n_len // 2 + 1), dtype=jnp.complex64)
  out_ft = out_ft.at[:, :, :modes1].set(y)
  out = jnp.fft.irfft(out_ft, n=n_len)                      # (B, Cout, N)
  return jnp.transpose(out, (0, 2, 1)).astype(x.dtype)      # (B, N, Cout)


if __name__ == "__main__":
  B, N, Cin, Cout, M = 2, 16, 4, 6, 5

  key = jax.random.PRNGKey(0)
  kx, kwr, kwi = jax.random.split(key, 3)
  x = jax.random.normal(kx, (B, N, Cin), dtype=jnp.float32)

  # Deterministic parameters mirroring
  #   scale * torch.rand(in_channels, out_channels, modes1, dtype=cfloat)
  scale = 1.0 / (Cin * Cout)
  w_re = scale * jax.random.uniform(kwr, (Cin, Cout, M), dtype=jnp.float32)
  w_im = scale * jax.random.uniform(kwi, (Cin, Cout, M), dtype=jnp.float32)

  ref = jax.block_until_ready(spectral_conv1d_ref(x, w_re, w_im, M))

  # Strict-accuracy path (f32 MXU inputs).
  # TODO(synk): on v5e prefer a bf16 hi/lo basis split over true f32 MXU inputs.
  out_f32 = jax.block_until_ready(
      spectral_conv1d(x, w_re, w_im, M, compute_dtype=jnp.float32))
  assert out_f32.shape == (B, N, Cout)
  if not jnp.allclose(out_f32, ref, atol=1e-4, rtol=1e-4):
    raise AssertionError("f32 Pallas SpectralConv1d mismatch vs jnp.fft reference")

  # Fast path (bf16 matmul inputs, f32 accumulation) -- default.
  out_bf16 = jax.block_until_ready(spectral_conv1d(x, w_re, w_im, M))
  assert out_bf16.shape == (B, N, Cout)
  if not jnp.allclose(out_bf16, ref, atol=5e-2, rtol=5e-2):
    raise AssertionError("bf16 Pallas SpectralConv1d mismatch vs jnp.fft reference")

  print("KERNEL_OK")
</pallas_src>

<mosaic_0001>
module attributes {stable_mosaic.version = 11 : i64} {
  func.func @_spectral_conv1d_kernel(%arg0: i32, %arg1: memref<16x8xf32, #tpu.memory_space<vmem>>, %arg2: memref<16x16xf32, #tpu.memory_space<vmem>>, %arg3: memref<16x16xf32, #tpu.memory_space<vmem>>, %arg4: memref<16x6x4xf32, #tpu.memory_space<vmem>>, %arg5: memref<16x6x4xf32, #tpu.memory_space<vmem>>, %arg6: memref<16x12xf32, #tpu.memory_space<vmem>>) attributes {dimension_semantics = [#tpu.dimension_semantics<parallel>], iteration_bounds = array<i64: 1>, scalar_prefetch = 0 : i64, scratch_operands = 0 : i64, tpu.core_type = #tpu.core_type<tc>, window_params = [{transform_indices = @transform_0, window_bounds = array<i64: 16, 8>}, {pipeline_mode = #tpu.pipeline_mode<synchronous>, transform_indices = @transform_1, window_bounds = array<i64: 16, 16>}, {pipeline_mode = #tpu.pipeline_mode<synchronous>, transform_indices = @transform_2, window_bounds = array<i64: 16, 16>}, {pipeline_mode = #tpu.pipeline_mode<synchronous>, transform_indices = @transform_3, window_bounds = array<i64: 16, 6, 4>}, {pipeline_mode = #tpu.pipeline_mode<synchronous>, transform_indices = @transform_4, window_bounds = array<i64: 16, 6, 4>}, {transform_indices = @transform_5, window_bounds = array<i64: 16, 12>}]} {
    %c0 = arith.constant 0 : index
    %c0_0 = arith.constant 0 : index
    %0 = vector.load %arg2[%c0, %c0_0] : memref<16x16xf32, #tpu.memory_space<vmem>>, vector<16x16xf32>
    %c0_1 = arith.constant 0 : index
    %c0_2 = arith.constant 0 : index
    %1 = vector.load %arg1[%c0_1, %c0_2] : memref<16x8xf32, #tpu.memory_space<vmem>>, vector<16x8xf32>
    %cst = arith.constant dense<0.000000e+00> : vector<16x8xf32>
    %2 = tpu.matmul %0, %1, %cst {dimension_numbers = #tpu.dot_dimension_numbers<[1], [0], [0], [1], [0, 0, 1, 1], [], []>} : vector<16x16xf32>, vector<16x8xf32>, vector<16x8xf32> -> vector<16x8xf32>
    %3 = vector.shape_cast %2 : vector<16x8xf32> to vector<16x2x4xf32>
    %4 = vector.extract_strided_slice %2 {offsets = [8, 0], sizes = [8, 8], strides = [1, 1]} : vector<16x8xf32> to vector<8x8xf32>
    %5 = vector.extract_strided_slice %2 {offsets = [0, 0], sizes = [8, 8], strides = [1, 1]} : vector<16x8xf32> to vector<8x8xf32>
    %6 = tpu.concatenate %4, %5 in 0 : vector<8x8xf32>, vector<8x8xf32> -> vector<16x8xf32>
    %7 = vector.shape_cast %6 : vector<16x8xf32> to vector<16x2x4xf32>
    %c0_3 = arith.constant 0 : index
    %c0_4 = arith.constant 0 : index
    %c0_5 = arith.constant 0 : index
    %8 = vector.load %arg4[%c0_3, %c0_4, %c0_5] : memref<16x6x4xf32, #tpu.memory_space<vmem>>, vector<16x6x4xf32>
    %cst_6 = arith.constant dense<0.000000e+00> : vector<16x2x6xf32>
    %9 = tpu.matmul %3, %8, %cst_6 {dimension_numbers = #tpu.dot_dimension_numbers<[2], [2], [1], [1], [0, 0, 0, 1, 1, 1], [0], [0]>} : vector<16x2x4xf32>, vector<16x6x4xf32>, vector<16x2x6xf32> -> vector<16x2x6xf32>
    %c0_7 = arith.constant 0 : index
    %c0_8 = arith.constant 0 : index
    %c0_9 = arith.constant 0 : index
    %10 = vector.load %arg5[%c0_7, %c0_8, %c0_9] : memref<16x6x4xf32, #tpu.memory_space<vmem>>, vector<16x6x4xf32>
    %cst_10 = arith.constant dense<0.000000e+00> : vector<16x2x6xf32>
    %11 = tpu.matmul %7, %10, %cst_10 {dimension_numbers = #tpu.dot_dimension_numbers<[2], [2], [1], [1], [0, 0, 0, 1, 1, 1], [0], [0]>} : vector<16x2x4xf32>, vector<16x6x4xf32>, vector<16x2x6xf32> -> vector<16x2x6xf32>
    %12 = arith.addf %9, %11 : vector<16x2x6xf32>
    %13 = vector.shape_cast %12 : vector<16x2x6xf32> to vector<16x12xf32>
    %c0_11 = arith.constant 0 : index
    %c0_12 = arith.constant 0 : index
    %14 = vector.load %arg3[%c0_11, %c0_12] : memref<16x16xf32, #tpu.memory_space<vmem>>, vector<16x16xf32>
    %cst_13 = arith.constant dense<0.000000e+00> : vector<16x12xf32>
    %15 = tpu.matmul %14, %13, %cst_13 {dimension_numbers = #tpu.dot_dimension_numbers<[1], [0], [0], [1], [0, 0, 1, 1], [], []>} : vector<16x16xf32>, vector<16x12xf32>, vector<16x12xf32> -> vector<16x12xf32>
    %c0_14 = arith.constant 0 : index
    %c0_15 = arith.constant 0 : index
    %16 = vector.load %arg6[%c0_14, %c0_15] : memref<16x12xf32, #tpu.memory_space<vmem>>, vector<16x12xf32>
    tpu.vector_store %arg6[%c0_14, %c0_15], %15 {strides = array<i32>} : memref<16x12xf32, #tpu.memory_space<vmem>>, vector<16x12xf32>,
    return
  }
  func.func @transform_0(%arg0: i32) -> (i32, i32) {
    %c0_i32 = arith.constant 0 : i32
    %c0_i32_0 = arith.constant 0 : i32
    return %c0_i32, %arg0 : i32, i32
  }
  func.func @transform_1(%arg0: i32) -> (i32, i32) {
    %c0_i32 = arith.constant 0 : i32
    %c0_i32_0 = arith.constant 0 : i32
    %c0_i32_1 = arith.constant 0 : i32
    return %c0_i32, %c0_i32_0 : i32, i32
  }
  func.func @transform_2(%arg0: i32) -> (i32, i32) {
    %c0_i32 = arith.constant 0 : i32
    %c0_i32_0 = arith.constant 0 : i32
    %c0_i32_1 = arith.constant 0 : i32
    return %c0_i32, %c0_i32_0 : i32, i32
  }
  func.func @transform_3(%arg0: i32) -> (i32, i32, i32) {
    %c0_i32 = arith.constant 0 : i32
    %c0_i32_0 = arith.constant 0 : i32
    %c0_i32_1 = arith.constant 0 : i32
    %c0_i32_2 = arith.constant 0 : i32
    return %c0_i32, %c0_i32_0, %c0_i32_1 : i32, i32, i32
  }
  func.func @transform_4(%arg0: i32) -> (i32, i32, i32) {
    %c0_i32 = arith.constant 0 : i32
    %c0_i32_0 = arith.constant 0 : i32
    %c0_i32_1 = arith.constant 0 : i32
    %c0_i32_2 = arith.constant 0 : i32
    return %c0_i32, %c0_i32_0, %c0_i32_1 : i32, i32, i32
  }
  func.func @transform_5(%arg0: i32) -> (i32, i32) {
    %c0_i32 = arith.constant 0 : i32
    %c0_i32_0 = arith.constant 0 : i32
    return %c0_i32, %arg0 : i32, i32
  }
}

module attributes {stable_mosaic.version = 11 : i64} {
  func.func @_spectral_conv1d_kernel(%arg0: i32, %arg1: memref<16x8xf32, #tpu.memory_space<vmem>>, %arg2: memref<16x16xf32, #tpu.memory_space<vmem>>, %arg3: memref<16x16xf32, #tpu.memory_space<vmem>>, %arg4: memref<16x6x4xf32, #tpu.memory_space<vmem>>, %arg5: memref<16x6x4xf32, #tpu.memory_space<vmem>>, %arg6: memref<16x12xf32, #tpu.memory_space<vmem>>) attributes {dimension_semantics = [#tpu.dimension_semantics<parallel>], iteration_bounds = array<i64: 1>, scalar_prefetch = 0 : i64, scratch_operands = 0 : i64, tpu.core_type = #tpu.core_type<tc>, window_params = [{transform_indices = @transform_0, window_bounds = array<i64: 16, 8>}, {pipeline_mode = #tpu.pipeline_mode<synchronous>, transform_indices = @transform_1, window_bounds = array<i64: 16, 16>}, {pipeline_mode = #tpu.pipeline_mode<synchronous>, transform_indices = @transform_2, window_bounds = array<i64: 16, 16>}, {pipeline_mode = #tpu.pipeline_mode<synchronous>, transform_indices = @transform_3, window_bounds = array<i64: 16, 6, 4>}, {pipeline_mode = #tpu.pipeline_mode<synchronous>, transform_indices = @transform_4, window_bounds = array<i64: 16, 6, 4>}, {transform_indices = @transform_5, window_bounds = array<i64: 16, 12>}]} {
    %c0 = arith.constant 0 : index
    %c0_0 = arith.constant 0 : index
    %0 = vector.load %arg2[%c0, %c0_0] : memref<16x16xf32, #tpu.memory_space<vmem>>, vector<16x16xf32>
    %c0_1 = arith.constant 0 : index
    %c0_2 = arith.constant 0 : index
    %1 = vector.load %arg1[%c0_1, %c0_2] : memref<16x8xf32, #tpu.memory_space<vmem>>, vector<16x8xf32>
    %cst = arith.constant dense<0.000000e+00> : vector<16x8xf32>
    %2 = tpu.matmul %0, %1, %cst {dimension_numbers = #tpu.dot_dimension_numbers<[1], [0], [0], [1], [0, 0, 1, 1], [], []>} : vector<16x16xf32>, vector<16x8xf32>, vector<16x8xf32> -> vector<16x8xf32>
    %3 = vector.shape_cast %2 : vector<16x8xf32> to vector<16x2x4xf32>
    %4 = vector.extract_strided_slice %2 {offsets = [8, 0], sizes = [8, 8], strides = [1, 1]} : vector<16x8xf32> to vector<8x8xf32>
    %5 = vector.extract_strided_slice %2 {offsets = [0, 0], sizes = [8, 8], strides = [1, 1]} : vector<16x8xf32> to vector<8x8xf32>
    %6 = tpu.concatenate %4, %5 in 0 : vector<8x8xf32>, vector<8x8xf32> -> vector<16x8xf32>
    %7 = vector.shape_cast %6 : vector<16x8xf32> to vector<16x2x4xf32>
    %c0_3 = arith.constant 0 : index
    %c0_4 = arith.constant 0 : index
    %c0_5 = arith.constant 0 : index
    %8 = vector.load %arg4[%c0_3, %c0_4, %c0_5] : memref<16x6x4xf32, #tpu.memory_space<vmem>>, vector<16x6x4xf32>
    %cst_6 = arith.constant dense<0.000000e+00> : vector<16x2x6xf32>
    %9 = tpu.matmul %3, %8, %cst_6 {dimension_numbers = #tpu.dot_dimension_numbers<[2], [2], [1], [1], [0, 0, 0, 1, 1, 1], [0], [0]>} : vector<16x2x4xf32>, vector<16x6x4xf32>, vector<16x2x6xf32> -> vector<16x2x6xf32>
    %c0_7 = arith.constant 0 : index
    %c0_8 = arith.constant 0 : index
    %c0_9 = arith.constant 0 : index
    %10 = vector.load %arg5[%c0_7, %c0_8, %c0_9] : memref<16x6x4xf32, #tpu.memory_space<vmem>>, vector<16x6x4xf32>
    %cst_10 = arith.constant dense<0.000000e+00> : vector<16x2x6xf32>
    %11 = tpu.matmul %7, %10, %cst_10 {dimension_numbers = #tpu.dot_dimension_numbers<[2], [2], [1], [1], [0, 0, 0, 1, 1, 1], [0], [0]>} : vector<16x2x4xf32>, vector<16x6x4xf32>, vector<16x2x6xf32> -> vector<16x2x6xf32>
    %12 = arith.addf %9, %11 : vector<16x2x6xf32>
    %13 = vector.shape_cast %12 : vector<16x2x6xf32> to vector<16x12xf32>
    %c0_11 = arith.constant 0 : index
    %c0_12 = arith.constant 0 : index
    %14 = vector.load %arg3[%c0_11, %c0_12] : memref<16x16xf32, #tpu.memory_space<vmem>>, vector<16x16xf32>
    %cst_13 = arith.constant dense<0.000000e+00> : vector<16x12xf32>
    %15 = tpu.matmul %14, %13, %cst_13 {dimension_numbers = #tpu.dot_dimension_numbers<[1], [0], [0], [1], [0, 0, 1, 1], [], []>} : vector<16x16xf32>, vector<16x12xf32>, vector<16x12xf32> -> vector<16x12xf32>
    %c0_14 = arith.constant 0 : index
    %c0_15 = arith.constant 0 : index
    %16 = vector.load %arg6[%c0_14, %c0_15] : memref<16x12xf32, #tpu.memory_space<vmem>>, vector<16x12xf32>
    tpu.vector_store %arg6[%c0_14, %c0_15], %15 {strides = array<i32>} : memref<16x12xf32, #tpu.memory_space<vmem>>, vector<16x12xf32>,
    return
  }
  func.func @transform_0(%arg0: i32) -> (i32, i32) {
    %c0_i32 = arith.constant 0 : i32
    %c0_i32_0 = arith.constant 0 : i32
    return %c0_i32, %arg0 : i32, i32
  }
  func.func @transform_1(%arg0: i32) -> (i32, i32) {
    %c0_i32 = arith.constant 0 : i32
    %c0_i32_0 = arith.constant 0 : i32
    %c0_i32_1 = arith.constant 0 : i32
    return %c0_i32, %c0_i32_0 : i32, i32
  }
  func.func @transform_2(%arg0: i32) -> (i32, i32) {
    %c0_i32 = arith.constant 0 : i32
    %c0_i32_0 = arith.constant 0 : i32
    %c0_i32_1 = arith.constant 0 : i32
    return %c0_i32, %c0_i32_0 : i32, i32
  }
  func.func @transform_3(%arg0: i32) -> (i32, i32, i32) {
    %c0_i32 = arith.constant 0 : i32
    %c0_i32_0 = arith.constant 0 : i32
    %c0_i32_1 = arith.constant 0 : i32
    %c0_i32_2 = arith.constant 0 : i32
    return %c0_i32, %c0_i32_0, %c0_i32_1 : i32, i32, i32
  }
  func.func @transform_4(%arg0: i32) -> (i32, i32, i32) {
    %c0_i32 = arith.constant 0 : i32
    %c0_i32_0 = arith.constant 0 : i32
    %c0_i32_1 = arith.constant 0 : i32
    %c0_i32_2 = arith.constant 0 : i32
    return %c0_i32, %c0_i32_0, %c0_i32_1 : i32, i32, i32
  }
  func.func @transform_5(%arg0: i32) -> (i32, i32) {
    %c0_i32 = arith.constant 0 : i32
    %c0_i32_0 = arith.constant 0 : i32
    return %c0_i32, %arg0 : i32, i32
  }
}

</mosaic_0001>

<llo_original>
// kernel: tpu_custom_call.1
$region0: #{tpu_custom_call.1}
  #allocation0 [shape = 'u32[]', space=smem, size = 0x4, offset = 0x4, fixed_abs, tag = 'smem constant byte address 0x4 - core index']
  #allocation1 [shape = 'u32[144,128]{1,0:T(1,128)}', space=vmem, size = 0x12000, scoped, tag = 'internal scratch']
  %s0 = inlined_call_operand.vmem [shape: f32[16,8], index: 0, kind: input, shape index: {}]
  %s1 = inlined_call_operand.vmem [shape: f32[16,16], index: 1, kind: input, shape index: {}]
  %s2 = inlined_call_operand.vmem [shape: f32[16,16], index: 2, kind: input, shape index: {}]
  %s3 = inlined_call_operand.vmem [shape: f32[16,6,4], index: 3, kind: input, shape index: {}]
  %s4 = inlined_call_operand.vmem [shape: f32[16,6,4], index: 4, kind: input, shape index: {}]
  %s5 = inlined_call_operand.hbm [shape: f32[16,12], index: 5, kind: output, shape index: {}]
  %s6 = sld [smem:[#allocation0]]
  $region30: #{tpu_custom_call.1} parent=0
    _
  %s8 = ssub.s32 1, %s6
  %s9 = scalar_select 0, %s8, %s6
  $region1: #{tpu_custom_call.1} parent=0
    #allocation2 [shape = 'u8[8192]{0}', space=vmem, size = 0x2000, scoped, tag = 'output window, operand 0, single buffered']
    #allocation3 [shape = 's32[1]{0}', space=sflag, size = 0x4, scoped, tag = 'scoped memory for tpu_custom_call.1']
    %10 = vsyncpa [#allocation3], 0
    // Predicated region
    $region2: #{tpu_custom_call.1} parent=1 // pred_check
      _
    $region3: #{tpu_custom_call.1} parent=1 // pred_check_branch
      %12 = sbr.rel (0) target = $region5
    $region4: #{tpu_custom_call.1} parent=1 // pred_region
      _
    $region5: #{tpu_custom_call.1} parent=1 // pred_fallthru
      _
    // Predicated region
    $region6: #{tpu_custom_call.1} parent=1 // pred_check
      _
    $region7: #{tpu_custom_call.1} parent=1 // pred_check_branch
      %14 = sbr.rel (0) target = $region9
    $region8: #{tpu_custom_call.1} parent=1 // pred_region
      _
    $region9: #{tpu_custom_call.1} parent=1 // pred_fallthru
      _
    // Predicated region
    $region10: #{tpu_custom_call.1} parent=1 // pred_check
      _
    $region11: #{tpu_custom_call.1} parent=1 // pred_check_branch
      %16 = sbr.rel (0) target = $region13
    $region12: #{tpu_custom_call.1} parent=1 // pred_region
      _
    $region13: #{tpu_custom_call.1} parent=1 // pred_fallthru
      _
    // Predicated region
    $region14: #{tpu_custom_call.1} parent=1 // pred_check
      _
    $region15: #{tpu_custom_call.1} parent=1 // pred_check_branch
      %18 = sbr.rel (0) target = $region17
    $region16: #{tpu_custom_call.1} parent=1 // pred_region
      _
    $region17: #{tpu_custom_call.1} parent=1 // pred_fallthru
      _
    // Predicated region
    $region18: #{tpu_custom_call.1} parent=1 // pred_check
      _
    $region19: #{tpu_custom_call.1} parent=1 // pred_check_branch
      %20 = sbr.rel (0) target = $region21
    $region20: #{tpu_custom_call.1} parent=1 // pred_region
      _
    $region21: #{tpu_custom_call.1} parent=1 // pred_fallthru
      _
    %v21 = vld [vmem:[%s1] sm:$0xff]
    %v22 = vld [vmem:[%s1 + $0x8] sm:$0xff]
    %v23 = vld [vmem:[%s0] sm:$0xff]
    %v24 = vld [vmem:[%s0 + $0x8] sm:$0xff]
    %vm25 = vcmask 130048
    %v27 = vsel %vm25, %v21, 0
    %v30 = vsel %vm25, %v22, 0
    %32 = vmatprep.subr.mxu0 0.0
    %33 = vmatpush1.msra.mxu0 0.0
    %34 = vmatprep.subr.mxu0 0.0
    %35 = vmatpush1.msra.mxu0 0.0
    %36 = vmatprep.subr.mxu0 0.0
    %37 = vmatpush1.msra.mxu0 0.0
    %38 = vmatprep.subr.mxu0 0.0
    %39 = vmatpush1.msra.mxu0 0.0
    %40 = vmatprep.subr.mxu0 0.0
    %41 = vmatpush1.msra.mxu0 0.0
    %42 = vmatprep.subr.mxu0 0.0
    %43 = vmatpush1.msra.mxu0 0.0
    %44 = vmatprep.subr.mxu0 0.0
    %45 = vmatpush1.msra.mxu0 0.0
    %46 = vmatprep.subr.mxu0 0.0
    %47 = vmatpush1.msra.mxu0 0.0
    %48 = vmatprep.subr.mxu0 0.0
    %49 = vmatpush1.msra.mxu0 0.0
    %50 = vmatprep.subr.mxu0 0.0
    %51 = vmatpush1.msra.mxu0 0.0
    %52 = vmatprep.subr.mxu0 0.0
    %53 = vmatpush1.msra.mxu0 0.0
    %54 = vmatprep.subr.mxu0 0.0
    %55 = vmatpush1.msra.mxu0 0.0
    %56 = vmatprep.subr.mxu0 0.0
    %57 = vmatpush1.msra.mxu0 0.0
    %58 = vmatprep.subr.mxu0 0.0
    %59 = vmatpush1.msra.mxu0 0.0
    %60 = vmatprep.subr.mxu0 0.0
    %61 = vmatpush1.msra.mxu0 %v24
    %62 = vmatprep.subr.mxu0 0.0
    %63 = vmatpush1.msra.mxu0 %v23
    %64 = vmatprep.subr.mxu0 0.0
    %65 = vmatpush2.msra.mxu0 0.0
    %66 = vmatprep.subr.mxu0 0.0
    %67 = vmatpush2.msra.mxu0 0.0
    %68 = vmatprep.subr.mxu0 0.0
    %69 = vmatpush2.msra.mxu0 0.0
    %70 = vmatprep.subr.mxu0 0.0
    %71 = vmatpush2.msra.mxu0 0.0
    %72 = vmatprep.subr.mxu0 0.0
    %73 = vmatpush2.msra.mxu0 0.0
    %74 = vmatprep.subr.mxu0 0.0
    %75 = vmatpush2.msra.mxu0 0.0
    %76 = vmatprep.subr.mxu0 0.0
    %77 = vmatpush2.msra.mxu0 0.0
    %78 = vmatprep.subr.mxu0 0.0
    %79 = vmatpush2.msra.mxu0 0.0
    %80 = vmatprep.subr.mxu0 0.0
    %81 = vmatpush2.msra.mxu0 0.0
    %82 = vmatprep.subr.mxu0 0.0
    %83 = vmatpush2.msra.mxu0 0.0
    %84 = vmatprep.subr.mxu0 0.0
    %85 = vmatpush2.msra.mxu0 0.0
    %86 = vmatprep.subr.mxu0 0.0
    %87 = vmatpush2.msra.mxu0 0.0
    %88 = vmatprep.subr.mxu0 0.0
    %89 = vmatpush2.msra.mxu0 0.0
    %90 = vmatprep.subr.mxu0 0.0
    %91 = vmatpush2.msra.mxu0 0.0
    %92 = vmatprep.subr.mxu0 0.0
    %93 = vmatpush2.msra.mxu0 0.0
    %94 = vmatprep.subr.mxu0 0.0
    %95 = vmatpush2.msra.mxu0 0.0
    %96 = vmatprep.mubr.f32.mxu0 0.0
    %97 = vmatmul.mubr.f32.gmra.mxu0 %v27
    %v98 = vpop.f32.mrf.mxu0
    %v99 = vadd.f32 0.0, %v98
    %v100 = vpop.f32.mrf.mxu0
    %101 = vmatprep.mubr.f32.mxu0 0.0
    %102 = vmatmul.mubr.f32.gmra.mxu0 %v30
    %v103 = vpop.f32.mrf.mxu0
    %v104 = vadd.f32 0.0, %v103
    %v105 = vpop.f32.mrf.mxu0
    %106 = vdwg.mxu0
    %109 = vrot.lane.b32.xlu0 %v99, 124
    %v110 = vpop.permute.xlu0 %109
    %111 = vrot.lane.b32.xlu0 %v104, 124
    %v112 = vpop.permute.xlu0 %111
    %v115 = vcombine.high %v99, 0.0
    %v117 = vunpack.c.l.s4 1983009808
    %v118 = vunpack.c.0.s8 %v117
    %v119 = vlaneseq
    %v120 = vshrl.u32 %v119, 7
    %v121 = vsub.s32 %v118, %v120
    %v122 = vrot.slane %v99, %v121
    %v124 = vunpack.c.l.s4 1983009808
    %v125 = vunpack.c.0.s8 %v124
    %v126 = vlaneseq
    %v127 = vshrl.u32 %v126, 7
    %v128 = vsub.s32 %v125, %v127
    %v129 = vrot.slane %v115, %v128
    %v130 = vcombine.high %v110, 0.0
    %v132 = vunpack.c.l.s4 1983009808
    %v133 = vunpack.c.0.s8 %v132
    %v134 = vlaneseq
    %v135 = vshrl.u32 %v134, 7
    %v136 = vsub.s32 %v133, %v135
    %v137 = vrot.slane %v110, %v136
    %v139 = vunpack.c.l.s4 1983009808
    %v140 = vunpack.c.0.s8 %v139
    %v141 = vlaneseq
    %v142 = vshrl.u32 %v141, 7
    %v143 = vsub.s32 %v140, %v142
    %v144 = vrot.slane %v130, %v143
    %v145 = vcombine.low %v122, %v137
    %v146 = vcombine.high %v122, %v137
    %v148 = vunpack.c.l.s4 1934713408
    %v149 = vunpack.c.0.s8 %v148
    %v150 = vlaneseq
    %v151 = vshrl.u32 %v150, 7
    %v152 = vsub.s32 %v149, %v151
    %v153 = vrot.slane %v145, %v152
    %v155 = vunpack.c.l.s4 1934713408
    %v156 = vunpack.c.0.s8 %v155
    %v157 = vlaneseq
    %v158 = vshrl.u32 %v157, 7
    %v159 = vsub.s32 %v156, %v158
    %v160 = vrot.slane %v146, %v159
    %v161 = vcombine.low %v129, %v144
    %v162 = vcombine.high %v129, %v144
    %v164 = vunpack.c.l.s4 1934713408
    %v165 = vunpack.c.0.s8 %v164
    %v166 = vlaneseq
    %v167 = vshrl.u32 %v166, 7
    %v168 = vsub.s32 %v165, %v167
    %v169 = vrot.slane %v161, %v168
    %v171 = vunpack.c.l.s4 1934713408
    %v172 = vunpack.c.0.s8 %v171
    %v173 = vlaneseq
    %v174 = vshrl.u32 %v173, 7
    %v175 = vsub.s32 %v172, %v174
    %v176 = vrot.slane %v162, %v175
    %v177 = vcombine.high %v153, 0.0
    %v178 = vcombine.high %v160, 0.0
    %v179 = vcombine.high %v169, 0.0
    %v180 = vcombine.high %v176, 0.0
    %v181 = vcombine.high %v104, 0.0
    %v183 = vunpack.c.l.s4 1983009808
    %v184 = vunpack.c.0.s8 %v183
    %v185 = vlaneseq
    %v186 = vshrl.u32 %v185, 7
    %v187 = vsub.s32 %v184, %v186
    %v188 = vrot.slane %v104, %v187
    %v190 = vunpack.c.l.s4 1983009808
    %v191 = vunpack.c.0.s8 %v190
    %v192 = vlaneseq
    %v193 = vshrl.u32 %v192, 7
    %v194 = vsub.s32 %v191, %v193
    %v195 = vrot.slane %v181, %v194
    %v196 = vcombine.high %v112, 0.0
    %v198 = vunpack.c.l.s4 1983009808
    %v199 = vunpack.c.0.s8 %v198
    %v200 = vlaneseq
    %v201 = vshrl.u32 %v200, 7
    %v202 = vsub.s32 %v199, %v201
    %v203 = vrot.slane %v112, %v202
    %v205 = vunpack.c.l.s4 1983009808
    %v206 = vunpack.c.0.s8 %v205
    %v207 = vlaneseq
    %v208 = vshrl.u32 %v207, 7
    %v209 = vsub.s32 %v206, %v208
    %v210 = vrot.slane %v196, %v209
    %v211 = vcombine.low %v188, %v203
    %v212 = vcombine.high %v188, %v203
    %v214 = vunpack.c.l.s4 1934713408
    %v215 = vunpack.c.0.s8 %v214
    %v216 = vlaneseq
    %v217 = vshrl.u32 %v216, 7
    %v218 = vsub.s32 %v215, %v217
    %v219 = vrot.slane %v211, %v218
    %v221 = vunpack.c.l.s4 1934713408
    %v222 = vunpack.c.0.s8 %v221
    %v223 = vlaneseq
    %v224 = vshrl.u32 %v223, 7
    %v225 = vsub.s32 %v222, %v224
    %v226 = vrot.slane %v212, %v225
    %v227 = vcombine.low %v195, %v210
    %v228 = vcombine.high %v195, %v210
    %v230 = vunpack.c.l.s4 1934713408
    %v231 = vunpack.c.0.s8 %v230
    %v232 = vlaneseq
    %v233 = vshrl.u32 %v232, 7
    %v234 = vsub.s32 %v231, %v233
    %v235 = vrot.slane %v227, %v234
    %v237 = vunpack.c.l.s4 1934713408
    %v238 = vunpack.c.0.s8 %v237
    %v239 = vlaneseq
    %v240 = vshrl.u32 %v239, 7
    %v241 = vsub.s32 %v238, %v240
    %v242 = vrot.slane %v228, %v241
    %v243 = vcombine.high %v219, 0.0
    %v244 = vcombine.high %v226, 0.0
    %v245 = vcombine.high %v235, 0.0
    %v246 = vcombine.high %v242, 0.0
    %v247 = vld [vmem:[%s3] sm:$0x3f]
    %v248 = vld [vmem:[%s3 + $0x8] sm:$0x3f]
    %v249 = vld [vmem:[%s3 + $0x10] sm:$0x3f]
    %v250 = vld [vmem:[%s3 + $0x18] sm:$0x3f]
    %v251 = vld [vmem:[%s3 + $0x20] sm:$0x3f]
    %v252 = vld [vmem:[%s3 + $0x28] sm:$0x3f]
    %v253 = vld [vmem:[%s3 + $0x30] sm:$0x3f]
    %v254 = vld [vmem:[%s3 + $0x38] sm:$0x3f]
    %v255 = vld [vmem:[%s3 + $0x40] sm:$0x3f]
    %v256 = vld [vmem:[%s3 + $0x48] sm:$0x3f]
    %v257 = vld [vmem:[%s3 + $0x50] sm:$0x3f]
    %v258 = vld [vmem:[%s3 + $0x58] sm:$0x3f]
    %v259 = vld [vmem:[%s3 + $0x60] sm:$0x3f]
    %v260 = vld [vmem:[%s3 + $0x68] sm:$0x3f]
    %v261 = vld [vmem:[%s3 + $0x70] sm:$0x3f]
    %v262 = vld [vmem:[%s3 + $0x78] sm:$0x3f]
    %v263 = vld [vmem:[%s4] sm:$0x3f]
    %v264 = vld [vmem:[%s4 + $0x8] sm:$0x3f]
    %v265 = vld [vmem:[%s4 + $0x10] sm:$0x3f]
    %v266 = vld [vmem:[%s4 + $0x18] sm:$0x3f]
    %v267 = vld [vmem:[%s4 + $0x20] sm:$0x3f]
    %v268 = vld [vmem:[%s4 + $0x28] sm:$0x3f]
    %v269 = vld [vmem:[%s4 + $0x30] sm:$0x3f]
    %v270 = vld [vmem:[%s4 + $0x38] sm:$0x3f]
    %v271 = vld [vmem:[%s4 + $0x40] sm:$0x3f]
    %v272 = vld [vmem:[%s4 + $0x48] sm:$0x3f]
    %v273 = vld [vmem:[%s4 + $0x50] sm:$0x3f]
    %v274 = vld [vmem:[%s4 + $0x58] sm:$0x3f]
    %v275 = vld [vmem:[%s4 + $0x60] sm:$0x3f]
    %v276 = vld [vmem:[%s4 + $0x68] sm:$0x3f]
    %v277 = vld [vmem:[%s4 + $0x70] sm:$0x3f]
    %v278 = vld [vmem:[%s4 + $0x78] sm:$0x3f]
    %vm279 = vcmask 31744
    %v281 = vsel %vm279, %v219, 0
    %v284 = vsel %vm279, %v263, 0
    %286 = vmatprep.subr.mxu0 0.0
    %287 = vmatpush1.xpose.msra.mxu0 0.0
    %288 = vmatprep.subr.mxu0 0.0
    %289 = vmatpush1.xpose.msra.mxu0 0.0
    %290 = vmatprep.subr.mxu0 0.0
    %291 = vmatpush1.xpose.msra.mxu0 0.0
    %292 = vmatprep.subr.mxu0 0.0
    %293 = vmatpush1.xpose.msra.mxu0 0.0
    %294 = vmatprep.subr.mxu0 0.0
    %295 = vmatpush1.xpose.msra.mxu0 0.0
    %296 = vmatprep.subr.mxu0 0.0
    %297 = vmatpush1.xpose.msra.mxu0 0.0
    %298 = vmatprep.subr.mxu0 0.0
    %299 = vmatpush1.xpose.msra.mxu0 0.0
    %300 = vmatprep.subr.mxu0 0.0
    %301 = vmatpush1.xpose.msra.mxu0 0.0
    %302 = vmatprep.subr.mxu0 0.0
    %303 = vmatpush1.xpose.msra.mxu0 0.0
    %304 = vmatprep.subr.mxu0 0.0
    %305 = vmatpush1.xpose.msra.mxu0 0.0
    %306 = vmatprep.subr.mxu0 0.0
    %307 = vmatpush1.xpose.msra.mxu0 0.0
    %308 = vmatprep.subr.mxu0 0.0
    %309 = vmatpush1.xpose.msra.mxu0 0.0
    %310 = vmatprep.subr.mxu0 0.0
    %311 = vmatpush1.xpose.msra.mxu0 0.0
    %312 = vmatprep.subr.mxu0 0.0
    %313 = vmatpush1.xpose.msra.mxu0 0.0
    %314 = vmatprep.subr.mxu0 0.0
    %315 = vmatpush1.xpose.msra.mxu0 0.0
    %316 = vmatprep.subr.mxu0 0.0
    %317 = vmatpush1.xpose.msra.mxu0 %v284
    %318 = vmatprep.subr.mxu0 0.0
    %319 = vmatpush2.xpose.msra.mxu0 0.0
    %320 = vmatprep.subr.mxu0 0.0
    %321 = vmatpush2.xpose.msra.mxu0 0.0
    %322 = vmatprep.subr.mxu0 0.0
    %323 = vmatpush2.xpose.msra.mxu0 0.0
    %324 = vmatprep.subr.mxu0 0.0
    %325 = vmatpush2.xpose.msra.mxu0 0.0
    %326 = vmatprep.subr.mxu0 0.0
    %327 = vmatpush2.xpose.msra.mxu0 0.0
    %328 = vmatprep.subr.mxu0 0.0
    %329 = vmatpush2.xpose.msra.mxu0 0.0
    %330 = vmatprep.subr.mxu0 0.0
    %331 = vmatpush2.xpose.msra.mxu0 0.0
    %332 = vmatprep.subr.mxu0 0.0
    %333 = vmatpush2.xpose.msra.mxu0 0.0
    %334 = vmatprep.subr.mxu0 0.0
    %335 = vmatpush2.xpose.msra.mxu0 0.0
    %336 = vmatprep.subr.mxu0 0.0
    %337 = vmatpush2.xpose.msra.mxu0 0.0
    %338 = vmatprep.subr.mxu0 0.0
    %339 = vmatpush2.xpose.msra.mxu0 0.0
    %340 = vmatprep.subr.mxu0 0.0
    %341 = vmatpush2.xpose.msra.mxu0 0.0
    %342 = vmatprep.subr.mxu0 0.0
    %343 = vmatpush2.xpose.msra.mxu0 0.0
    %344 = vmatprep.subr.mxu0 0.0
    %345 = vmatpush2.xpose.msra.mxu0 0.0
    %346 = vmatprep.subr.mxu0 0.0
    %347 = vmatpush2.xpose.msra.mxu0 0.0
    %348 = vmatprep.subr.mxu0 0.0
    %349 = vmatpush2.xpose.msra.mxu0 0.0
    %350 = vmatprep.mubr.f32.mxu0 0.0
    %351 = vmatmul.mubr.f32.gmra.mxu0 %v281
    %v352 = vpop.f32.mrf.mxu0
    %v353 = vadd.f32 0.0, %v352
    %v354 = vpop.f32.mrf.mxu0
    %355 = vdwg.mxu0
    %v357 = vsel %vm279, %v243, 0
    %v360 = vsel %vm279, %v264, 0
    %362 = vmatprep.subr.mxu0 0.0
    %363 = vmatpush1.xpose.msra.mxu0 0.0
    %364 = vmatprep.subr.mxu0 0.0
    %365 = vmatpush1.xpose.msra.mxu0 0.0
    %366 = vmatprep.subr.mxu0 0.0
    %367 = vmatpush1.xpose.msra.mxu0 0.0
    %368 = vmatprep.subr.mxu0 0.0
    %369 = vmatpush1.xpose.msra.mxu0 0.0
    %370 = vmatprep.subr.mxu0 0.0
    %371 = vmatpush1.xpose.msra.mxu0 0.0
    %372 = vmatprep.subr.mxu0 0.0
    %373 = vmatpush1.xpose.msra.mxu0 0.0
    %374 = vmatprep.subr.mxu0 0.0
    %375 = vmatpush1.xpose.msra.mxu0 0.0
    %376 = vmatprep.subr.mxu0 0.0
    %377 = vmatpush1.xpose.msra.mxu0 0.0
    %378 = vmatprep.subr.mxu0 0.0
    %379 = vmatpush1.xpose.msra.mxu0 0.0
    %380 = vmatprep.subr.mxu0 0.0
    %381 = vmatpush1.xpose.msra.mxu0 0.0
    %382 = vmatprep.subr.mxu0 0.0
    %383 = vmatpush1.xpose.msra.mxu0 0.0
    %384 = vmatprep.subr.mxu0 0.0
    %385 = vmatpush1.xpose.msra.mxu0 0.0
    %386 = vmatprep.subr.mxu0 0.0
    %387 = vmatpush1.xpose.msra.mxu0 0.0
    %388 = vmatprep.subr.mxu0 0.0
    %389 = vmatpush1.xpose.msra.mxu0 0.0
    %390 = vmatprep.subr.mxu0 0.0
    %391 = vmatpush1.xpose.msra.mxu0 0.0
    %392 = vmatprep.subr.mxu0 0.0
    %393 = vmatpush1.xpose.msra.mxu0 %v360
    %394 = vmatprep.subr.mxu0 0.0
    %395 = vmatpush2.xpose.msra.mxu0 0.0
    %396 = vmatprep.subr.mxu0 0.0
    %397 = vmatpush2.xpose.msra.mxu0 0.0
    %398 = vmatprep.subr.mxu0 0.0
    %399 = vmatpush2.xpose.msra.mxu0 0.0
    %400 = vmatprep.subr.mxu0 0.0
    %401 = vmatpush2.xpose.msra.mxu0 0.0
    %402 = vmatprep.subr.mxu0 0.0
    %403 = vmatpush2.xpose.msra.mxu0 0.0
    %404 = vmatprep.subr.mxu0 0.0
    %405 = vmatpush2.xpose.msra.mxu0 0.0
    %406 = vmatprep.subr.mxu0 0.0
    %407 = vmatpush2.xpose.msra.mxu0 0.0
    %408 = vmatprep.subr.mxu0 0.0
    %409 = vmatpush2.xpose.msra.mxu0 0.0
    %410 = vmatprep.subr.mxu0 0.0
    %411 = vmatpush2.xpose.msra.mxu0 0.0
    %412 = vmatprep.subr.mxu0 0.0
    %413 = vmatpush2.xpose.msra.mxu0 0.0
    %414 = vmatprep.subr.mxu0 0.0
    %415 = vmatpush2.xpose.msra.mxu0 0.0
    %416 = vmatprep.subr.mxu0 0.0
    %417 = vmatpush2.xpose.msra.mxu0 0.0
    %418 = vmatprep.subr.mxu0 0.0
    %419 = vmatpush2.xpose.msra.mxu0 0.0
    %420 = vmatprep.subr.mxu0 0.0
    %421 = vmatpush2.xpose.msra.mxu0 0.0
    %422 = vmatprep.subr.mxu0 0.0
    %423 = vmatpush2.xpose.msra.mxu0 0.0
    %424 = vmatprep.subr.mxu0 0.0
    %425 = vmatpush2.xpose.msra.mxu0 0.0
    %426 = vmatprep.mubr.f32.mxu0 0.0
    %427 = vmatmul.mubr.f32.gmra.mxu0 %v357
    %v428 = vpop.f32.mrf.mxu0
    %v429 = vadd.f32 0.0, %v428
    %v430 = vpop.f32.mrf.mxu0
    %431 = vdwg.mxu0
    %v433 = vsel %vm279, %v226, 0
    %v436 = vsel %vm279, %v265, 0
    %438 = vmatprep.subr.mxu0 0.0
    %439 = vmatpush1.xpose.msra.mxu0 0.0
    %440 = vmatprep.subr.mxu0 0.0
    %441 = vmatpush1.xpose.msra.mxu0 0.0
    %442 = vmatprep.subr.mxu0 0.0
    %443 = vmatpush1.xpose.msra.mxu0 0.0
    %444 = vmatprep.subr.mxu0 0.0
    %445 = vmatpush1.xpose.msra.mxu0 0.0
    %446 = vmatprep.subr.mxu0 0.0
    %447 = vmatpush1.xpose.msra.mxu0 0.0
    %448 = vmatprep.subr.mxu0 0.0
    %449 = vmatpush1.xpose.msra.mxu0 0.0
    %450 = vmatprep.subr.mxu0 0.0
    %451 = vmatpush1.xpose.msra.mxu0 0.0
    %452 = vmatprep.subr.mxu0 0.0
    %453 = vmatpush1.xpose.msra.mxu0 0.0
    %454 = vmatprep.subr.mxu0 0.0
    %455 = vmatpush1.xpose.msra.mxu0 0.0
    %456 = vmatprep.subr.mxu0 0.0
    %457 = vmatpush1.xpose.msra.mxu0 0.0
    %458 = vmatprep.subr.mxu0 0.0
    %459 = vmatpush1.xpose.msra.mxu0 0.0
    %460 = vmatprep.subr.mxu0 0.0
    %461 = vmatpush1.xpose.msra.mxu0 0.0
    %462 = vmatprep.subr.mxu0 0.0
    %463 = vmatpush1.xpose.msra.mxu0 0.0
    %464 = vmatprep.subr.mxu0 0.0
    %465 = vmatpush1.xpose.msra.mxu0 0.0
    %466 = vmatprep.subr.mxu0 0.0
    %467 = vmatpush1.xpose.msra.mxu0 0.0
    %468 = vmatprep.subr.mxu0 0.0
    %469 = vmatpush1.xpose.msra.mxu0 %v436
    %470 = vmatprep.subr.mxu0 0.0
    %471 = vmatpush2.xpose.msra.mxu0 0.0
    %472 = vmatprep.subr.mxu0 0.0
    %473 = vmatpush2.xpose.msra.mxu0 0.0
    %474 = vmatprep.subr.mxu0 0.0
    %475 = vmatpush2.xpose.msra.mxu0 0.0
    %476 = vmatprep.subr.mxu0 0.0
    %477 = vmatpush2.xpose.msra.mxu0 0.0
    %478 = vmatprep.subr.mxu0 0.0
    %479 = vmatpush2.xpose.msra.mxu0 0.0
    %480 = vmatprep.subr.mxu0 0.0
    %481 = vmatpush2.xpose.msra.mxu0 0.0
    %482 = vmatprep.subr.mxu0 0.0
    %483 = vmatpush2.xpose.msra.mxu0 0.0
    %484 = vmatprep.subr.mxu0 0.0
    %485 = vmatpush2.xpose.msra.mxu0 0.0
    %486 = vmatprep.subr.mxu0 0.0
    %487 = vmatpush2.xpose.msra.mxu0 0.0
    %488 = vmatprep.subr.mxu0 0.0
    %489 = vmatpush2.xpose.msra.mxu0 0.0
    %490 = vmatprep.subr.mxu0 0.0
    %491 = vmatpush2.xpose.msra.mxu0 0.0
    %492 = vmatprep.subr.mxu0 0.0
    %493 = vmatpush2.xpose.msra.mxu0 0.0
    %494 = vmatprep.subr.mxu0 0.0
    %495 = vmatpush2.xpose.msra.mxu0 0.0
    %496 = vmatprep.subr.mxu0 0.0
    %497 = vmatpush2.xpose.msra.mxu0 0.0
    %498 = vmatprep.subr.mxu0 0.0
    %499 = vmatpush2.xpose.msra.mxu0 0.0
    %500 = vmatprep.subr.mxu0 0.0
    %501 = vmatpush2.xpose.msra.mxu0 0.0
    %502 = vmatprep.mubr.f32.mxu0 0.0
    %503 = vmatmul.mubr.f32.gmra.mxu0 %v433
    %v504 = vpop.f32.mrf.mxu0
    %v505 = vadd.f32 0.0, %v504
    %v506 = vpop.f32.mrf.mxu0
    %507 = vdwg.mxu0
    %v509 = vsel %vm279, %v244, 0
    %v512 = vsel %vm279, %v266, 0
    %514 = vmatprep.subr.mxu0 0.0
    %515 = vmatpush1.xpose.msra.mxu0 0.0
    %516 = vmatprep.subr.mxu0 0.0
    %517 = vmatpush1.xpose.msra.mxu0 0.0
    %518 = vmatprep.subr.mxu0 0.0
    %519 = vmatpush1.xpose.msra.mxu0 0.0
    %520 = vmatprep.subr.mxu0 0.0
    %521 = vmatpush1.xpose.msra.mxu0 0.0
    %522 = vmatprep.subr.mxu0 0.0
    %523 = vmatpush1.xpose.msra.mxu0 0.0
    %524 = vmatprep.subr.mxu0 0.0
    %525 = vmatpush1.xpose.msra.mxu0 0.0
    %526 = vmatprep.subr.mxu0 0.0
    %527 = vmatpush1.xpose.msra.mxu0 0.0
    %528 = vmatprep.subr.mxu0 0.0
    %529 = vmatpush1.xpose.msra.mxu0 0.0
    %530 = vmatprep.subr.mxu0 0.0
    %531 = vmatpush1.xpose.msra.mxu0 0.0
    %532 = vmatprep.subr.mxu0 0.0
    %533 = vmatpush1.xpose.msra.mxu0 0.0
    %534 = vmatprep.subr.mxu0 0.0
    %535 = vmatpush1.xpose.msra.mxu0 0.0
    %536 = vmatprep.subr.mxu0 0.0
    %537 = vmatpush1.xpose.msra.mxu0 0.0
    %538 = vmatprep.subr.mxu0 0.0
    %539 = vmatpush1.xpose.msra.mxu0 0.0
    %540 = vmatprep.subr.mxu0 0.0
    %541 = vmatpush1.xpose.msra.mxu0 0.0
    %542 = vmatprep.subr.mxu0 0.0
    %543 = vmatpush1.xpose.msra.mxu0 0.0
    %544 = vmatprep.subr.mxu0 0.0
    %545 = vmatpush1.xpose.msra.mxu0 %v512
    %546 = vmatprep.subr.mxu0 0.0
    %547 = vmatpush2.xpose.msra.mxu0 0.0
    %548 = vmatprep.subr.mxu0 0.0
    %549 = vmatpush2.xpose.msra.mxu0 0.0
    %550 = vmatprep.subr.mxu0 0.0
    %551 = vmatpush2.xpose.msra.mxu0 0.0
    %552 = vmatprep.subr.mxu0 0.0
    %553 = vmatpush2.xpose.msra.mxu0 0.0
    %554 = vmatprep.subr.mxu0 0.0
    %555 = vmatpush2.xpose.msra.mxu0 0.0
    %556 = vmatprep.subr.mxu0 0.0
    %557 = vmatpush2.xpose.msra.mxu0 0.0
    %558 = vmatprep.subr.mxu0 0.0
    %559 = vmatpush2.xpose.msra.mxu0 0.0
    %560 = vmatprep.subr.mxu0 0.0
    %561 = vmatpush2.xpose.msra.mxu0 0.0
    %562 = vmatprep.subr.mxu0 0.0
    %563 = vmatpush2.xpose.msra.mxu0 0.0
    %564 = vmatprep.subr.mxu0 0.0
    %565 = vmatpush2.xpose.msra.mxu0 0.0
    %566 = vmatprep.subr.mxu0 0.0
    %567 = vmatpush2.xpose.msra.mxu0 0.0
    %568 = vmatprep.subr.mxu0 0.0
    %569 = vmatpush2.xpose.msra.mxu0 0.0
    %570 = vmatprep.subr.mxu0 0.0
    %571 = vmatpush2.xpose.msra.mxu0 0.0
    %572 = vmatprep.subr.mxu0 0.0
    %573 = vmatpush2.xpose.msra.mxu0 0.0
    %574 = vmatprep.subr.mxu0 0.0
    %575 = vmatpush2.xpose.msra.mxu0 0.0
    %576 = vmatprep.subr.mxu0 0.0
    %577 = vmatpush2.xpose.msra.mxu0 0.0
    %578 = vmatprep.mubr.f32.mxu0 0.0
    %579 = vmatmul.mubr.f32.gmra.mxu0 %v509
    %v580 = vpop.f32.mrf.mxu0
    %v581 = vadd.f32 0.0, %v580
    %v582 = vpop.f32.mrf.mxu0
    %583 = vdwg.mxu0
    %v585 = vsel %vm279, %v235, 0
    %v588 = vsel %vm279, %v267, 0
    %590 = vmatprep.subr.mxu0 0.0
    %591 = vmatpush1.xpose.msra.mxu0 0.0
    %592 = vmatprep.subr.mxu0 0.0
    %593 = vmatpush1.xpose.msra.mxu0 0.0
    %594 = vmatprep.subr.mxu0 0.0
    %595 = vmatpush1.xpose.msra.mxu0 0.0
    %596 = vmatprep.subr.mxu0 0.0
    %597 = vmatpush1.xpose.msra.mxu0 0.0
    %598 = vmatprep.subr.mxu0 0.0
    %599 = vmatpush1.xpose.msra.mxu0 0.0
    %600 = vmatprep.subr.mxu0 0.0
    %601 = vmatpush1.xpose.msra.mxu0 0.0
    %602 = vmatprep.subr.mxu0 0.0
    %603 = vmatpush1.xpose.msra.mxu0 0.0
    %604 = vmatprep.subr.mxu0 0.0
    %605 = vmatpush1.xpose.msra.mxu0 0.0
    %606 = vmatprep.subr.mxu0 0.0
    %607 = vmatpush1.xpose.msra.mxu0 0.0
    %608 = vmatprep.subr.mxu0 0.0
    %609 = vmatpush1.xpose.msra.mxu0 0.0
    %610 = vmatprep.subr.mxu0 0.0
    %611 = vmatpush1.xpose.msra.mxu0 0.0
    %612 = vmatprep.subr.mxu0 0.0
    %613 = vmatpush1.xpose.msra.mxu0 0.0
    %614 = vmatprep.subr.mxu0 0.0
    %615 = vmatpush1.xpose.msra.mxu0 0.0
    %616 = vmatprep.subr.mxu0 0.0
    %617 = vmatpush1.xpose.msra.mxu0 0.0
    %618 = vmatprep.subr.mxu0 0.0
    %619 = vmatpush1.xpose.msra.mxu0 0.0
    %620 = vmatprep.subr.mxu0 0.0
    %621 = vmatpush1.xpose.msra.mxu0 %v588
    %622 = vmatprep.subr.mxu0 0.0
    %623 = vmatpush2.xpose.msra.mxu0 0.0
    %624 = vmatprep.subr.mxu0 0.0
    %625 = vmatpush2.xpose.msra.mxu0 0.0
    %626 = vmatprep.subr.mxu0 0.0
    %627 = vmatpush2.xpose.msra.mxu0 0.0
    %628 = vmatprep.subr.mxu0 0.0
    %629 = vmatpush2.xpose.msra.mxu0 0.0
    %630 = vmatprep.subr.mxu0 0.0
    %631 = vmatpush2.xpose.msra.mxu0 0.0
    %632 = vmatprep.subr.mxu0 0.0
    %633 = vmatpush2.xpose.msra.mxu0 0.0
    %634 = vmatprep.subr.mxu0 0.0
    %635 = vmatpush2.xpose.msra.mxu0 0.0
    %636 = vmatprep.subr.mxu0 0.0
    %637 = vmatpush2.xpose.msra.mxu0 0.0
    %638 = vmatprep.subr.mxu0 0.0
    %639 = vmatpush2.xpose.msra.mxu0 0.0
    %640 = vmatprep.subr.mxu0 0.0
    %641 = vmatpush2.xpose.msra.mxu0 0.0
    %642 = vmatprep.subr.mxu0 0.0
    %643 = vmatpush2.xpose.msra.mxu0 0.0
    %644 = vmatprep.subr.mxu0 0.0
    %645 = vmatpush2.xpose.msra.mxu0 0.0
    %646 = vmatprep.subr.mxu0 0.0
    %647 = vmatpush2.xpose.msra.mxu0 0.0
    %648 = vmatprep.subr.mxu0 0.0
    %649 = vmatpush2.xpose.msra.mxu0 0.0
    %650 = vmatprep.subr.mxu0 0.0
    %651 = vmatpush2.xpose.msra.mxu0 0.0
    %652 = vmatprep.subr.mxu0 0.0
    %653 = vmatpush2.xpose.msra.mxu0 0.0
    %654 = vmatprep.mubr.f32.mxu0 0.0
    %655 = vmatmul.mubr.f32.gmra.mxu0 %v585
    %v656 = vpop.f32.mrf.mxu0
    %v657 = vadd.f32 0.0, %v656
    %v658 = vpop.f32.mrf.mxu0
    %659 = vdwg.mxu0
    %v661 = vsel %vm279, %v245, 0
    %v664 = vsel %vm279, %v268, 0
    %666 = vmatprep.subr.mxu0 0.0
    %667 = vmatpush1.xpose.msra.mxu0 0.0
    %668 = vmatprep.subr.mxu0 0.0
    %669 = vmatpush1.xpose.msra.mxu0 0.0
    %670 = vmatprep.subr.mxu0 0.0
    %671 = vmatpush1.xpose.msra.mxu0 0.0
    %672 = vmatprep.subr.mxu0 0.0
    %673 = vmatpush1.xpose.msra.mxu0 0.0
    %674 = vmatprep.subr.mxu0 0.0
    %675 = vmatpush1.xpose.msra.mxu0 0.0
    %676 = vmatprep.subr.mxu0 0.0
    %677 = vmatpush1.xpose.msra.mxu0 0.0
    %678 = vmatprep.subr.mxu0 0.0
    %679 = vmatpush1.xpose.msra.mxu0 0.0
    %680 = vmatprep.subr.mxu0 0.0
    %681 = vmatpush1.xpose.msra.mxu0 0.0
    %682 = vmatprep.subr.mxu0 0.0
    %683 = vmatpush1.xpose.msra.mxu0 0.0
    %684 = vmatprep.subr.mxu0 0.0
    %685 = vmatpush1.xpose.msra.mxu0 0.0
    %686 = vmatprep.subr.mxu0 0.0
    %687 = vmatpush1.xpose.msra.mxu0 0.0
    %688 = vmatprep.subr.mxu0 0.0
    %689 = vmatpush1.xpose.msra.mxu0 0.0
    %690 = vmatprep.subr.mxu0 0.0
    %691 = vmatpush1.xpose.msra.mxu0 0.0
    %692 = vmatprep.subr.mxu0 0.0
    %693 = vmatpush1.xpose.msra.mxu0 0.0
    %694 = vmatprep.subr.mxu0 0.0
    %695 = vmatpush1.xpose.msra.mxu0 0.0
    %696 = vmatprep.subr.mxu0 0.0
    %697 = vmatpush1.xpose.msra.mxu0 %v664
    %698 = vmatprep.subr.mxu0 0.0
    %699 = vmatpush2.xpose.msra.mxu0 0.0
    %700 = vmatprep.subr.mxu0 0.0
    %701 = vmatpush2.xpose.msra.mxu0 0.0
    %702 = vmatprep.subr.mxu0 0.0
    %703 = vmatpush2.xpose.msra.mxu0 0.0
    %704 = vmatprep.subr.mxu0 0.0
    %705 = vmatpush2.xpose.msra.mxu0 0.0
    %706 = vmatprep.subr.mxu0 0.0
    %707 = vmatpush2.xpose.msra.mxu0 0.0
    %708 = vmatprep.subr.mxu0 0.0
    %709 = vmatpush2.xpose.msra.mxu0 0.0
    %710 = vmatprep.subr.mxu0 0.0
    %711 = vmatpush2.xpose.msra.mxu0 0.0
    %712 = vmatprep.subr.mxu0 0.0
    %713 = vmatpush2.xpose.msra.mxu0 0.0
    %714 = vmatprep.subr.mxu0 0.0
    %715 = vmatpush2.xpose.msra.mxu0 0.0
    %716 = vmatprep.subr.mxu0 0.0
    %717 = vmatpush2.xpose.msra.mxu0 0.0
    %718 = vmatprep.subr.mxu0 0.0
    %719 = vmatpush2.xpose.msra.mxu0 0.0
    %720 = vmatprep.subr.mxu0 0.0
    %721 = vmatpush2.xpose.msra.mxu0 0.0
    %722 = vmatprep.subr.mxu0 0.0
    %723 = vmatpush2.xpose.msra.mxu0 0.0
    %724 = vmatprep.subr.mxu0 0.0
    %725 = vmatpush2.xpose.msra.mxu0 0.0
    %726 = vmatprep.subr.mxu0 0.0
    %727 = vmatpush2.xpose.msra.mxu0 0.0
    %728 = vmatprep.subr.mxu0 0.0
    %729 = vmatpush2.xpose.msra.mxu0 0.0
    %730 = vmatprep.mubr.f32.mxu0 0.0
    %731 = vmatmul.mubr.f32.gmra.mxu0 %v661
    %v732 = vpop.f32.mrf.mxu0
    %v733 = vadd.f32 0.0, %v732
    %v734 = vpop.f32.mrf.mxu0
    %735 = vdwg.mxu0
    %v737 = vsel %vm279, %v242, 0
    %v740 = vsel %vm279, %v269, 0
    %742 = vmatprep.subr.mxu0 0.0
    %743 = vmatpush1.xpose.msra.mxu0 0.0
    %744 = vmatprep.subr.mxu0 0.0
    %745 = vmatpush1.xpose.msra.mxu0 0.0
    %746 = vmatprep.subr.mxu0 0.0
    %747 = vmatpush1.xpose.msra.mxu0 0.0
    %748 = vmatprep.subr.mxu0 0.0
    %749 = vmatpush1.xpose.msra.mxu0 0.0
    %750 = vmatprep.subr.mxu0 0.0
    %751 = vmatpush1.xpose.msra.mxu0 0.0
    %752 = vmatprep.subr.mxu0 0.0
    %753 = vmatpush1.xpose.msra.mxu0 0.0
    %754 = vmatprep.subr.mxu0 0.0
    %755 = vmatpush1.xpose.msra.mxu0 0.0
    %756 = vmatprep.subr.mxu0 0.0
    %757 = vmatpush1.xpose.msra.mxu0 0.0
    %758 = vmatprep.subr.mxu0 0.0
    %759 = vmatpush1.xpose.msra.mxu0 0.0
    %760 = vmatprep.subr.mxu0 0.0
    %761 = vmatpush1.xpose.msra.mxu0 0.0
    %762 = vmatprep.subr.mxu0 0.0
    %763 = vmatpush1.xpose.msra.mxu0 0.0
    %764 = vmatprep.subr.mxu0 0.0
    %765 = vmatpush1.xpose.msra.mxu0 0.0
    %766 = vmatprep.subr.mxu0 0.0
    %767 = vmatpush1.xpose.msra.mxu0 0.0
    %768 = vmatprep.subr.mxu0 0.0
    %769 = vmatpush1.xpose.msra.mxu0 0.0
    %770 = vmatprep.subr.mxu0 0.0
    %771 = vmatpush1.xpose.msra.mxu0 0.0
    %772 = vmatprep.subr.mxu0 0.0
    %773 = vmatpush1.xpose.msra.mxu0 %v740
    %774 = vmatprep.subr.mxu0 0.0
    %775 = vmatpush2.xpose.msra.mxu0 0.0
    %776 = vmatprep.subr.mxu0 0.0
    %777 = vmatpush2.xpose.msra.mxu0 0.0
    %778 = vmatprep.subr.mxu0 0.0
    %779 = vmatpush2.xpose.msra.mxu0 0.0
    %780 = vmatprep.subr.mxu0 0.0
    %781 = vmatpush2.xpose.msra.mxu0 0.0
    %782 = vmatprep.subr.mxu0 0.0
    %783 = vmatpush2.xpose.msra.mxu0 0.0
    %784 = vmatprep.subr.mxu0 0.0
    %785 = vmatpush2.xpose.msra.mxu0 0.0
    %786 = vmatprep.subr.mxu0 0.0
    %787 = vmatpush2.xpose.msra.mxu0 0.0
    %788 = vmatprep.subr.mxu0 0.0
    %789 = vmatpush2.xpose.msra.mxu0 0.0
    %790 = vmatprep.subr.mxu0 0.0
    %791 = vmatpush2.xpose.msra.mxu0 0.0
    %792 = vmatprep.subr.mxu0 0.0
    %793 = vmatpush2.xpose.msra.mxu0 0.0
    %794 = vmatprep.subr.mxu0 0.0
    %795 = vmatpush2.xpose.msra.mxu0 0.0
    %796 = vmatprep.subr.mxu0 0.0
    %797 = vmatpush2.xpose.msra.mxu0 0.0
    %798 = vmatprep.subr.mxu0 0.0
    %799 = vmatpush2.xpose.msra.mxu0 0.0
    %800 = vmatprep.subr.mxu0 0.0
    %801 = vmatpush2.xpose.msra.mxu0 0.0
    %802 = vmatprep.subr.mxu0 0.0
    %803 = vmatpush2.xpose.msra.mxu0 0.0
    %804 = vmatprep.subr.mxu0 0.0
    %805 = vmatpush2.xpose.msra.mxu0 0.0
    %806 = vmatprep.mubr.f32.mxu0 0.0
    %807 = vmatmul.mubr.f32.gmra.mxu0 %v737
    %v808 = vpop.f32.mrf.mxu0
    %v809 = vadd.f32 0.0, %v808
    %v810 = vpop.f32.mrf.mxu0
    %811 = vdwg.mxu0
    %v813 = vsel %vm279, %v246, 0
    %v816 = vsel %vm279, %v270, 0
    %818 = vmatprep.subr.mxu0 0.0
    %819 = vmatpush1.xpose.msra.mxu0 0.0
    %820 = vmatprep.subr.mxu0 0.0
    %821 = vmatpush1.xpose.msra.mxu0 0.0
    %822 = vmatprep.subr.mxu0 0.0
    %823 = vmatpush1.xpose.msra.mxu0 0.0
    %824 = vmatprep.subr.mxu0 0.0
    %825 = vmatpush1.xpose.msra.mxu0 0.0
    %826 = vmatprep.subr.mxu0 0.0
    %827 = vmatpush1.xpose.msra.mxu0 0.0
    %828 = vmatprep.subr.mxu0 0.0
    %829 = vmatpush1.xpose.msra.mxu0 0.0
    %830 = vmatprep.subr.mxu0 0.0
    %831 = vmatpush1.xpose.msra.mxu0 0.0
    %832 = vmatprep.subr.mxu0 0.0
    %833 = vmatpush1.xpose.msra.mxu0 0.0
    %834 = vmatprep.subr.mxu0 0.0
    %835 = vmatpush1.xpose.msra.mxu0 0.0
    %836 = vmatprep.subr.mxu0 0.0
    %837 = vmatpush1.xpose.msra.mxu0 0.0
    %838 = vmatprep.subr.mxu0 0.0
    %839 = vmatpush1.xpose.msra.mxu0 0.0
    %840 = vmatprep.subr.mxu0 0.0
    %841 = vmatpush1.xpose.msra.mxu0 0.0
    %842 = vmatprep.subr.mxu0 0.0
    %843 = vmatpush1.xpose.msra.mxu0 0.0
    %844 = vmatprep.subr.mxu0 0.0
    %845 = vmatpush1.xpose.msra.mxu0 0.0
    %846 = vmatprep.subr.mxu0 0.0
    %847 = vmatpush1.xpose.msra.mxu0 0.0
    %848 = vmatprep.subr.mxu0 0.0
    %849 = vmatpush1.xpose.msra.mxu0 %v816
    %850 = vmatprep.subr.mxu0 0.0
    %851 = vmatpush2.xpose.msra.mxu0 0.0
    %852 = vmatprep.subr.mxu0 0.0
    %853 = vmatpush2.xpose.msra.mxu0 0.0
    %854 = vmatprep.subr.mxu0 0.0
    %855 = vmatpush2.xpose.msra.mxu0 0.0
    %856 = vmatprep.subr.mxu0 0.0
    %857 = vmatpush2.xpose.msra.mxu0 0.0
    %858 = vmatprep.subr.mxu0 0.0
    %859 = vmatpush2.xpose.msra.mxu0 0.0
    %860 = vmatprep.subr.mxu0 0.0
    %861 = vmatpush2.xpose.msra.mxu0 0.0
    %862 = vmatprep.subr.mxu0 0.0
    %863 = vmatpush2.xpose.msra.mxu0 0.0
    %864 = vmatprep.subr.mxu0 0.0
    %865 = vmatpush2.xpose.msra.mxu0 0.0
    %866 = vmatprep.subr.mxu0 0.0
    %867 = vmatpush2.xpose.msra.mxu0 0.0
    %868 = vmatprep.subr.mxu0 0.0
    %869 = vmatpush2.xpose.msra.mxu0 0.0
    %870 = vmatprep.subr.mxu0 0.0
    %871 = vmatpush2.xpose.msra.mxu0 0.0
    %872 = vmatprep.subr.mxu0 0.0
    %873 = vmatpush2.xpose.msra.mxu0 0.0
    %874 = vmatprep.subr.mxu0 0.0
    %875 = vmatpush2.xpose.msra.mxu0 0.0
    %876 = vmatprep.subr.mxu0 0.0
    %877 = vmatpush2.xpose.msra.mxu0 0.0
    %878 = vmatprep.subr.mxu0 0.0
    %879 = vmatpush2.xpose.msra.mxu0 0.0
    %880 = vmatprep.subr.mxu0 0.0
    %881 = vmatpush2.xpose.msra.mxu0 0.0
    %882 = vmatprep.mubr.f32.mxu0 0.0
    %883 = vmatmul.mubr.f32.gmra.mxu0 %v813
    %v884 = vpop.f32.mrf.mxu0
    %v885 = vadd.f32 0.0, %v884
    %v886 = vpop.f32.mrf.mxu0
    %887 = vdwg.mxu0
    %v889 = vsel %vm279, %v153, 0
    %v892 = vsel %vm279, %v271, 0
    %894 = vmatprep.subr.mxu0 0.0
    %895 = vmatpush1.xpose.msra.mxu0 0.0
    %896 = vmatprep.subr.mxu0 0.0
    %897 = vmatpush1.xpose.msra.mxu0 0.0
    %898 = vmatprep.subr.mxu0 0.0
    %899 = vmatpush1.xpose.msra.mxu0 0.0
    %900 = vmatprep.subr.mxu0 0.0
    %901 = vmatpush1.xpose.msra.mxu0 0.0
    %902 = vmatprep.subr.mxu0 0.0
    %903 = vmatpush1.xpose.msra.mxu0 0.0
    %904 = vmatprep.subr.mxu0 0.0
    %905 = vmatpush1.xpose.msra.mxu0 0.0
    %906 = vmatprep.subr.mxu0 0.0
    %907 = vmatpush1.xpose.msra.mxu0 0.0
    %908 = vmatprep.subr.mxu0 0.0
    %909 = vmatpush1.xpose.msra.mxu0 0.0
    %910 = vmatprep.subr.mxu0 0.0
    %911 = vmatpush1.xpose.msra.mxu0 0.0
    %912 = vmatprep.subr.mxu0 0.0
    %913 = vmatpush1.xpose.msra.mxu0 0.0
    %914 = vmatprep.subr.mxu0 0.0
    %915 = vmatpush1.xpose.msra.mxu0 0.0
    %916 = vmatprep.subr.mxu0 0.0
    %917 = vmatpush1.xpose.msra.mxu0 0.0
    %918 = vmatprep.subr.mxu0 0.0
    %919 = vmatpush1.xpose.msra.mxu0 0.0
    %920 = vmatprep.subr.mxu0 0.0
    %921 = vmatpush1.xpose.msra.mxu0 0.0
    %922 = vmatprep.subr.mxu0 0.0
    %923 = vmatpush1.xpose.msra.mxu0 0.0
    %924 = vmatprep.subr.mxu0 0.0
    %925 = vmatpush1.xpose.msra.mxu0 %v892
    %926 = vmatprep.subr.mxu0 0.0
    %927 = vmatpush2.xpose.msra.mxu0 0.0
    %928 = vmatprep.subr.mxu0 0.0
    %929 = vmatpush2.xpose.msra.mxu0 0.0
    %930 = vmatprep.subr.mxu0 0.0
    %931 = vmatpush2.xpose.msra.mxu0 0.0
    %932 = vmatprep.subr.mxu0 0.0
    %933 = vmatpush2.xpose.msra.mxu0 0.0
    %934 = vmatprep.subr.mxu0 0.0
    %935 = vmatpush2.xpose.msra.mxu0 0.0
    %936 = vmatprep.subr.mxu0 0.0
    %937 = vmatpush2.xpose.msra.mxu0 0.0
    %938 = vmatprep.subr.mxu0 0.0
    %939 = vmatpush2.xpose.msra.mxu0 0.0
    %940 = vmatprep.subr.mxu0 0.0
    %941 = vmatpush2.xpose.msra.mxu0 0.0
    %942 = vmatprep.subr.mxu0 0.0
    %943 = vmatpush2.xpose.msra.mxu0 0.0
    %944 = vmatprep.subr.mxu0 0.0
    %945 = vmatpush2.xpose.msra.mxu0 0.0
    %946 = vmatprep.subr.mxu0 0.0
    %947 = vmatpush2.xpose.msra.mxu0 0.0
    %948 = vmatprep.subr.mxu0 0.0
    %949 = vmatpush2.xpose.msra.mxu0 0.0
    %950 = vmatprep.subr.mxu0 0.0
    %951 = vmatpush2.xpose.msra.mxu0 0.0
    %952 = vmatprep.subr.mxu0 0.0
    %953 = vmatpush2.xpose.msra.mxu0 0.0
    %954 = vmatprep.subr.mxu0 0.0
    %955 = vmatpush2.xpose.msra.mxu0 0.0
    %956 = vmatprep.subr.mxu0 0.0
    %957 = vmatpush2.xpose.msra.mxu0 0.0
    %958 = vmatprep.mubr.f32.mxu0 0.0
    %959 = vmatmul.mubr.f32.gmra.mxu0 %v889
    %v960 = vpop.f32.mrf.mxu0
    %v961 = vadd.f32 0.0, %v960
    %v962 = vpop.f32.mrf.mxu0
    %963 = vdwg.mxu0
    %v965 = vsel %vm279, %v177, 0
    %v968 = vsel %vm279, %v272, 0
    %970 = vmatprep.subr.mxu0 0.0
    %971 = vmatpush1.xpose.msra.mxu0 0.0
    %972 = vmatprep.subr.mxu0 0.0
    %973 = vmatpush1.xpose.msra.mxu0 0.0
    %974 = vmatprep.subr.mxu0 0.0
    %975 = vmatpush1.xpose.msra.mxu0 0.0
    %976 = vmatprep.subr.mxu0 0.0
    %977 = vmatpush1.xpose.msra.mxu0 0.0
    %978 = vmatprep.subr.mxu0 0.0
    %979 = vmatpush1.xpose.msra.mxu0 0.0
    %980 = vmatprep.subr.mxu0 0.0
    %981 = vmatpush1.xpose.msra.mxu0 0.0
    %982 = vmatprep.subr.mxu0 0.0
    %983 = vmatpush1.xpose.msra.mxu0 0.0
    %984 = vmatprep.subr.mxu0 0.0
    %985 = vmatpush1.xpose.msra.mxu0 0.0
    %986 = vmatprep.subr.mxu0 0.0
    %987 = vmatpush1.xpose.msra.mxu0 0.0
    %988 = vmatprep.subr.mxu0 0.0
    %989 = vmatpush1.xpose.msra.mxu0 0.0
    %990 = vmatprep.subr.mxu0 0.0
    %991 = vmatpush1.xpose.msra.mxu0 0.0
    %992 = vmatprep.subr.mxu0 0.0
    %993 = vmatpush1.xpose.msra.mxu0 0.0
    %994 = vmatprep.subr.mxu0 0.0
    %995 = vmatpush1.xpose.msra.mxu0 0.0
    %996 = vmatprep.subr.mxu0 0.0
    %997 = vmatpush1.xpose.msra.mxu0 0.0
    %998 = vmatprep.subr.mxu0 0.0
    %999 = vmatpush1.xpose.msra.mxu0 0.0
    %1000 = vmatprep.subr.mxu0 0.0
    %1001 = vmatpush1.xpose.msra.mxu0 %v968
    %1002 = vmatprep.subr.mxu0 0.0
    %1003 = vmatpush2.xpose.msra.mxu0 0.0
    %1004 = vmatprep.subr.mxu0 0.0
    %1005 = vmatpush2.xpose.msra.mxu0 0.0
    %1006 = vmatprep.subr.mxu0 0.0
    %1007 = vmatpush2.xpose.msra.mxu0 0.0
    %1008 = vmatprep.subr.mxu0 0.0
    %1009 = vmatpush2.xpose.msra.mxu0 0.0
    %1010 = vmatprep.subr.mxu0 0.0
    %1011 = vmatpush2.xpose.msra.mxu0 0.0
    %1012 = vmatprep.subr.mxu0 0.0
    %1013 = vmatpush2.xpose.msra.mxu0 0.0
    %1014 = vmatprep.subr.mxu0 0.0
    %1015 = vmatpush2.xpose.msra.mxu0 0.0
    %1016 = vmatprep.subr.mxu0 0.0
    %1017 = vmatpush2.xpose.msra.mxu0 0.0
    %1018 = vmatprep.subr.mxu0 0.0
    %1019 = vmatpush2.xpose.msra.mxu0 0.0
    %1020 = vmatprep.subr.mxu0 0.0
    %1021 = vmatpush2.xpose.msra.mxu0 0.0
    %1022 = vmatprep.subr.mxu0 0.0
    %1023 = vmatpush2.xpose.msra.mxu0 0.0
    %1024 = vmatprep.subr.mxu0 0.0
    %1025 = vmatpush2.xpose.msra.mxu0 0.0
    %1026 = vmatprep.subr.mxu0 0.0
    %1027 = vmatpush2.xpose.msra.mxu0 0.0
    %1028 = vmatprep.subr.mxu0 0.0
    %1029 = vmatpush2.xpose.msra.mxu0 0.0
    %1030 = vmatprep.subr.mxu0 0.0
    %1031 = vmatpush2.xpose.msra.mxu0 0.0
    %1032 = vmatprep.subr.mxu0 0.0
    %1033 = vmatpush2.xpose.msra.mxu0 0.0
    %1034 = vmatprep.mubr.f32.mxu0 0.0
    %1035 = vmatmul.mubr.f32.gmra.mxu0 %v965
    %v1036 = vpop.f32.mrf.mxu0
    %v1037 = vadd.f32 0.0, %v1036
    %v1038 = vpop.f32.mrf.mxu0
    %1039 = vdwg.mxu0
    %v1041 = vsel %vm279, %v160, 0
    %v1044 = vsel %vm279, %v273, 0
    %1046 = vmatprep.subr.mxu0 0.0
    %1047 = vmatpush1.xpose.msra.mxu0 0.0
    %1048 = vmatprep.subr.mxu0 0.0
    %1049 = vmatpush1.xpose.msra.mxu0 0.0
    %1050 = vmatprep.subr.mxu0 0.0
    %1051 = vmatpush1.xpose.msra.mxu0 0.0
    %1052 = vmatprep.subr.mxu0 0.0
    %1053 = vmatpush1.xpose.msra.mxu0 0.0
    %1054 = vmatprep.subr.mxu0 0.0
    %1055 = vmatpush1.xpose.msra.mxu0 0.0
    %1056 = vmatprep.subr.mxu0 0.0
    %1057 = vmatpush1.xpose.msra.mxu0 0.0
    %1058 = vmatprep.subr.mxu0 0.0
    %1059 = vmatpush1.xpose.msra.mxu0 0.0
    %1060 = vmatprep.subr.mxu0 0.0
    %1061 = vmatpush1.xpose.msra.mxu0 0.0
    %1062 = vmatprep.subr.mxu0 0.0
    %1063 = vmatpush1.xpose.msra.mxu0 0.0
    %1064 = vmatprep.subr.mxu0 0.0
    %1065 = vmatpush1.xpose.msra.mxu0 0.0
    %1066 = vmatprep.subr.mxu0 0.0
    %1067 = vmatpush1.xpose.msra.mxu0 0.0
    %1068 = vmatprep.subr.mxu0 0.0
    %1069 = vmatpush1.xpose.msra.mxu0 0.0
    %1070 = vmatprep.subr.mxu0 0.0
    %1071 = vmatpush1.xpose.msra.mxu0 0.0
    %1072 = vmatprep.subr.mxu0 0.0
    %1073 = vmatpush1.xpose.msra.mxu0 0.0
    %1074 = vmatprep.subr.mxu0 0.0
    %1075 = vmatpush1.xpose.msra.mxu0 0.0
    %1076 = vmatprep.subr.mxu0 0.0
    %1077 = vmatpush1.xpose.msra.mxu0 %v1044
    %1078 = vmatprep.subr.mxu0 0.0
    %1079 = vmatpush2.xpose.msra.mxu0 0.0
    %1080 = vmatprep.subr.mxu0 0.0
    %1081 = vmatpush2.xpose.msra.mxu0 0.0
    %1082 = vmatprep.subr.mxu0 0.0
    %1083 = vmatpush2.xpose.msra.mxu0 0.0
    %1084 = vmatprep.subr.mxu0 0.0
    %1085 = vmatpush2.xpose.msra.mxu0 0.0
    %1086 = vmatprep.subr.mxu0 0.0
    %1087 = vmatpush2.xpose.msra.mxu0 0.0
    %1088 = vmatprep.subr.mxu0 0.0
    %1089 = vmatpush2.xpose.msra.mxu0 0.0
    %1090 = vmatprep.subr.mxu0 0.0
    %1091 = vmatpush2.xpose.msra.mxu0 0.0
    %1092 = vmatprep.subr.mxu0 0.0
    %1093 = vmatpush2.xpose.msra.mxu0 0.0
    %1094 = vmatprep.subr.mxu0 0.0
    %1095 = vmatpush2.xpose.msra.mxu0 0.0
    %1096 = vmatprep.subr.mxu0 0.0
    %1097 = vmatpush2.xpose.msra.mxu0 0.0
    %1098 = vmatprep.subr.mxu0 0.0
    %1099 = vmatpush2.xpose.msra.mxu0 0.0
    %1100 = vmatprep.subr.mxu0 0.0
    %1101 = vmatpush2.xpose.msra.mxu0 0.0
    %1102 = vmatprep.subr.mxu0 0.0
    %1103 = vmatpush2.xpose.msra.mxu0 0.0
    %1104 = vmatprep.subr.mxu0 0.0
    %1105 = vmatpush2.xpose.msra.mxu0 0.0
    %1106 = vmatprep.subr.mxu0 0.0
    %1107 = vmatpush2.xpose.msra.mxu0 0.0
    %1108 = vmatprep.subr.mxu0 0.0
    %1109 = vmatpush2.xpose.msra.mxu0 0.0
    %1110 = vmatprep.mubr.f32.mxu0 0.0
    %1111 = vmatmul.mubr.f32.gmra.mxu0 %v1041
    %v1112 = vpop.f32.mrf.mxu0
    %v1113 = vadd.f32 0.0, %v1112
    %v1114 = vpop.f32.mrf.mxu0
    %1115 = vdwg.mxu0
    %v1117 = vsel %vm279, %v178, 0
    %v1120 = vsel %vm279, %v274, 0
    %1122 = vmatprep.subr.mxu0 0.0
    %1123 = vmatpush1.xpose.msra.mxu0 0.0
    %1124 = vmatprep.subr.mxu0 0.0
    %1125 = vmatpush1.xpose.msra.mxu0 0.0
    %1126 = vmatprep.subr.mxu0 0.0
    %1127 = vmatpush1.xpose.msra.mxu0 0.0
    %1128 = vmatprep.subr.mxu0 0.0
    %1129 = vmatpush1.xpose.msra.mxu0 0.0
    %1130 = vmatprep.subr.mxu0 0.0
    %1131 = vmatpush1.xpose.msra.mxu0 0.0
    %1132 = vmatprep.subr.mxu0 0.0
    %1133 = vmatpush1.xpose.msra.mxu0 0.0
    %1134 = vmatprep.subr.mxu0 0.0
    %1135 = vmatpush1.xpose.msra.mxu0 0.0
    %1136 = vmatprep.subr.mxu0 0.0
    %1137 = vmatpush1.xpose.msra.mxu0 0.0
    %1138 = vmatprep.subr.mxu0 0.0
    %1139 = vmatpush1.xpose.msra.mxu0 0.0
    %1140 = vmatprep.subr.mxu0 0.0
    %1141 = vmatpush1.xpose.msra.mxu0 0.0
    %1142 = vmatprep.subr.mxu0 0.0
    %1143 = vmatpush1.xpose.msra.mxu0 0.0
    %1144 = vmatprep.subr.mxu0 0.0
    %1145 = vmatpush1.xpose.msra.mxu0 0.0
    %1146 = vmatprep.subr.mxu0 0.0
    %1147 = vmatpush1.xpose.msra.mxu0 0.0
    %1148 = vmatprep.subr.mxu0 0.0
    %1149 = vmatpush1.xpose.msra.mxu0 0.0
    %1150 = vmatprep.subr.mxu0 0.0
    %1151 = vmatpush1.xpose.msra.mxu0 0.0
    %1152 = vmatprep.subr.mxu0 0.0
    %1153 = vmatpush1.xpose.msra.mxu0 %v1120
    %1154 = vmatprep.subr.mxu0 0.0
    %1155 = vmatpush2.xpose.msra.mxu0 0.0
    %1156 = vmatprep.subr.mxu0 0.0
    %1157 = vmatpush2.xpose.msra.mxu0 0.0
    %1158 = vmatprep.subr.mxu0 0.0
    %1159 = vmatpush2.xpose.msra.mxu0 0.0
    %1160 = vmatprep.subr.mxu0 0.0
    %1161 = vmatpush2.xpose.msra.mxu0 0.0
    %1162 = vmatprep.subr.mxu0 0.0
    %1163 = vmatpush2.xpose.msra.mxu0 0.0
    %1164 = vmatprep.subr.mxu0 0.0
    %1165 = vmatpush2.xpose.msra.mxu0 0.0
    %1166 = vmatprep.subr.mxu0 0.0
    %1167 = vmatpush2.xpose.msra.mxu0 0.0
    %1168 = vmatprep.subr.mxu0 0.0
    %1169 = vmatpush2.xpose.msra.mxu0 0.0
    %1170 = vmatprep.subr.mxu0 0.0
    %1171 = vmatpush2.xpose.msra.mxu0 0.0
    %1172 = vmatprep.subr.mxu0 0.0
    %1173 = vmatpush2.xpose.msra.mxu0 0.0
    %1174 = vmatprep.subr.mxu0 0.0
    %1175 = vmatpush2.xpose.msra.mxu0 0.0
    %1176 = vmatprep.subr.mxu0 0.0
    %1177 = vmatpush2.xpose.msra.mxu0 0.0
    %1178 = vmatprep.subr.mxu0 0.0
    %1179 = vmatpush2.xpose.msra.mxu0 0.0
    %1180 = vmatprep.subr.mxu0 0.0
    %1181 = vmatpush2.xpose.msra.mxu0 0.0
    %1182 = vmatprep.subr.mxu0 0.0
    %1183 = vmatpush2.xpose.msra.mxu0 0.0
    %1184 = vmatprep.subr.mxu0 0.0
    %1185 = vmatpush2.xpose.msra.mxu0 0.0
    %1186 = vmatprep.mubr.f32.mxu0 0.0
    %1187 = vmatmul.mubr.f32.gmra.mxu0 %v1117
    %v1188 = vpop.f32.mrf.mxu0
    %v1189 = vadd.f32 0.0, %v1188
    %v1190 = vpop.f32.mrf.mxu0
    %1191 = vdwg.mxu0
    %v1193 = vsel %vm279, %v169, 0
    %v1196 = vsel %vm279, %v275, 0
    %1198 = vmatprep.subr.mxu0 0.0
    %1199 = vmatpush1.xpose.msra.mxu0 0.0
    %1200 = vmatprep.subr.mxu0 0.0
    %1201 = vmatpush1.xpose.msra.mxu0 0.0
    %1202 = vmatprep.subr.mxu0 0.0
    %1203 = vmatpush1.xpose.msra.mxu0 0.0
    %1204 = vmatprep.subr.mxu0 0.0
    %1205 = vmatpush1.xpose.msra.mxu0 0.0
    %1206 = vmatprep.subr.mxu0 0.0
    %1207 = vmatpush1.xpose.msra.mxu0 0.0
    %1208 = vmatprep.subr.mxu0 0.0
    %1209 = vmatpush1.xpose.msra.mxu0 0.0
    %1210 = vmatprep.subr.mxu0 0.0
    %1211 = vmatpush1.xpose.msra.mxu0 0.0
    %1212 = vmatprep.subr.mxu0 0.0
    %1213 = vmatpush1.xpose.msra.mxu0 0.0
    %1214 = vmatprep.subr.mxu0 0.0
    %1215 = vmatpush1.xpose.msra.mxu0 0.0
    %1216 = vmatprep.subr.mxu0 0.0
    %1217 = vmatpush1.xpose.msra.mxu0 0.0
    %1218 = vmatprep.subr.mxu0 0.0
    %1219 = vmatpush1.xpose.msra.mxu0 0.0
    %1220 = vmatprep.subr.mxu0 0.0
    %1221 = vmatpush1.xpose.msra.mxu0 0.0
    %1222 = vmatprep.subr.mxu0 0.0
    %1223 = vmatpush1.xpose.msra.mxu0 0.0
    %1224 = vmatprep.subr.mxu0 0.0
    %1225 = vmatpush1.xpose.msra.mxu0 0.0
    %1226 = vmatprep.subr.mxu0 0.0
    %1227 = vmatpush1.xpose.msra.mxu0 0.0
    %1228 = vmatprep.subr.mxu0 0.0
    %1229 = vmatpush1.xpose.msra.mxu0 %v1196
    %1230 = vmatprep.subr.mxu0 0.0
    %1231 = vmatpush2.xpose.msra.mxu0 0.0
    %1232 = vmatprep.subr.mxu0 0.0
    %1233 = vmatpush2.xpose.msra.mxu0 0.0
    %1234 = vmatprep.subr.mxu0 0.0
    %1235 = vmatpush2.xpose.msra.mxu0 0.0
    %1236 = vmatprep.subr.mxu0 0.0
    %1237 = vmatpush2.xpose.msra.mxu0 0.0
    %1238 = vmatprep.subr.mxu0 0.0
    %1239 = vmatpush2.xpose.msra.mxu0 0.0
    %1240 = vmatprep.subr.mxu0 0.0
    %1241 = vmatpush2.xpose.msra.mxu0 0.0
    %1242 = vmatprep.subr.mxu0 0.0
    %1243 = vmatpush2.xpose.msra.mxu0 0.0
    %1244 = vmatprep.subr.mxu0 0.0
    %1245 = vmatpush2.xpose.msra.mxu0 0.0
    %1246 = vmatprep.subr.mxu0 0.0
    %1247 = vmatpush2.xpose.msra.mxu0 0.0
    %1248 = vmatprep.subr.mxu0 0.0
    %1249 = vmatpush2.xpose.msra.mxu0 0.0
    %1250 = vmatprep.subr.mxu0 0.0
    %1251 = vmatpush2.xpose.msra.mxu0 0.0
    %1252 = vmatprep.subr.mxu0 0.0
    %1253 = vmatpush2.xpose.msra.mxu0 0.0
    %1254 = vmatprep.subr.mxu0 0.0
    %1255 = vmatpush2.xpose.msra.mxu0 0.0
    %1256 = vmatprep.subr.mxu0 0.0
    %1257 = vmatpush2.xpose.msra.mxu0 0.0
    %1258 = vmatprep.subr.mxu0 0.0
    %1259 = vmatpush2.xpose.msra.mxu0 0.0
    %1260 = vmatprep.subr.mxu0 0.0
    %1261 = vmatpush2.xpose.msra.mxu0 0.0
    %1262 = vmatprep.mubr.f32.mxu0 0.0
    %1263 = vmatmul.mubr.f32.gmra.mxu0 %v1193
    %v1264 = vpop.f32.mrf.mxu0
    %v1265 = vadd.f32 0.0, %v1264
    %v1266 = vpop.f32.mrf.mxu0
    %1267 = vdwg.mxu0
    %v1269 = vsel %vm279, %v179, 0
    %v1272 = vsel %vm279, %v276, 0
    %1274 = vmatprep.subr.mxu0 0.0
    %1275 = vmatpush1.xpose.msra.mxu0 0.0
    %1276 = vmatprep.subr.mxu0 0.0
    %1277 = vmatpush1.xpose.msra.mxu0 0.0
    %1278 = vmatprep.subr.mxu0 0.0
    %1279 = vmatpush1.xpose.msra.mxu0 0.0
    %1280 = vmatprep.subr.mxu0 0.0
    %1281 = vmatpush1.xpose.msra.mxu0 0.0
    %1282 = vmatprep.subr.mxu0 0.0
    %1283 = vmatpush1.xpose.msra.mxu0 0.0
    %1284 = vmatprep.subr.mxu0 0.0
    %1285 = vmatpush1.xpose.msra.mxu0 0.0
    %1286 = vmatprep.subr.mxu0 0.0
    %1287 = vmatpush1.xpose.msra.mxu0 0.0
    %1288 = vmatprep.subr.mxu0 0.0
    %1289 = vmatpush1.xpose.msra.mxu0 0.0
    %1290 = vmatprep.subr.mxu0 0.0
    %1291 = vmatpush1.xpose.msra.mxu0 0.0
    %1292 = vmatprep.subr.mxu0 0.0
    %1293 = vmatpush1.xpose.msra.mxu0 0.0
    %1294 = vmatprep.subr.mxu0 0.0
    %1295 = vmatpush1.xpose.msra.mxu0 0.0
    %1296 = vmatprep.subr.mxu0 0.0
    %1297 = vmatpush1.xpose.msra.mxu0 0.0
    %1298 = vmatprep.subr.mxu0 0.0
    %1299 = vmatpush1.xpose.msra.mxu0 0.0
    %1300 = vmatprep.subr.mxu0 0.0
    %1301 = vmatpush1.xpose.msra.mxu0 0.0
    %1302 = vmatprep.subr.mxu0 0.0
    %1303 = vmatpush1.xpose.msra.mxu0 0.0
    %1304 = vmatprep.subr.mxu0 0.0
    %1305 = vmatpush1.xpose.msra.mxu0 %v1272
    %1306 = vmatprep.subr.mxu0 0.0
    %1307 = vmatpush2.xpose.msra.mxu0 0.0
    %1308 = vmatprep.subr.mxu0 0.0
    %1309 = vmatpush2.xpose.msra.mxu0 0.0
    %1310 = vmatprep.subr.mxu0 0.0
    %1311 = vmatpush2.xpose.msra.mxu0 0.0
    %1312 = vmatprep.subr.mxu0 0.0
    %1313 = vmatpush2.xpose.msra.mxu0 0.0
    %1314 = vmatprep.subr.mxu0 0.0
    %1315 = vmatpush2.xpose.msra.mxu0 0.0
    %1316 = vmatprep.subr.mxu0 0.0
    %1317 = vmatpush2.xpose.msra.mxu0 0.0
    %1318 = vmatprep.subr.mxu0 0.0
    %1319 = vmatpush2.xpose.msra.mxu0 0.0
    %1320 = vmatprep.subr.mxu0 0.0
    %1321 = vmatpush2.xpose.msra.mxu0 0.0
    %1322 = vmatprep.subr.mxu0 0.0
    %1323 = vmatpush2.xpose.msra.mxu0 0.0
    %1324 = vmatprep.subr.mxu0 0.0
    %1325 = vmatpush2.xpose.msra.mxu0 0.0
    %1326 = vmatprep.subr.mxu0 0.0
    %1327 = vmatpush2.xpose.msra.mxu0 0.0
    %1328 = vmatprep.subr.mxu0 0.0
    %1329 = vmatpush2.xpose.msra.mxu0 0.0
    %1330 = vmatprep.subr.mxu0 0.0
    %1331 = vmatpush2.xpose.msra.mxu0 0.0
    %1332 = vmatprep.subr.mxu0 0.0
    %1333 = vmatpush2.xpose.msra.mxu0 0.0
    %1334 = vmatprep.subr.mxu0 0.0
    %1335 = vmatpush2.xpose.msra.mxu0 0.0
    %1336 = vmatprep.subr.mxu0 0.0
    %1337 = vmatpush2.xpose.msra.mxu0 0.0
    %1338 = vmatprep.mubr.f32.mxu0 0.0
    %1339 = vmatmul.mubr.f32.gmra.mxu0 %v1269
    %v1340 = vpop.f32.mrf.mxu0
    %v1341 = vadd.f32 0.0, %v1340
    %v1342 = vpop.f32.mrf.mxu0
    %1343 = vdwg.mxu0
    %v1345 = vsel %vm279, %v176, 0
    %v1348 = vsel %vm279, %v277, 0
    %1350 = vmatprep.subr.mxu0 0.0
    %1351 = vmatpush1.xpose.msra.mxu0 0.0
    %1352 = vmatprep.subr.mxu0 0.0
    %1353 = vmatpush1.xpose.msra.mxu0 0.0
    %1354 = vmatprep.subr.mxu0 0.0
    %1355 = vmatpush1.xpose.msra.mxu0 0.0
    %1356 = vmatprep.subr.mxu0 0.0
    %1357 = vmatpush1.xpose.msra.mxu0 0.0
    %1358 = vmatprep.subr.mxu0 0.0
    %1359 = vmatpush1.xpose.msra.mxu0 0.0
    %1360 = vmatprep.subr.mxu0 0.0
    %1361 = vmatpush1.xpose.msra.mxu0 0.0
    %1362 = vmatprep.subr.mxu0 0.0
    %1363 = vmatpush1.xpose.msra.mxu0 0.0
    %1364 = vmatprep.subr.mxu0 0.0
    %1365 = vmatpush1.xpose.msra.mxu0 0.0
    %1366 = vmatprep.subr.mxu0 0.0
    %1367 = vmatpush1.xpose.msra.mxu0 0.0
    %1368 = vmatprep.subr.mxu0 0.0
    %1369 = vmatpush1.xpose.msra.mxu0 0.0
    %1370 = vmatprep.subr.mxu0 0.0
    %1371 = vmatpush1.xpose.msra.mxu0 0.0
    %1372 = vmatprep.subr.mxu0 0.0
    %1373 = vmatpush1.xpose.msra.mxu0 0.0
    %1374 = vmatprep.subr.mxu0 0.0
    %1375 = vmatpush1.xpose.msra.mxu0 0.0
    %1376 = vmatprep.subr.mxu0 0.0
    %1377 = vmatpush1.xpose.msra.mxu0 0.0
    %1378 = vmatprep.subr.mxu0 0.0
    %1379 = vmatpush1.xpose.msra.mxu0 0.0
    %1380 = vmatprep.subr.mxu0 0.0
    %1381 = vmatpush1.xpose.msra.mxu0 %v1348
    %1382 = vmatprep.subr.mxu0 0.0
    %1383 = vmatpush2.xpose.msra.mxu0 0.0
    %1384 = vmatprep.subr.mxu0 0.0
    %1385 = vmatpush2.xpose.msra.mxu0 0.0
    %1386 = vmatprep.subr.mxu0 0.0
    %1387 = vmatpush2.xpose.msra.mxu0 0.0
    %1388 = vmatprep.subr.mxu0 0.0
    %1389 = vmatpush2.xpose.msra.mxu0 0.0
    %1390 = vmatprep.subr.mxu0 0.0
    %1391 = vmatpush2.xpose.msra.mxu0 0.0
    %1392 = vmatprep.subr.mxu0 0.0
    %1393 = vmatpush2.xpose.msra.mxu0 0.0
    %1394 = vmatprep.subr.mxu0 0.0
    %1395 = vmatpush2.xpose.msra.mxu0 0.0
    %1396 = vmatprep.subr.mxu0 0.0
    %1397 = vmatpush2.xpose.msra.mxu0 0.0
    %1398 = vmatprep.subr.mxu0 0.0
    %1399 = vmatpush2.xpose.msra.mxu0 0.0
    %1400 = vmatprep.subr.mxu0 0.0
    %1401 = vmatpush2.xpose.msra.mxu0 0.0
    %1402 = vmatprep.subr.mxu0 0.0
    %1403 = vmatpush2.xpose.msra.mxu0 0.0
    %1404 = vmatprep.subr.mxu0 0.0
    %1405 = vmatpush2.xpose.msra.mxu0 0.0
    %1406 = vmatprep.subr.mxu0 0.0
    %1407 = vmatpush2.xpose.msra.mxu0 0.0
    %1408 = vmatprep.subr.mxu0 0.0
    %1409 = vmatpush2.xpose.msra.mxu0 0.0
    %1410 = vmatprep.subr.mxu0 0.0
    %1411 = vmatpush2.xpose.msra.mxu0 0.0
    %1412 = vmatprep.subr.mxu0 0.0
    %1413 = vmatpush2.xpose.msra.mxu0 0.0
    %1414 = vmatprep.mubr.f32.mxu0 0.0
    %1415 = vmatmul.mubr.f32.gmra.mxu0 %v1345
    %v1416 = vpop.f32.mrf.mxu0
    %v1417 = vadd.f32 0.0, %v1416
    %v1418 = vpop.f32.mrf.mxu0
    %1419 = vdwg.mxu0
    %v1421 = vsel %vm279, %v180, 0
    %v1424 = vsel %vm279, %v278, 0
    %1426 = vmatprep.subr.mxu0 0.0
    %1427 = vmatpush1.xpose.msra.mxu0 0.0
    %1428 = vmatprep.subr.mxu0 0.0
    %1429 = vmatpush1.xpose.msra.mxu0 0.0
    %1430 = vmatprep.subr.mxu0 0.0
    %1431 = vmatpush1.xpose.msra.mxu0 0.0
    %1432 = vmatprep.subr.mxu0 0.0
    %1433 = vmatpush1.xpose.msra.mxu0 0.0
    %1434 = vmatprep.subr.mxu0 0.0
    %1435 = vmatpush1.xpose.msra.mxu0 0.0
    %1436 = vmatprep.subr.mxu0 0.0
    %1437 = vmatpush1.xpose.msra.mxu0 0.0
    %1438 = vmatprep.subr.mxu0 0.0
    %1439 = vmatpush1.xpose.msra.mxu0 0.0
    %1440 = vmatprep.subr.mxu0 0.0
    %1441 = vmatpush1.xpose.msra.mxu0 0.0
    %1442 = vmatprep.subr.mxu0 0.0
    %1443 = vmatpush1.xpose.msra.mxu0 0.0
    %1444 = vmatprep.subr.mxu0 0.0
    %1445 = vmatpush1.xpose.msra.mxu0 0.0
    %1446 = vmatprep.subr.mxu0 0.0
    %1447 = vmatpush1.xpose.msra.mxu0 0.0
    %1448 = vmatprep.subr.mxu0 0.0
    %1449 = vmatpush1.xpose.msra.mxu0 0.0
    %1450 = vmatprep.subr.mxu0 0.0
    %1451 = vmatpush1.xpose.msra.mxu0 0.0
    %1452 = vmatprep.subr.mxu0 0.0
    %1453 = vmatpush1.xpose.msra.mxu0 0.0
    %1454 = vmatprep.subr.mxu0 0.0
    %1455 = vmatpush1.xpose.msra.mxu0 0.0
    %1456 = vmatprep.subr.mxu0 0.0
    %1457 = vmatpush1.xpose.msra.mxu0 %v1424
    %1458 = vmatprep.subr.mxu0 0.0
    %1459 = vmatpush2.xpose.msra.mxu0 0.0
    %1460 = vmatprep.subr.mxu0 0.0
    %1461 = vmatpush2.xpose.msra.mxu0 0.0
    %1462 = vmatprep.subr.mxu0 0.0
    %1463 = vmatpush2.xpose.msra.mxu0 0.0
    %1464 = vmatprep.subr.mxu0 0.0
    %1465 = vmatpush2.xpose.msra.mxu0 0.0
    %1466 = vmatprep.subr.mxu0 0.0
    %1467 = vmatpush2.xpose.msra.mxu0 0.0
    %1468 = vmatprep.subr.mxu0 0.0
    %1469 = vmatpush2.xpose.msra.mxu0 0.0
    %1470 = vmatprep.subr.mxu0 0.0
    %1471 = vmatpush2.xpose.msra.mxu0 0.0
    %1472 = vmatprep.subr.mxu0 0.0
    %1473 = vmatpush2.xpose.msra.mxu0 0.0
    %1474 = vmatprep.subr.mxu0 0.0
    %1475 = vmatpush2.xpose.msra.mxu0 0.0
    %1476 = vmatprep.subr.mxu0 0.0
    %1477 = vmatpush2.xpose.msra.mxu0 0.0
    %1478 = vmatprep.subr.mxu0 0.0
    %1479 = vmatpush2.xpose.msra.mxu0 0.0
    %1480 = vmatprep.subr.mxu0 0.0
    %1481 = vmatpush2.xpose.msra.mxu0 0.0
    %1482 = vmatprep.subr.mxu0 0.0
    %1483 = vmatpush2.xpose.msra.mxu0 0.0
    %1484 = vmatprep.subr.mxu0 0.0
    %1485 = vmatpush2.xpose.msra.mxu0 0.0
    %1486 = vmatprep.subr.mxu0 0.0
    %1487 = vmatpush2.xpose.msra.mxu0 0.0
    %1488 = vmatprep.subr.mxu0 0.0
    %1489 = vmatpush2.xpose.msra.mxu0 0.0
    %1490 = vmatprep.mubr.f32.mxu0 0.0
    %1491 = vmatmul.mubr.f32.gmra.mxu0 %v1421
    %v1492 = vpop.f32.mrf.mxu0
    %v1493 = vadd.f32 0.0, %v1492
    %v1494 = vpop.f32.mrf.mxu0
    %1495 = vdwg.mxu0
    %v1497 = vsel %vm279, %v247, 0
    %1499 = vmatprep.subr.mxu0 0.0
    %1500 = vmatpush1.xpose.msra.mxu0 0.0
    %1501 = vmatprep.subr.mxu0 0.0
    %1502 = vmatpush1.xpose.msra.mxu0 0.0
    %1503 = vmatprep.subr.mxu0 0.0
    %1504 = vmatpush1.xpose.msra.mxu0 0.0
    %1505 = vmatprep.subr.mxu0 0.0
    %1506 = vmatpush1.xpose.msra.mxu0 0.0
    %1507 = vmatprep.subr.mxu0 0.0
    %1508 = vmatpush1.xpose.msra.mxu0 0.0
    %1509 = vmatprep.subr.mxu0 0.0
    %1510 = vmatpush1.xpose.msra.mxu0 0.0
    %1511 = vmatprep.subr.mxu0 0.0
    %1512 = vmatpush1.xpose.msra.mxu0 0.0
    %1513 = vmatprep.subr.mxu0 0.0
    %1514 = vmatpush1.xpose.msra.mxu0 0.0
    %1515 = vmatprep.subr.mxu0 0.0
    %1516 = vmatpush1.xpose.msra.mxu0 0.0
    %1517 = vmatprep.subr.mxu0 0.0
    %1518 = vmatpush1.xpose.msra.mxu0 0.0
    %1519 = vmatprep.subr.mxu0 0.0
    %1520 = vmatpush1.xpose.msra.mxu0 0.0
    %1521 = vmatprep.subr.mxu0 0.0
    %1522 = vmatpush1.xpose.msra.mxu0 0.0
    %1523 = vmatprep.subr.mxu0 0.0
    %1524 = vmatpush1.xpose.msra.mxu0 0.0
    %1525 = vmatprep.subr.mxu0 0.0
    %1526 = vmatpush1.xpose.msra.mxu0 0.0
    %1527 = vmatprep.subr.mxu0 0.0
    %1528 = vmatpush1.xpose.msra.mxu0 0.0
    %1529 = vmatprep.subr.mxu0 0.0
    %1530 = vmatpush1.xpose.msra.mxu0 %v1497
    %1531 = vmatprep.subr.mxu0 0.0
    %1532 = vmatpush2.xpose.msra.mxu0 0.0
    %1533 = vmatprep.subr.mxu0 0.0
    %1534 = vmatpush2.xpose.msra.mxu0 0.0
    %1535 = vmatprep.subr.mxu0 0.0
    %1536 = vmatpush2.xpose.msra.mxu0 0.0
    %1537 = vmatprep.subr.mxu0 0.0
    %1538 = vmatpush2.xpose.msra.mxu0 0.0
    %1539 = vmatprep.subr.mxu0 0.0
    %1540 = vmatpush2.xpose.msra.mxu0 0.0
    %1541 = vmatprep.subr.mxu0 0.0
    %1542 = vmatpush2.xpose.msra.mxu0 0.0
    %1543 = vmatprep.subr.mxu0 0.0
    %1544 = vmatpush2.xpose.msra.mxu0 0.0
    %1545 = vmatprep.subr.mxu0 0.0
    %1546 = vmatpush2.xpose.msra.mxu0 0.0
    %1547 = vmatprep.subr.mxu0 0.0
    %1548 = vmatpush2.xpose.msra.mxu0 0.0
    %1549 = vmatprep.subr.mxu0 0.0
    %1550 = vmatpush2.xpose.msra.mxu0 0.0
    %1551 = vmatprep.subr.mxu0 0.0
    %1552 = vmatpush2.xpose.msra.mxu0 0.0
    %1553 = vmatprep.subr.mxu0 0.0
    %1554 = vmatpush2.xpose.msra.mxu0 0.0
    %1555 = vmatprep.subr.mxu0 0.0
    %1556 = vmatpush2.xpose.msra.mxu0 0.0
    %1557 = vmatprep.subr.mxu0 0.0
    %1558 = vmatpush2.xpose.msra.mxu0 0.0
    %1559 = vmatprep.subr.mxu0 0.0
    %1560 = vmatpush2.xpose.msra.mxu0 0.0
    %1561 = vmatprep.subr.mxu0 0.0
    %1562 = vmatpush2.xpose.msra.mxu0 0.0
    %1563 = vmatprep.mubr.f32.mxu0 0.0
    %1564 = vmatmul.mubr.f32.gmra.mxu0 %v889
    %v1565 = vpop.f32.mrf.mxu0
    %v1566 = vadd.f32 %v353, %v1565
    %v1567 = vpop.f32.mrf.mxu0
    %1568 = vdwg.mxu0
    %v1570 = vsel %vm279, %v248, 0
    %1572 = vmatprep.subr.mxu0 0.0
    %1573 = vmatpush1.xpose.msra.mxu0 0.0
    %1574 = vmatprep.subr.mxu0 0.0
    %1575 = vmatpush1.xpose.msra.mxu0 0.0
    %1576 = vmatprep.subr.mxu0 0.0
    %1577 = vmatpush1.xpose.msra.mxu0 0.0
    %1578 = vmatprep.subr.mxu0 0.0
    %1579 = vmatpush1.xpose.msra.mxu0 0.0
    %1580 = vmatprep.subr.mxu0 0.0
    %1581 = vmatpush1.xpose.msra.mxu0 0.0
    %1582 = vmatprep.subr.mxu0 0.0
    %1583 = vmatpush1.xpose.msra.mxu0 0.0
    %1584 = vmatprep.subr.mxu0 0.0
    %1585 = vmatpush1.xpose.msra.mxu0 0.0
    %1586 = vmatprep.subr.mxu0 0.0
    %1587 = vmatpush1.xpose.msra.mxu0 0.0
    %1588 = vmatprep.subr.mxu0 0.0
    %1589 = vmatpush1.xpose.msra.mxu0 0.0
    %1590 = vmatprep.subr.mxu0 0.0
    %1591 = vmatpush1.xpose.msra.mxu0 0.0
    %1592 = vmatprep.subr.mxu0 0.0
    %1593 = vmatpush1.xpose.msra.mxu0 0.0
    %1594 = vmatprep.subr.mxu0 0.0
    %1595 = vmatpush1.xpose.msra.mxu0 0.0
    %1596 = vmatprep.subr.mxu0 0.0
    %1597 = vmatpush1.xpose.msra.mxu0 0.0
    %1598 = vmatprep.subr.mxu0 0.0
    %1599 = vmatpush1.xpose.msra.mxu0 0.0
    %1600 = vmatprep.subr.mxu0 0.0
    %1601 = vmatpush1.xpose.msra.mxu0 0.0
    %1602 = vmatprep.subr.mxu0 0.0
    %1603 = vmatpush1.xpose.msra.mxu0 %v1570
    %1604 = vmatprep.subr.mxu0 0.0
    %1605 = vmatpush2.xpose.msra.mxu0 0.0
    %1606 = vmatprep.subr.mxu0 0.0
    %1607 = vmatpush2.xpose.msra.mxu0 0.0
    %1608 = vmatprep.subr.mxu0 0.0
    %1609 = vmatpush2.xpose.msra.mxu0 0.0
    %1610 = vmatprep.subr.mxu0 0.0
    %1611 = vmatpush2.xpose.msra.mxu0 0.0
    %1612 = vmatprep.subr.mxu0 0.0
    %1613 = vmatpush2.xpose.msra.mxu0 0.0
    %1614 = vmatprep.subr.mxu0 0.0
    %1615 = vmatpush2.xpose.msra.mxu0 0.0
    %1616 = vmatprep.subr.mxu0 0.0
    %1617 = vmatpush2.xpose.msra.mxu0 0.0
    %1618 = vmatprep.subr.mxu0 0.0
    %1619 = vmatpush2.xpose.msra.mxu0 0.0
    %1620 = vmatprep.subr.mxu0 0.0
    %1621 = vmatpush2.xpose.msra.mxu0 0.0
    %1622 = vmatprep.subr.mxu0 0.0
    %1623 = vmatpush2.xpose.msra.mxu0 0.0
    %1624 = vmatprep.subr.mxu0 0.0
    %1625 = vmatpush2.xpose.msra.mxu0 0.0
    %1626 = vmatprep.subr.mxu0 0.0
    %1627 = vmatpush2.xpose.msra.mxu0 0.0
    %1628 = vmatprep.subr.mxu0 0.0
    %1629 = vmatpush2.xpose.msra.mxu0 0.0
    %1630 = vmatprep.subr.mxu0 0.0
    %1631 = vmatpush2.xpose.msra.mxu0 0.0
    %1632 = vmatprep.subr.mxu0 0.0
    %1633 = vmatpush2.xpose.msra.mxu0 0.0
    %1634 = vmatprep.subr.mxu0 0.0
    %1635 = vmatpush2.xpose.msra.mxu0 0.0
    %1636 = vmatprep.mubr.f32.mxu0 0.0
    %1637 = vmatmul.mubr.f32.gmra.mxu0 %v965
    %v1638 = vpop.f32.mrf.mxu0
    %v1639 = vadd.f32 %v429, %v1638
    %v1640 = vpop.f32.mrf.mxu0
    %1641 = vdwg.mxu0
    %v1643 = vsel %vm279, %v249, 0
    %1645 = vmatprep.subr.mxu0 0.0
    %1646 = vmatpush1.xpose.msra.mxu0 0.0
    %1647 = vmatprep.subr.mxu0 0.0
    %1648 = vmatpush1.xpose.msra.mxu0 0.0
    %1649 = vmatprep.subr.mxu0 0.0
    %1650 = vmatpush1.xpose.msra.mxu0 0.0
    %1651 = vmatprep.subr.mxu0 0.0
    %1652 = vmatpush1.xpose.msra.mxu0 0.0
    %1653 = vmatprep.subr.mxu0 0.0
    %1654 = vmatpush1.xpose.msra.mxu0 0.0
    %1655 = vmatprep.subr.mxu0 0.0
    %1656 = vmatpush1.xpose.msra.mxu0 0.0
    %1657 = vmatprep.subr.mxu0 0.0
    %1658 = vmatpush1.xpose.msra.mxu0 0.0
    %1659 = vmatprep.subr.mxu0 0.0
    %1660 = vmatpush1.xpose.msra.mxu0 0.0
    %1661 = vmatprep.subr.mxu0 0.0
    %1662 = vmatpush1.xpose.msra.mxu0 0.0
    %1663 = vmatprep.subr.mxu0 0.0
    %1664 = vmatpush1.xpose.msra.mxu0 0.0
    %1665 = vmatprep.subr.mxu0 0.0
    %1666 = vmatpush1.xpose.msra.mxu0 0.0
    %1667 = vmatprep.subr.mxu0 0.0
    %1668 = vmatpush1.xpose.msra.mxu0 0.0
    %1669 = vmatprep.subr.mxu0 0.0
    %1670 = vmatpush1.xpose.msra.mxu0 0.0
    %1671 = vmatprep.subr.mxu0 0.0
    %1672 = vmatpush1.xpose.msra.mxu0 0.0
    %1673 = vmatprep.subr.mxu0 0.0
    %1674 = vmatpush1.xpose.msra.mxu0 0.0
    %1675 = vmatprep.subr.mxu0 0.0
    %1676 = vmatpush1.xpose.msra.mxu0 %v1643
    %1677 = vmatprep.subr.mxu0 0.0
    %1678 = vmatpush2.xpose.msra.mxu0 0.0
    %1679 = vmatprep.subr.mxu0 0.0
    %1680 = vmatpush2.xpose.msra.mxu0 0.0
    %1681 = vmatprep.subr.mxu0 0.0
    %1682 = vmatpush2.xpose.msra.mxu0 0.0
    %1683 = vmatprep.subr.mxu0 0.0
    %1684 = vmatpush2.xpose.msra.mxu0 0.0
    %1685 = vmatprep.subr.mxu0 0.0
    %1686 = vmatpush2.xpose.msra.mxu0 0.0
    %1687 = vmatprep.subr.mxu0 0.0
    %1688 = vmatpush2.xpose.msra.mxu0 0.0
    %1689 = vmatprep.subr.mxu0 0.0
    %1690 = vmatpush2.xpose.msra.mxu0 0.0
    %1691 = vmatprep.subr.mxu0 0.0
    %1692 = vmatpush2.xpose.msra.mxu0 0.0
    %1693 = vmatprep.subr.mxu0 0.0
    %1694 = vmatpush2.xpose.msra.mxu0 0.0
    %1695 = vmatprep.subr.mxu0 0.0
    %1696 = vmatpush2.xpose.msra.mxu0 0.0
    %1697 = vmatprep.subr.mxu0 0.0
    %1698 = vmatpush2.xpose.msra.mxu0 0.0
    %1699 = vmatprep.subr.mxu0 0.0
    %1700 = vmatpush2.xpose.msra.mxu0 0.0
    %1701 = vmatprep.subr.mxu0 0.0
    %1702 = vmatpush2.xpose.msra.mxu0 0.0
    %1703 = vmatprep.subr.mxu0 0.0
    %1704 = vmatpush2.xpose.msra.mxu0 0.0
    %1705 = vmatprep.subr.mxu0 0.0
    %1706 = vmatpush2.xpose.msra.mxu0 0.0
    %1707 = vmatprep.subr.mxu0 0.0
    %1708 = vmatpush2.xpose.msra.mxu0 0.0
    %1709 = vmatprep.mubr.f32.mxu0 0.0
    %1710 = vmatmul.mubr.f32.gmra.mxu0 %v1041
    %v1711 = vpop.f32.mrf.mxu0
    %v1712 = vadd.f32 %v505, %v1711
    %v1713 = vpop.f32.mrf.mxu0
    %1714 = vdwg.mxu0
    %v1716 = vsel %vm279, %v250, 0
    %1718 = vmatprep.subr.mxu0 0.0
    %1719 = vmatpush1.xpose.msra.mxu0 0.0
    %1720 = vmatprep.subr.mxu0 0.0
    %1721 = vmatpush1.xpose.msra.mxu0 0.0
    %1722 = vmatprep.subr.mxu0 0.0
    %1723 = vmatpush1.xpose.msra.mxu0 0.0
    %1724 = vmatprep.subr.mxu0 0.0
    %1725 = vmatpush1.xpose.msra.mxu0 0.0
    %1726 = vmatprep.subr.mxu0 0.0
    %1727 = vmatpush1.xpose.msra.mxu0 0.0
    %1728 = vmatprep.subr.mxu0 0.0
    %1729 = vmatpush1.xpose.msra.mxu0 0.0
    %1730 = vmatprep.subr.mxu0 0.0
    %1731 = vmatpush1.xpose.msra.mxu0 0.0
    %1732 = vmatprep.subr.mxu0 0.0
    %1733 = vmatpush1.xpose.msra.mxu0 0.0
    %1734 = vmatprep.subr.mxu0 0.0
    %1735 = vmatpush1.xpose.msra.mxu0 0.0
    %1736 = vmatprep.subr.mxu0 0.0
    %1737 = vmatpush1.xpose.msra.mxu0 0.0
    %1738 = vmatprep.subr.mxu0 0.0
    %1739 = vmatpush1.xpose.msra.mxu0 0.0
    %1740 = vmatprep.subr.mxu0 0.0
    %1741 = vmatpush1.xpose.msra.mxu0 0.0
    %1742 = vmatprep.subr.mxu0 0.0
    %1743 = vmatpush1.xpose.msra.mxu0 0.0
    %1744 = vmatprep.subr.mxu0 0.0
    %1745 = vmatpush1.xpose.msra.mxu0 0.0
    %1746 = vmatprep.subr.mxu0 0.0
    %1747 = vmatpush1.xpose.msra.mxu0 0.0
    %1748 = vmatprep.subr.mxu0 0.0
    %1749 = vmatpush1.xpose.msra.mxu0 %v1716
    %1750 = vmatprep.subr.mxu0 0.0
    %1751 = vmatpush2.xpose.msra.mxu0 0.0
    %1752 = vmatprep.subr.mxu0 0.0
    %1753 = vmatpush2.xpose.msra.mxu0 0.0
    %1754 = vmatprep.subr.mxu0 0.0
    %1755 = vmatpush2.xpose.msra.mxu0 0.0
    %1756 = vmatprep.subr.mxu0 0.0
    %1757 = vmatpush2.xpose.msra.mxu0 0.0
    %1758 = vmatprep.subr.mxu0 0.0
    %1759 = vmatpush2.xpose.msra.mxu0 0.0
    %1760 = vmatprep.subr.mxu0 0.0
    %1761 = vmatpush2.xpose.msra.mxu0 0.0
    %1762 = vmatprep.subr.mxu0 0.0
    %1763 = vmatpush2.xpose.msra.mxu0 0.0
    %1764 = vmatprep.subr.mxu0 0.0
    %1765 = vmatpush2.xpose.msra.mxu0 0.0
    %1766 = vmatprep.subr.mxu0 0.0
    %1767 = vmatpush2.xpose.msra.mxu0 0.0
    %1768 = vmatprep.subr.mxu0 0.0
    %1769 = vmatpush2.xpose.msra.mxu0 0.0
    %1770 = vmatprep.subr.mxu0 0.0
    %1771 = vmatpush2.xpose.msra.mxu0 0.0
    %1772 = vmatprep.subr.mxu0 0.0
    %1773 = vmatpush2.xpose.msra.mxu0 0.0
    %1774 = vmatprep.subr.mxu0 0.0
    %1775 = vmatpush2.xpose.msra.mxu0 0.0
    %1776 = vmatprep.subr.mxu0 0.0
    %1777 = vmatpush2.xpose.msra.mxu0 0.0
    %1778 = vmatprep.subr.mxu0 0.0
    %1779 = vmatpush2.xpose.msra.mxu0 0.0
    %1780 = vmatprep.subr.mxu0 0.0
    %1781 = vmatpush2.xpose.msra.mxu0 0.0
    %1782 = vmatprep.mubr.f32.mxu0 0.0
    %1783 = vmatmul.mubr.f32.gmra.mxu0 %v1117
    %v1784 = vpop.f32.mrf.mxu0
    %v1785 = vadd.f32 %v581, %v1784
    %v1786 = vpop.f32.mrf.mxu0
    %1787 = vdwg.mxu0
    %v1789 = vsel %vm279, %v251, 0
    %1791 = vmatprep.subr.mxu0 0.0
    %1792 = vmatpush1.xpose.msra.mxu0 0.0
    %1793 = vmatprep.subr.mxu0 0.0
    %1794 = vmatpush1.xpose.msra.mxu0 0.0
    %1795 = vmatprep.subr.mxu0 0.0
    %1796 = vmatpush1.xpose.msra.mxu0 0.0
    %1797 = vmatprep.subr.mxu0 0.0
    %1798 = vmatpush1.xpose.msra.mxu0 0.0
    %1799 = vmatprep.subr.mxu0 0.0
    %1800 = vmatpush1.xpose.msra.mxu0 0.0
    %1801 = vmatprep.subr.mxu0 0.0
    %1802 = vmatpush1.xpose.msra.mxu0 0.0
    %1803 = vmatprep.subr.mxu0 0.0
    %1804 = vmatpush1.xpose.msra.mxu0 0.0
    %1805 = vmatprep.subr.mxu0 0.0
    %1806 = vmatpush1.xpose.msra.mxu0 0.0
    %1807 = vmatprep.subr.mxu0 0.0
    %1808 = vmatpush1.xpose.msra.mxu0 0.0
    %1809 = vmatprep.subr.mxu0 0.0
    %1810 = vmatpush1.xpose.msra.mxu0 0.0
    %1811 = vmatprep.subr.mxu0 0.0
    %1812 = vmatpush1.xpose.msra.mxu0 0.0
    %1813 = vmatprep.subr.mxu0 0.0
    %1814 = vmatpush1.xpose.msra.mxu0 0.0
    %1815 = vmatprep.subr.mxu0 0.0
    %1816 = vmatpush1.xpose.msra.mxu0 0.0
    %1817 = vmatprep.subr.mxu0 0.0
    %1818 = vmatpush1.xpose.msra.mxu0 0.0
    %1819 = vmatprep.subr.mxu0 0.0
    %1820 = vmatpush1.xpose.msra.mxu0 0.0
    %1821 = vmatprep.subr.mxu0 0.0
    %1822 = vmatpush1.xpose.msra.mxu0 %v1789
    %1823 = vmatprep.subr.mxu0 0.0
    %1824 = vmatpush2.xpose.msra.mxu0 0.0
    %1825 = vmatprep.subr.mxu0 0.0
    %1826 = vmatpush2.xpose.msra.mxu0 0.0
    %1827 = vmatprep.subr.mxu0 0.0
    %1828 = vmatpush2.xpose.msra.mxu0 0.0
    %1829 = vmatprep.subr.mxu0 0.0
    %1830 = vmatpush2.xpose.msra.mxu0 0.0
    %1831 = vmatprep.subr.mxu0 0.0
    %1832 = vmatpush2.xpose.msra.mxu0 0.0
    %1833 = vmatprep.subr.mxu0 0.0
    %1834 = vmatpush2.xpose.msra.mxu0 0.0
    %1835 = vmatprep.subr.mxu0 0.0
    %1836 = vmatpush2.xpose.msra.mxu0 0.0
    %1837 = vmatprep.subr.mxu0 0.0
    %1838 = vmatpush2.xpose.msra.mxu0 0.0
    %1839 = vmatprep.subr.mxu0 0.0
    %1840 = vmatpush2.xpose.msra.mxu0 0.0
    %1841 = vmatprep.subr.mxu0 0.0
    %1842 = vmatpush2.xpose.msra.mxu0 0.0
    %1843 = vmatprep.subr.mxu0 0.0
    %1844 = vmatpush2.xpose.msra.mxu0 0.0
    %1845 = vmatprep.subr.mxu0 0.0
    %1846 = vmatpush2.xpose.msra.mxu0 0.0
    %1847 = vmatprep.subr.mxu0 0.0
    %1848 = vmatpush2.xpose.msra.mxu0 0.0
    %1849 = vmatprep.subr.mxu0 0.0
    %1850 = vmatpush2.xpose.msra.mxu0 0.0
    %1851 = vmatprep.subr.mxu0 0.0
    %1852 = vmatpush2.xpose.msra.mxu0 0.0
    %1853 = vmatprep.subr.mxu0 0.0
    %1854 = vmatpush2.xpose.msra.mxu0 0.0
    %1855 = vmatprep.mubr.f32.mxu0 0.0
    %1856 = vmatmul.mubr.f32.gmra.mxu0 %v1193
    %v1857 = vpop.f32.mrf.mxu0
    %v1858 = vadd.f32 %v657, %v1857
    %v1859 = vpop.f32.mrf.mxu0
    %1860 = vdwg.mxu0
    %v1862 = vsel %vm279, %v252, 0
    %1864 = vmatprep.subr.mxu0 0.0
    %1865 = vmatpush1.xpose.msra.mxu0 0.0
    %1866 = vmatprep.subr.mxu0 0.0
    %1867 = vmatpush1.xpose.msra.mxu0 0.0
    %1868 = vmatprep.subr.mxu0 0.0
    %1869 = vmatpush1.xpose.msra.mxu0 0.0
    %1870 = vmatprep.subr.mxu0 0.0
    %1871 = vmatpush1.xpose.msra.mxu0 0.0
    %1872 = vmatprep.subr.mxu0 0.0
    %1873 = vmatpush1.xpose.msra.mxu0 0.0
    %1874 = vmatprep.subr.mxu0 0.0
    %1875 = vmatpush1.xpose.msra.mxu0 0.0
    %1876 = vmatprep.subr.mxu0 0.0
    %1877 = vmatpush1.xpose.msra.mxu0 0.0
    %1878 = vmatprep.subr.mxu0 0.0
    %1879 = vmatpush1.xpose.msra.mxu0 0.0
    %1880 = vmatprep.subr.mxu0 0.0
    %1881 = vmatpush1.xpose.msra.mxu0 0.0
    %1882 = vmatprep.subr.mxu0 0.0
    %1883 = vmatpush1.xpose.msra.mxu0 0.0
    %1884 = vmatprep.subr.mxu0 0.0
    %1885 = vmatpush1.xpose.msra.mxu0 0.0
    %1886 = vmatprep.subr.mxu0 0.0
    %1887 = vmatpush1.xpose.msra.mxu0 0.0
    %1888 = vmatprep.subr.mxu0 0.0
    %1889 = vmatpush1.xpose.msra.mxu0 0.0
    %1890 = vmatprep.subr.mxu0 0.0
    %1891 = vmatpush1.xpose.msra.mxu0 0.0
    %1892 = vmatprep.subr.mxu0 0.0
    %1893 = vmatpush1.xpose.msra.mxu0 0.0
    %1894 = vmatprep.subr.mxu0 0.0
    %1895 = vmatpush1.xpose.msra.mxu0 %v1862
    %1896 = vmatprep.subr.mxu0 0.0
    %1897 = vmatpush2.xpose.msra.mxu0 0.0
    %1898 = vmatprep.subr.mxu0 0.0
    %1899 = vmatpush2.xpose.msra.mxu0 0.0
    %1900 = vmatprep.subr.mxu0 0.0
    %1901 = vmatpush2.xpose.msra.mxu0 0.0
    %1902 = vmatprep.subr.mxu0 0.0
    %1903 = vmatpush2.xpose.msra.mxu0 0.0
    %1904 = vmatprep.subr.mxu0 0.0
    %1905 = vmatpush2.xpose.msra.mxu0 0.0
    %1906 = vmatprep.subr.mxu0 0.0
    %1907 = vmatpush2.xpose.msra.mxu0 0.0
    %1908 = vmatprep.subr.mxu0 0.0
    %1909 = vmatpush2.xpose.msra.mxu0 0.0
    %1910 = vmatprep.subr.mxu0 0.0
    %1911 = vmatpush2.xpose.msra.mxu0 0.0
    %1912 = vmatprep.subr.mxu0 0.0
    %1913 = vmatpush2.xpose.msra.mxu0 0.0
    %1914 = vmatprep.subr.mxu0 0.0
    %1915 = vmatpush2.xpose.msra.mxu0 0.0
    %1916 = vmatprep.subr.mxu0 0.0
    %1917 = vmatpush2.xpose.msra.mxu0 0.0
    %1918 = vmatprep.subr.mxu0 0.0
    %1919 = vmatpush2.xpose.msra.mxu0 0.0
    %1920 = vmatprep.subr.mxu0 0.0
    %1921 = vmatpush2.xpose.msra.mxu0 0.0
    %1922 = vmatprep.subr.mxu0 0.0
    %1923 = vmatpush2.xpose.msra.mxu0 0.0
    %1924 = vmatprep.subr.mxu0 0.0
    %1925 = vmatpush2.xpose.msra.mxu0 0.0
    %1926 = vmatprep.subr.mxu0 0.0
    %1927 = vmatpush2.xpose.msra.mxu0 0.0
    %1928 = vmatprep.mubr.f32.mxu0 0.0
    %1929 = vmatmul.mubr.f32.gmra.mxu0 %v1269
    %v1930 = vpop.f32.mrf.mxu0
    %v1931 = vadd.f32 %v733, %v1930
    %v1932 = vpop.f32.mrf.mxu0
    %1933 = vdwg.mxu0
    %v1935 = vsel %vm279, %v253, 0
    %1937 = vmatprep.subr.mxu0 0.0
    %1938 = vmatpush1.xpose.msra.mxu0 0.0
    %1939 = vmatprep.subr.mxu0 0.0
    %1940 = vmatpush1.xpose.msra.mxu0 0.0
    %1941 = vmatprep.subr.mxu0 0.0
    %1942 = vmatpush1.xpose.msra.mxu0 0.0
    %1943 = vmatprep.subr.mxu0 0.0
    %1944 = vmatpush1.xpose.msra.mxu0 0.0
    %1945 = vmatprep.subr.mxu0 0.0
    %1946 = vmatpush1.xpose.msra.mxu0 0.0
    %1947 = vmatprep.subr.mxu0 0.0
    %1948 = vmatpush1.xpose.msra.mxu0 0.0
    %1949 = vmatprep.subr.mxu0 0.0
    %1950 = vmatpush1.xpose.msra.mxu0 0.0
    %1951 = vmatprep.subr.mxu0 0.0
    %1952 = vmatpush1.xpose.msra.mxu0 0.0
    %1953 = vmatprep.subr.mxu0 0.0
    %1954 = vmatpush1.xpose.msra.mxu0 0.0
    %1955 = vmatprep.subr.mxu0 0.0
    %1956 = vmatpush1.xpose.msra.mxu0 0.0
    %1957 = vmatprep.subr.mxu0 0.0
    %1958 = vmatpush1.xpose.msra.mxu0 0.0
    %1959 = vmatprep.subr.mxu0 0.0
    %1960 = vmatpush1.xpose.msra.mxu0 0.0
    %1961 = vmatprep.subr.mxu0 0.0
    %1962 = vmatpush1.xpose.msra.mxu0 0.0
    %1963 = vmatprep.subr.mxu0 0.0
    %1964 = vmatpush1.xpose.msra.mxu0 0.0
    %1965 = vmatprep.subr.mxu0 0.0
    %1966 = vmatpush1.xpose.msra.mxu0 0.0
    %1967 = vmatprep.subr.mxu0 0.0
    %1968 = vmatpush1.xpose.msra.mxu0 %v1935
    %1969 = vmatprep.subr.mxu0 0.0
    %1970 = vmatpush2.xpose.msra.mxu0 0.0
    %1971 = vmatprep.subr.mxu0 0.0
    %1972 = vmatpush2.xpose.msra.mxu0 0.0
    %1973 = vmatprep.subr.mxu0 0.0
    %1974 = vmatpush2.xpose.msra.mxu0 0.0
    %1975 = vmatprep.subr.mxu0 0.0
    %1976 = vmatpush2.xpose.msra.mxu0 0.0
    %1977 = vmatprep.subr.mxu0 0.0
    %1978 = vmatpush2.xpose.msra.mxu0 0.0
    %1979 = vmatprep.subr.mxu0 0.0
    %1980 = vmatpush2.xpose.msra.mxu0 0.0
    %1981 = vmatprep.subr.mxu0 0.0
    %1982 = vmatpush2.xpose.msra.mxu0 0.0
    %1983 = vmatprep.subr.mxu0 0.0
    %1984 = vmatpush2.xpose.msra.mxu0 0.0
    %1985 = vmatprep.subr.mxu0 0.0
    %1986 = vmatpush2.xpose.msra.mxu0 0.0
    %1987 = vmatprep.subr.mxu0 0.0
    %1988 = vmatpush2.xpose.msra.mxu0 0.0
    %1989 = vmatprep.subr.mxu0 0.0
    %1990 = vmatpush2.xpose.msra.mxu0 0.0
    %1991 = vmatprep.subr.mxu0 0.0
    %1992 = vmatpush2.xpose.msra.mxu0 0.0
    %1993 = vmatprep.subr.mxu0 0.0
    %1994 = vmatpush2.xpose.msra.mxu0 0.0
    %1995 = vmatprep.subr.mxu0 0.0
    %1996 = vmatpush2.xpose.msra.mxu0 0.0
    %1997 = vmatprep.subr.mxu0 0.0
    %1998 = vmatpush2.xpose.msra.mxu0 0.0
    %1999 = vmatprep.subr.mxu0 0.0
    %2000 = vmatpush2.xpose.msra.mxu0 0.0
    %2001 = vmatprep.mubr.f32.mxu0 0.0
    %2002 = vmatmul.mubr.f32.gmra.mxu0 %v1345
    %v2003 = vpop.f32.mrf.mxu0
    %v2004 = vadd.f32 %v809, %v2003
    %v2005 = vpop.f32.mrf.mxu0
    %2006 = vdwg.mxu0
    %v2008 = vsel %vm279, %v254, 0
    %2010 = vmatprep.subr.mxu0 0.0
    %2011 = vmatpush1.xpose.msra.mxu0 0.0
    %2012 = vmatprep.subr.mxu0 0.0
    %2013 = vmatpush1.xpose.msra.mxu0 0.0
    %2014 = vmatprep.subr.mxu0 0.0
    %2015 = vmatpush1.xpose.msra.mxu0 0.0
    %2016 = vmatprep.subr.mxu0 0.0
    %2017 = vmatpush1.xpose.msra.mxu0 0.0
    %2018 = vmatprep.subr.mxu0 0.0
    %2019 = vmatpush1.xpose.msra.mxu0 0.0
    %2020 = vmatprep.subr.mxu0 0.0
    %2021 = vmatpush1.xpose.msra.mxu0 0.0
    %2022 = vmatprep.subr.mxu0 0.0
    %2023 = vmatpush1.xpose.msra.mxu0 0.0
    %2024 = vmatprep.subr.mxu0 0.0
    %2025 = vmatpush1.xpose.msra.mxu0 0.0
    %2026 = vmatprep.subr.mxu0 0.0
    %2027 = vmatpush1.xpose.msra.mxu0 0.0
    %2028 = vmatprep.subr.mxu0 0.0
    %2029 = vmatpush1.xpose.msra.mxu0 0.0
    %2030 = vmatprep.subr.mxu0 0.0
    %2031 = vmatpush1.xpose.msra.mxu0 0.0
    %2032 = vmatprep.subr.mxu0 0.0
    %2033 = vmatpush1.xpose.msra.mxu0 0.0
    %2034 = vmatprep.subr.mxu0 0.0
    %2035 = vmatpush1.xpose.msra.mxu0 0.0
    %2036 = vmatprep.subr.mxu0 0.0
    %2037 = vmatpush1.xpose.msra.mxu0 0.0
    %2038 = vmatprep.subr.mxu0 0.0
    %2039 = vmatpush1.xpose.msra.mxu0 0.0
    %2040 = vmatprep.subr.mxu0 0.0
    %2041 = vmatpush1.xpose.msra.mxu0 %v2008
    %2042 = vmatprep.subr.mxu0 0.0
    %2043 = vmatpush2.xpose.msra.mxu0 0.0
    %2044 = vmatprep.subr.mxu0 0.0
    %2045 = vmatpush2.xpose.msra.mxu0 0.0
    %2046 = vmatprep.subr.mxu0 0.0
    %2047 = vmatpush2.xpose.msra.mxu0 0.0
    %2048 = vmatprep.subr.mxu0 0.0
    %2049 = vmatpush2.xpose.msra.mxu0 0.0
    %2050 = vmatprep.subr.mxu0 0.0
    %2051 = vmatpush2.xpose.msra.mxu0 0.0
    %2052 = vmatprep.subr.mxu0 0.0
    %2053 = vmatpush2.xpose.msra.mxu0 0.0
    %2054 = vmatprep.subr.mxu0 0.0
    %2055 = vmatpush2.xpose.msra.mxu0 0.0
    %2056 = vmatprep.subr.mxu0 0.0
    %2057 = vmatpush2.xpose.msra.mxu0 0.0
    %2058 = vmatprep.subr.mxu0 0.0
    %2059 = vmatpush2.xpose.msra.mxu0 0.0
    %2060 = vmatprep.subr.mxu0 0.0
    %2061 = vmatpush2.xpose.msra.mxu0 0.0
    %2062 = vmatprep.subr.mxu0 0.0
    %2063 = vmatpush2.xpose.msra.mxu0 0.0
    %2064 = vmatprep.subr.mxu0 0.0
    %2065 = vmatpush2.xpose.msra.mxu0 0.0
    %2066 = vmatprep.subr.mxu0 0.0
    %2067 = vmatpush2.xpose.msra.mxu0 0.0
    %2068 = vmatprep.subr.mxu0 0.0
    %2069 = vmatpush2.xpose.msra.mxu0 0.0
    %2070 = vmatprep.subr.mxu0 0.0
    %2071 = vmatpush2.xpose.msra.mxu0 0.0
    %2072 = vmatprep.subr.mxu0 0.0
    %2073 = vmatpush2.xpose.msra.mxu0 0.0
    %2074 = vmatprep.mubr.f32.mxu0 0.0
    %2075 = vmatmul.mubr.f32.gmra.mxu0 %v1421
    %v2076 = vpop.f32.mrf.mxu0
    %v2077 = vadd.f32 %v885, %v2076
    %v2078 = vpop.f32.mrf.mxu0
    %2079 = vdwg.mxu0
    %v2081 = vsel %vm279, %v255, 0
    %2083 = vmatprep.subr.mxu0 0.0
    %2084 = vmatpush1.xpose.msra.mxu0 0.0
    %2085 = vmatprep.subr.mxu0 0.0
    %2086 = vmatpush1.xpose.msra.mxu0 0.0
    %2087 = vmatprep.subr.mxu0 0.0
    %2088 = vmatpush1.xpose.msra.mxu0 0.0
    %2089 = vmatprep.subr.mxu0 0.0
    %2090 = vmatpush1.xpose.msra.mxu0 0.0
    %2091 = vmatprep.subr.mxu0 0.0
    %2092 = vmatpush1.xpose.msra.mxu0 0.0
    %2093 = vmatprep.subr.mxu0 0.0
    %2094 = vmatpush1.xpose.msra.mxu0 0.0
    %2095 = vmatprep.subr.mxu0 0.0
    %2096 = vmatpush1.xpose.msra.mxu0 0.0
    %2097 = vmatprep.subr.mxu0 0.0
    %2098 = vmatpush1.xpose.msra.mxu0 0.0
    %2099 = vmatprep.subr.mxu0 0.0
    %2100 = vmatpush1.xpose.msra.mxu0 0.0
    %2101 = vmatprep.subr.mxu0 0.0
    %2102 = vmatpush1.xpose.msra.mxu0 0.0
    %2103 = vmatprep.subr.mxu0 0.0
    %2104 = vmatpush1.xpose.msra.mxu0 0.0
    %2105 = vmatprep.subr.mxu0 0.0
    %2106 = vmatpush1.xpose.msra.mxu0 0.0
    %2107 = vmatprep.subr.mxu0 0.0
    %2108 = vmatpush1.xpose.msra.mxu0 0.0
    %2109 = vmatprep.subr.mxu0 0.0
    %2110 = vmatpush1.xpose.msra.mxu0 0.0
    %2111 = vmatprep.subr.mxu0 0.0
    %2112 = vmatpush1.xpose.msra.mxu0 0.0
    %2113 = vmatprep.subr.mxu0 0.0
    %2114 = vmatpush1.xpose.msra.mxu0 %v2081
    %2115 = vmatprep.subr.mxu0 0.0
    %2116 = vmatpush2.xpose.msra.mxu0 0.0
    %2117 = vmatprep.subr.mxu0 0.0
    %2118 = vmatpush2.xpose.msra.mxu0 0.0
    %2119 = vmatprep.subr.mxu0 0.0
    %2120 = vmatpush2.xpose.msra.mxu0 0.0
    %2121 = vmatprep.subr.mxu0 0.0
    %2122 = vmatpush2.xpose.msra.mxu0 0.0
    %2123 = vmatprep.subr.mxu0 0.0
    %2124 = vmatpush2.xpose.msra.mxu0 0.0
    %2125 = vmatprep.subr.mxu0 0.0
    %2126 = vmatpush2.xpose.msra.mxu0 0.0
    %2127 = vmatprep.subr.mxu0 0.0
    %2128 = vmatpush2.xpose.msra.mxu0 0.0
    %2129 = vmatprep.subr.mxu0 0.0
    %2130 = vmatpush2.xpose.msra.mxu0 0.0
    %2131 = vmatprep.subr.mxu0 0.0
    %2132 = vmatpush2.xpose.msra.mxu0 0.0
    %2133 = vmatprep.subr.mxu0 0.0
    %2134 = vmatpush2.xpose.msra.mxu0 0.0
    %2135 = vmatprep.subr.mxu0 0.0
    %2136 = vmatpush2.xpose.msra.mxu0 0.0
    %2137 = vmatprep.subr.mxu0 0.0
    %2138 = vmatpush2.xpose.msra.mxu0 0.0
    %2139 = vmatprep.subr.mxu0 0.0
    %2140 = vmatpush2.xpose.msra.mxu0 0.0
    %2141 = vmatprep.subr.mxu0 0.0
    %2142 = vmatpush2.xpose.msra.mxu0 0.0
    %2143 = vmatprep.subr.mxu0 0.0
    %2144 = vmatpush2.xpose.msra.mxu0 0.0
    %2145 = vmatprep.subr.mxu0 0.0
    %2146 = vmatpush2.xpose.msra.mxu0 0.0
    %2147 = vmatprep.mubr.f32.mxu0 0.0
    %2148 = vmatmul.mubr.f32.gmra.mxu0 %v281
    %v2149 = vpop.f32.mrf.mxu0
    %v2150 = vadd.f32 %v961, %v2149
    %v2151 = vpop.f32.mrf.mxu0
    %2152 = vdwg.mxu0
    %v2154 = vsel %vm279, %v256, 0
    %2156 = vmatprep.subr.mxu0 0.0
    %2157 = vmatpush1.xpose.msra.mxu0 0.0
    %2158 = vmatprep.subr.mxu0 0.0
    %2159 = vmatpush1.xpose.msra.mxu0 0.0
    %2160 = vmatprep.subr.mxu0 0.0
    %2161 = vmatpush1.xpose.msra.mxu0 0.0
    %2162 = vmatprep.subr.mxu0 0.0
    %2163 = vmatpush1.xpose.msra.mxu0 0.0
    %2164 = vmatprep.subr.mxu0 0.0
    %2165 = vmatpush1.xpose.msra.mxu0 0.0
    %2166 = vmatprep.subr.mxu0 0.0
    %2167 = vmatpush1.xpose.msra.mxu0 0.0
    %2168 = vmatprep.subr.mxu0 0.0
    %2169 = vmatpush1.xpose.msra.mxu0 0.0
    %2170 = vmatprep.subr.mxu0 0.0
    %2171 = vmatpush1.xpose.msra.mxu0 0.0
    %2172 = vmatprep.subr.mxu0 0.0
    %2173 = vmatpush1.xpose.msra.mxu0 0.0
    %2174 = vmatprep.subr.mxu0 0.0
    %2175 = vmatpush1.xpose.msra.mxu0 0.0
    %2176 = vmatprep.subr.mxu0 0.0
    %2177 = vmatpush1.xpose.msra.mxu0 0.0
    %2178 = vmatprep.subr.mxu0 0.0
    %2179 = vmatpush1.xpose.msra.mxu0 0.0
    %2180 = vmatprep.subr.mxu0 0.0
    %2181 = vmatpush1.xpose.msra.mxu0 0.0
    %2182 = vmatprep.subr.mxu0 0.0
    %2183 = vmatpush1.xpose.msra.mxu0 0.0
    %2184 = vmatprep.subr.mxu0 0.0
    %2185 = vmatpush1.xpose.msra.mxu0 0.0
    %2186 = vmatprep.subr.mxu0 0.0
    %2187 = vmatpush1.xpose.msra.mxu0 %v2154
    %2188 = vmatprep.subr.mxu0 0.0
    %2189 = vmatpush2.xpose.msra.mxu0 0.0
    %2190 = vmatprep.subr.mxu0 0.0
    %2191 = vmatpush2.xpose.msra.mxu0 0.0
    %2192 = vmatprep.subr.mxu0 0.0
    %2193 = vmatpush2.xpose.msra.mxu0 0.0
    %2194 = vmatprep.subr.mxu0 0.0
    %2195 = vmatpush2.xpose.msra.mxu0 0.0
    %2196 = vmatprep.subr.mxu0 0.0
    %2197 = vmatpush2.xpose.msra.mxu0 0.0
    %2198 = vmatprep.subr.mxu0 0.0
    %2199 = vmatpush2.xpose.msra.mxu0 0.0
    %2200 = vmatprep.subr.mxu0 0.0
    %2201 = vmatpush2.xpose.msra.mxu0 0.0
    %2202 = vmatprep.subr.mxu0 0.0
    %2203 = vmatpush2.xpose.msra.mxu0 0.0
    %2204 = vmatprep.subr.mxu0 0.0
    %2205 = vmatpush2.xpose.msra.mxu0 0.0
    %2206 = vmatprep.subr.mxu0 0.0
    %2207 = vmatpush2.xpose.msra.mxu0 0.0
    %2208 = vmatprep.subr.mxu0 0.0
    %2209 = vmatpush2.xpose.msra.mxu0 0.0
    %2210 = vmatprep.subr.mxu0 0.0
    %2211 = vmatpush2.xpose.msra.mxu0 0.0
    %2212 = vmatprep.subr.mxu0 0.0
    %2213 = vmatpush2.xpose.msra.mxu0 0.0
    %2214 = vmatprep.subr.mxu0 0.0
    %2215 = vmatpush2.xpose.msra.mxu0 0.0
    %2216 = vmatprep.subr.mxu0 0.0
    %2217 = vmatpush2.xpose.msra.mxu0 0.0
    %2218 = vmatprep.subr.mxu0 0.0
    %2219 = vmatpush2.xpose.msra.mxu0 0.0
    %2220 = vmatprep.mubr.f32.mxu0 0.0
    %2221 = vmatmul.mubr.f32.gmra.mxu0 %v357
    %v2222 = vpop.f32.mrf.mxu0
    %v2223 = vadd.f32 %v1037, %v2222
    %v2224 = vpop.f32.mrf.mxu0
    %2225 = vdwg.mxu0
    %v2227 = vsel %vm279, %v257, 0
    %2229 = vmatprep.subr.mxu0 0.0
    %2230 = vmatpush1.xpose.msra.mxu0 0.0
    %2231 = vmatprep.subr.mxu0 0.0
    %2232 = vmatpush1.xpose.msra.mxu0 0.0
    %2233 = vmatprep.subr.mxu0 0.0
    %2234 = vmatpush1.xpose.msra.mxu0 0.0
    %2235 = vmatprep.subr.mxu0 0.0
    %2236 = vmatpush1.xpose.msra.mxu0 0.0
    %2237 = vmatprep.subr.mxu0 0.0
    %2238 = vmatpush1.xpose.msra.mxu0 0.0
    %2239 = vmatprep.subr.mxu0 0.0
    %2240 = vmatpush1.xpose.msra.mxu0 0.0
    %2241 = vmatprep.subr.mxu0 0.0
    %2242 = vmatpush1.xpose.msra.mxu0 0.0
    %2243 = vmatprep.subr.mxu0 0.0
    %2244 = vmatpush1.xpose.msra.mxu0 0.0
    %2245 = vmatprep.subr.mxu0 0.0
    %2246 = vmatpush1.xpose.msra.mxu0 0.0
    %2247 = vmatprep.subr.mxu0 0.0
    %2248 = vmatpush1.xpose.msra.mxu0 0.0
    %2249 = vmatprep.subr.mxu0 0.0
    %2250 = vmatpush1.xpose.msra.mxu0 0.0
    %2251 = vmatprep.subr.mxu0 0.0
    %2252 = vmatpush1.xpose.msra.mxu0 0.0
    %2253 = vmatprep.subr.mxu0 0.0
    %2254 = vmatpush1.xpose.msra.mxu0 0.0
    %2255 = vmatprep.subr.mxu0 0.0
    %2256 = vmatpush1.xpose.msra.mxu0 0.0
    %2257 = vmatprep.subr.mxu0 0.0
    %2258 = vmatpush1.xpose.msra.mxu0 0.0
    %2259 = vmatprep.subr.mxu0 0.0
    %2260 = vmatpush1.xpose.msra.mxu0 %v2227
    %2261 = vmatprep.subr.mxu0 0.0
    %2262 = vmatpush2.xpose.msra.mxu0 0.0
    %2263 = vmatprep.subr.mxu0 0.0
    %2264 = vmatpush2.xpose.msra.mxu0 0.0
    %2265 = vmatprep.subr.mxu0 0.0
    %2266 = vmatpush2.xpose.msra.mxu0 0.0
    %2267 = vmatprep.subr.mxu0 0.0
    %2268 = vmatpush2.xpose.msra.mxu0 0.0
    %2269 = vmatprep.subr.mxu0 0.0
    %2270 = vmatpush2.xpose.msra.mxu0 0.0
    %2271 = vmatprep.subr.mxu0 0.0
    %2272 = vmatpush2.xpose.msra.mxu0 0.0
    %2273 = vmatprep.subr.mxu0 0.0
    %2274 = vmatpush2.xpose.msra.mxu0 0.0
    %2275 = vmatprep.subr.mxu0 0.0
    %2276 = vmatpush2.xpose.msra.mxu0 0.0
    %2277 = vmatprep.subr.mxu0 0.0
    %2278 = vmatpush2.xpose.msra.mxu0 0.0
    %2279 = vmatprep.subr.mxu0 0.0
    %2280 = vmatpush2.xpose.msra.mxu0 0.0
    %2281 = vmatprep.subr.mxu0 0.0
    %2282 = vmatpush2.xpose.msra.mxu0 0.0
    %2283 = vmatprep.subr.mxu0 0.0
    %2284 = vmatpush2.xpose.msra.mxu0 0.0
    %2285 = vmatprep.subr.mxu0 0.0
    %2286 = vmatpush2.xpose.msra.mxu0 0.0
    %2287 = vmatprep.subr.mxu0 0.0
    %2288 = vmatpush2.xpose.msra.mxu0 0.0
    %2289 = vmatprep.subr.mxu0 0.0
    %2290 = vmatpush2.xpose.msra.mxu0 0.0
    %2291 = vmatprep.subr.mxu0 0.0
    %2292 = vmatpush2.xpose.msra.mxu0 0.0
    %2293 = vmatprep.mubr.f32.mxu0 0.0
    %2294 = vmatmul.mubr.f32.gmra.mxu0 %v433
    %v2295 = vpop.f32.mrf.mxu0
    %v2296 = vadd.f32 %v1113, %v2295
    %v2297 = vpop.f32.mrf.mxu0
    %2298 = vdwg.mxu0
    %v2300 = vsel %vm279, %v258, 0
    %2302 = vmatprep.subr.mxu0 0.0
    %2303 = vmatpush1.xpose.msra.mxu0 0.0
    %2304 = vmatprep.subr.mxu0 0.0
    %2305 = vmatpush1.xpose.msra.mxu0 0.0
    %2306 = vmatprep.subr.mxu0 0.0
    %2307 = vmatpush1.xpose.msra.mxu0 0.0
    %2308 = vmatprep.subr.mxu0 0.0
    %2309 = vmatpush1.xpose.msra.mxu0 0.0
    %2310 = vmatprep.subr.mxu0 0.0
    %2311 = vmatpush1.xpose.msra.mxu0 0.0
    %2312 = vmatprep.subr.mxu0 0.0
    %2313 = vmatpush1.xpose.msra.mxu0 0.0
    %2314 = vmatprep.subr.mxu0 0.0
    %2315 = vmatpush1.xpose.msra.mxu0 0.0
    %2316 = vmatprep.subr.mxu0 0.0
    %2317 = vmatpush1.xpose.msra.mxu0 0.0
    %2318 = vmatprep.subr.mxu0 0.0
    %2319 = vmatpush1.xpose.msra.mxu0 0.0
    %2320 = vmatprep.subr.mxu0 0.0
    %2321 = vmatpush1.xpose.msra.mxu0 0.0
    %2322 = vmatprep.subr.mxu0 0.0
    %2323 = vmatpush1.xpose.msra.mxu0 0.0
    %2324 = vmatprep.subr.mxu0 0.0
    %2325 = vmatpush1.xpose.msra.mxu0 0.0
    %2326 = vmatprep.subr.mxu0 0.0
    %2327 = vmatpush1.xpose.msra.mxu0 0.0
    %2328 = vmatprep.subr.mxu0 0.0
    %2329 = vmatpush1.xpose.msra.mxu0 0.0
    %2330 = vmatprep.subr.mxu0 0.0
    %2331 = vmatpush1.xpose.msra.mxu0 0.0
    %2332 = vmatprep.subr.mxu0 0.0
    %2333 = vmatpush1.xpose.msra.mxu0 %v2300
    %2334 = vmatprep.subr.mxu0 0.0
    %2335 = vmatpush2.xpose.msra.mxu0 0.0
    %2336 = vmatprep.subr.mxu0 0.0
    %2337 = vmatpush2.xpose.msra.mxu0 0.0
    %2338 = vmatprep.subr.mxu0 0.0
    %2339 = vmatpush2.xpose.msra.mxu0 0.0
    %2340 = vmatprep.subr.mxu0 0.0
    %2341 = vmatpush2.xpose.msra.mxu0 0.0
    %2342 = vmatprep.subr.mxu0 0.0
    %2343 = vmatpush2.xpose.msra.mxu0 0.0
    %2344 = vmatprep.subr.mxu0 0.0
    %2345 = vmatpush2.xpose.msra.mxu0 0.0
    %2346 = vmatprep.subr.mxu0 0.0
    %2347 = vmatpush2.xpose.msra.mxu0 0.0
    %2348 = vmatprep.subr.mxu0 0.0
    %2349 = vmatpush2.xpose.msra.mxu0 0.0
    %2350 = vmatprep.subr.mxu0 0.0
    %2351 = vmatpush2.xpose.msra.mxu0 0.0
    %2352 = vmatprep.subr.mxu0 0.0
    %2353 = vmatpush2.xpose.msra.mxu0 0.0
    %2354 = vmatprep.subr.mxu0 0.0
    %2355 = vmatpush2.xpose.msra.mxu0 0.0
    %2356 = vmatprep.subr.mxu0 0.0
    %2357 = vmatpush2.xpose.msra.mxu0 0.0
    %2358 = vmatprep.subr.mxu0 0.0
    %2359 = vmatpush2.xpose.msra.mxu0 0.0
    %2360 = vmatprep.subr.mxu0 0.0
    %2361 = vmatpush2.xpose.msra.mxu0 0.0
    %2362 = vmatprep.subr.mxu0 0.0
    %2363 = vmatpush2.xpose.msra.mxu0 0.0
    %2364 = vmatprep.subr.mxu0 0.0
    %2365 = vmatpush2.xpose.msra.mxu0 0.0
    %2366 = vmatprep.mubr.f32.mxu0 0.0
    %2367 = vmatmul.mubr.f32.gmra.mxu0 %v509
    %v2368 = vpop.f32.mrf.mxu0
    %v2369 = vadd.f32 %v1189, %v2368
    %v2370 = vpop.f32.mrf.mxu0
    %2371 = vdwg.mxu0
    %v2373 = vsel %vm279, %v259, 0
    %2375 = vmatprep.subr.mxu0 0.0
    %2376 = vmatpush1.xpose.msra.mxu0 0.0
    %2377 = vmatprep.subr.mxu0 0.0
    %2378 = vmatpush1.xpose.msra.mxu0 0.0
    %2379 = vmatprep.subr.mxu0 0.0
    %2380 = vmatpush1.xpose.msra.mxu0 0.0
    %2381 = vmatprep.subr.mxu0 0.0
    %2382 = vmatpush1.xpose.msra.mxu0 0.0
    %2383 = vmatprep.subr.mxu0 0.0
    %2384 = vmatpush1.xpose.msra.mxu0 0.0
    %2385 = vmatprep.subr.mxu0 0.0
    %2386 = vmatpush1.xpose.msra.mxu0 0.0
    %2387 = vmatprep.subr.mxu0 0.0
    %2388 = vmatpush1.xpose.msra.mxu0 0.0
    %2389 = vmatprep.subr.mxu0 0.0
    %2390 = vmatpush1.xpose.msra.mxu0 0.0
    %2391 = vmatprep.subr.mxu0 0.0
    %2392 = vmatpush1.xpose.msra.mxu0 0.0
    %2393 = vmatprep.subr.mxu0 0.0
    %2394 = vmatpush1.xpose.msra.mxu0 0.0
    %2395 = vmatprep.subr.mxu0 0.0
    %2396 = vmatpush1.xpose.msra.mxu0 0.0
    %2397 = vmatprep.subr.mxu0 0.0
    %2398 = vmatpush1.xpose.msra.mxu0 0.0
    %2399 = vmatprep.subr.mxu0 0.0
    %2400 = vmatpush1.xpose.msra.mxu0 0.0
    %2401 = vmatprep.subr.mxu0 0.0
    %2402 = vmatpush1.xpose.msra.mxu0 0.0
    %2403 = vmatprep.subr.mxu0 0.0
    %2404 = vmatpush1.xpose.msra.mxu0 0.0
    %2405 = vmatprep.subr.mxu0 0.0
    %2406 = vmatpush1.xpose.msra.mxu0 %v2373
    %2407 = vmatprep.subr.mxu0 0.0
    %2408 = vmatpush2.xpose.msra.mxu0 0.0
    %2409 = vmatprep.subr.mxu0 0.0
    %2410 = vmatpush2.xpose.msra.mxu0 0.0
    %2411 = vmatprep.subr.mxu0 0.0
    %2412 = vmatpush2.xpose.msra.mxu0 0.0
    %2413 = vmatprep.subr.mxu0 0.0
    %2414 = vmatpush2.xpose.msra.mxu0 0.0
    %2415 = vmatprep.subr.mxu0 0.0
    %2416 = vmatpush2.xpose.msra.mxu0 0.0
    %2417 = vmatprep.subr.mxu0 0.0
    %2418 = vmatpush2.xpose.msra.mxu0 0.0
    %2419 = vmatprep.subr.mxu0 0.0
    %2420 = vmatpush2.xpose.msra.mxu0 0.0
    %2421 = vmatprep.subr.mxu0 0.0
    %2422 = vmatpush2.xpose.msra.mxu0 0.0
    %2423 = vmatprep.subr.mxu0 0.0
    %2424 = vmatpush2.xpose.msra.mxu0 0.0
    %2425 = vmatprep.subr.mxu0 0.0
    %2426 = vmatpush2.xpose.msra.mxu0 0.0
    %2427 = vmatprep.subr.mxu0 0.0
    %2428 = vmatpush2.xpose.msra.mxu0 0.0
    %2429 = vmatprep.subr.mxu0 0.0
    %2430 = vmatpush2.xpose.msra.mxu0 0.0
    %2431 = vmatprep.subr.mxu0 0.0
    %2432 = vmatpush2.xpose.msra.mxu0 0.0
    %2433 = vmatprep.subr.mxu0 0.0
    %2434 = vmatpush2.xpose.msra.mxu0 0.0
    %2435 = vmatprep.subr.mxu0 0.0
    %2436 = vmatpush2.xpose.msra.mxu0 0.0
    %2437 = vmatprep.subr.mxu0 0.0
    %2438 = vmatpush2.xpose.msra.mxu0 0.0
    %2439 = vmatprep.mubr.f32.mxu0 0.0
    %2440 = vmatmul.mubr.f32.gmra.mxu0 %v585
    %v2441 = vpop.f32.mrf.mxu0
    %v2442 = vadd.f32 %v1265, %v2441
    %v2443 = vpop.f32.mrf.mxu0
    %2444 = vdwg.mxu0
    %v2446 = vsel %vm279, %v260, 0
    %2448 = vmatprep.subr.mxu0 0.0
    %2449 = vmatpush1.xpose.msra.mxu0 0.0
    %2450 = vmatprep.subr.mxu0 0.0
    %2451 = vmatpush1.xpose.msra.mxu0 0.0
    %2452 = vmatprep.subr.mxu0 0.0
    %2453 = vmatpush1.xpose.msra.mxu0 0.0
    %2454 = vmatprep.subr.mxu0 0.0
    %2455 = vmatpush1.xpose.msra.mxu0 0.0
    %2456 = vmatprep.subr.mxu0 0.0
    %2457 = vmatpush1.xpose.msra.mxu0 0.0
    %2458 = vmatprep.subr.mxu0 0.0
    %2459 = vmatpush1.xpose.msra.mxu0 0.0
    %2460 = vmatprep.subr.mxu0 0.0
    %2461 = vmatpush1.xpose.msra.mxu0 0.0
    %2462 = vmatprep.subr.mxu0 0.0
    %2463 = vmatpush1.xpose.msra.mxu0 0.0
    %2464 = vmatprep.subr.mxu0 0.0
    %2465 = vmatpush1.xpose.msra.mxu0 0.0
    %2466 = vmatprep.subr.mxu0 0.0
    %2467 = vmatpush1.xpose.msra.mxu0 0.0
    %2468 = vmatprep.subr.mxu0 0.0
    %2469 = vmatpush1.xpose.msra.mxu0 0.0
    %2470 = vmatprep.subr.mxu0 0.0
    %2471 = vmatpush1.xpose.msra.mxu0 0.0
    %2472 = vmatprep.subr.mxu0 0.0
    %2473 = vmatpush1.xpose.msra.mxu0 0.0
    %2474 = vmatprep.subr.mxu0 0.0
    %2475 = vmatpush1.xpose.msra.mxu0 0.0
    %2476 = vmatprep.subr.mxu0 0.0
    %2477 = vmatpush1.xpose.msra.mxu0 0.0
    %2478 = vmatprep.subr.mxu0 0.0
    %2479 = vmatpush1.xpose.msra.mxu0 %v2446
    %2480 = vmatprep.subr.mxu0 0.0
    %2481 = vmatpush2.xpose.msra.mxu0 0.0
    %2482 = vmatprep.subr.mxu0 0.0
    %2483 = vmatpush2.xpose.msra.mxu0 0.0
    %2484 = vmatprep.subr.mxu0 0.0
    %2485 = vmatpush2.xpose.msra.mxu0 0.0
    %2486 = vmatprep.subr.mxu0 0.0
    %2487 = vmatpush2.xpose.msra.mxu0 0.0
    %2488 = vmatprep.subr.mxu0 0.0
    %2489 = vmatpush2.xpose.msra.mxu0 0.0
    %2490 = vmatprep.subr.mxu0 0.0
    %2491 = vmatpush2.xpose.msra.mxu0 0.0
    %2492 = vmatprep.subr.mxu0 0.0
    %2493 = vmatpush2.xpose.msra.mxu0 0.0
    %2494 = vmatprep.subr.mxu0 0.0
    %2495 = vmatpush2.xpose.msra.mxu0 0.0
    %2496 = vmatprep.subr.mxu0 0.0
    %2497 = vmatpush2.xpose.msra.mxu0 0.0
    %2498 = vmatprep.subr.mxu0 0.0
    %2499 = vmatpush2.xpose.msra.mxu0 0.0
    %2500 = vmatprep.subr.mxu0 0.0
    %2501 = vmatpush2.xpose.msra.mxu0 0.0
    %2502 = vmatprep.subr.mxu0 0.0
    %2503 = vmatpush2.xpose.msra.mxu0 0.0
    %2504 = vmatprep.subr.mxu0 0.0
    %2505 = vmatpush2.xpose.msra.mxu0 0.0
    %2506 = vmatprep.subr.mxu0 0.0
    %2507 = vmatpush2.xpose.msra.mxu0 0.0
    %2508 = vmatprep.subr.mxu0 0.0
    %2509 = vmatpush2.xpose.msra.mxu0 0.0
    %2510 = vmatprep.subr.mxu0 0.0
    %2511 = vmatpush2.xpose.msra.mxu0 0.0
    %2512 = vmatprep.mubr.f32.mxu0 0.0
    %2513 = vmatmul.mubr.f32.gmra.mxu0 %v661
    %v2514 = vpop.f32.mrf.mxu0
    %v2515 = vadd.f32 %v1341, %v2514
    %v2516 = vpop.f32.mrf.mxu0
    %2517 = vdwg.mxu0
    %v2519 = vsel %vm279, %v261, 0
    %2521 = vmatprep.subr.mxu0 0.0
    %2522 = vmatpush1.xpose.msra.mxu0 0.0
    %2523 = vmatprep.subr.mxu0 0.0
    %2524 = vmatpush1.xpose.msra.mxu0 0.0
    %2525 = vmatprep.subr.mxu0 0.0
    %2526 = vmatpush1.xpose.msra.mxu0 0.0
    %2527 = vmatprep.subr.mxu0 0.0
    %2528 = vmatpush1.xpose.msra.mxu0 0.0
    %2529 = vmatprep.subr.mxu0 0.0
    %2530 = vmatpush1.xpose.msra.mxu0 0.0
    %2531 = vmatprep.subr.mxu0 0.0
    %2532 = vmatpush1.xpose.msra.mxu0 0.0
    %2533 = vmatprep.subr.mxu0 0.0
    %2534 = vmatpush1.xpose.msra.mxu0 0.0
    %2535 = vmatprep.subr.mxu0 0.0
    %2536 = vmatpush1.xpose.msra.mxu0 0.0
    %2537 = vmatprep.subr.mxu0 0.0
    %2538 = vmatpush1.xpose.msra.mxu0 0.0
    %2539 = vmatprep.subr.mxu0 0.0
    %2540 = vmatpush1.xpose.msra.mxu0 0.0
    %2541 = vmatprep.subr.mxu0 0.0
    %2542 = vmatpush1.xpose.msra.mxu0 0.0
    %2543 = vmatprep.subr.mxu0 0.0
    %2544 = vmatpush1.xpose.msra.mxu0 0.0
    %2545 = vmatprep.subr.mxu0 0.0
    %2546 = vmatpush1.xpose.msra.mxu0 0.0
    %2547 = vmatprep.subr.mxu0 0.0
    %2548 = vmatpush1.xpose.msra.mxu0 0.0
    %2549 = vmatprep.subr.mxu0 0.0
    %2550 = vmatpush1.xpose.msra.mxu0 0.0
    %2551 = vmatprep.subr.mxu0 0.0
    %2552 = vmatpush1.xpose.msra.mxu0 %v2519
    %2553 = vmatprep.subr.mxu0 0.0
    %2554 = vmatpush2.xpose.msra.mxu0 0.0
    %2555 = vmatprep.subr.mxu0 0.0
    %2556 = vmatpush2.xpose.msra.mxu0 0.0
    %2557 = vmatprep.subr.mxu0 0.0
    %2558 = vmatpush2.xpose.msra.mxu0 0.0
    %2559 = vmatprep.subr.mxu0 0.0
    %2560 = vmatpush2.xpose.msra.mxu0 0.0
    %2561 = vmatprep.subr.mxu0 0.0
    %2562 = vmatpush2.xpose.msra.mxu0 0.0
    %2563 = vmatprep.subr.mxu0 0.0
    %2564 = vmatpush2.xpose.msra.mxu0 0.0
    %2565 = vmatprep.subr.mxu0 0.0
    %2566 = vmatpush2.xpose.msra.mxu0 0.0
    %2567 = vmatprep.subr.mxu0 0.0
    %2568 = vmatpush2.xpose.msra.mxu0 0.0
    %2569 = vmatprep.subr.mxu0 0.0
    %2570 = vmatpush2.xpose.msra.mxu0 0.0
    %2571 = vmatprep.subr.mxu0 0.0
    %2572 = vmatpush2.xpose.msra.mxu0 0.0
    %2573 = vmatprep.subr.mxu0 0.0
    %2574 = vmatpush2.xpose.msra.mxu0 0.0
    %2575 = vmatprep.subr.mxu0 0.0
    %2576 = vmatpush2.xpose.msra.mxu0 0.0
    %2577 = vmatprep.subr.mxu0 0.0
    %2578 = vmatpush2.xpose.msra.mxu0 0.0
    %2579 = vmatprep.subr.mxu0 0.0
    %2580 = vmatpush2.xpose.msra.mxu0 0.0
    %2581 = vmatprep.subr.mxu0 0.0
    %2582 = vmatpush2.xpose.msra.mxu0 0.0
    %2583 = vmatprep.subr.mxu0 0.0
    %2584 = vmatpush2.xpose.msra.mxu0 0.0
    %2585 = vmatprep.mubr.f32.mxu0 0.0
    %2586 = vmatmul.mubr.f32.gmra.mxu0 %v737
    %v2587 = vpop.f32.mrf.mxu0
    %v2588 = vadd.f32 %v1417, %v2587
    %v2589 = vpop.f32.mrf.mxu0
    %2590 = vdwg.mxu0
    %v2592 = vsel %vm279, %v262, 0
    %2594 = vmatprep.subr.mxu0 0.0
    %2595 = vmatpush1.xpose.msra.mxu0 0.0
    %2596 = vmatprep.subr.mxu0 0.0
    %2597 = vmatpush1.xpose.msra.mxu0 0.0
    %2598 = vmatprep.subr.mxu0 0.0
    %2599 = vmatpush1.xpose.msra.mxu0 0.0
    %2600 = vmatprep.subr.mxu0 0.0
    %2601 = vmatpush1.xpose.msra.mxu0 0.0
    %2602 = vmatprep.subr.mxu0 0.0
    %2603 = vmatpush1.xpose.msra.mxu0 0.0
    %2604 = vmatprep.subr.mxu0 0.0
    %2605 = vmatpush1.xpose.msra.mxu0 0.0
    %2606 = vmatprep.subr.mxu0 0.0
    %2607 = vmatpush1.xpose.msra.mxu0 0.0
    %2608 = vmatprep.subr.mxu0 0.0
    %2609 = vmatpush1.xpose.msra.mxu0 0.0
    %2610 = vmatprep.subr.mxu0 0.0
    %2611 = vmatpush1.xpose.msra.mxu0 0.0
    %2612 = vmatprep.subr.mxu0 0.0
    %2613 = vmatpush1.xpose.msra.mxu0 0.0
    %2614 = vmatprep.subr.mxu0 0.0
    %2615 = vmatpush1.xpose.msra.mxu0 0.0
    %2616 = vmatprep.subr.mxu0 0.0
    %2617 = vmatpush1.xpose.msra.mxu0 0.0
    %2618 = vmatprep.subr.mxu0 0.0
    %2619 = vmatpush1.xpose.msra.mxu0 0.0
    %2620 = vmatprep.subr.mxu0 0.0
    %2621 = vmatpush1.xpose.msra.mxu0 0.0
    %2622 = vmatprep.subr.mxu0 0.0
    %2623 = vmatpush1.xpose.msra.mxu0 0.0
    %2624 = vmatprep.subr.mxu0 0.0
    %2625 = vmatpush1.xpose.msra.mxu0 %v2592
    %2626 = vmatprep.subr.mxu0 0.0
    %2627 = vmatpush2.xpose.msra.mxu0 0.0
    %2628 = vmatprep.subr.mxu0 0.0
    %2629 = vmatpush2.xpose.msra.mxu0 0.0
    %2630 = vmatprep.subr.mxu0 0.0
    %2631 = vmatpush2.xpose.msra.mxu0 0.0
    %2632 = vmatprep.subr.mxu0 0.0
    %2633 = vmatpush2.xpose.msra.mxu0 0.0
    %2634 = vmatprep.subr.mxu0 0.0
    %2635 = vmatpush2.xpose.msra.mxu0 0.0
    %2636 = vmatprep.subr.mxu0 0.0
    %2637 = vmatpush2.xpose.msra.mxu0 0.0
    %2638 = vmatprep.subr.mxu0 0.0
    %2639 = vmatpush2.xpose.msra.mxu0 0.0
    %2640 = vmatprep.subr.mxu0 0.0
    %2641 = vmatpush2.xpose.msra.mxu0 0.0
    %2642 = vmatprep.subr.mxu0 0.0
    %2643 = vmatpush2.xpose.msra.mxu0 0.0
    %2644 = vmatprep.subr.mxu0 0.0
    %2645 = vmatpush2.xpose.msra.mxu0 0.0
    %2646 = vmatprep.subr.mxu0 0.0
    %2647 = vmatpush2.xpose.msra.mxu0 0.0
    %2648 = vmatprep.subr.mxu0 0.0
    %2649 = vmatpush2.xpose.msra.mxu0 0.0
    %2650 = vmatprep.subr.mxu0 0.0
    %2651 = vmatpush2.xpose.msra.mxu0 0.0
    %2652 = vmatprep.subr.mxu0 0.0
    %2653 = vmatpush2.xpose.msra.mxu0 0.0
    %2654 = vmatprep.subr.mxu0 0.0
    %2655 = vmatpush2.xpose.msra.mxu0 0.0
    %2656 = vmatprep.subr.mxu0 0.0
    %2657 = vmatpush2.xpose.msra.mxu0 0.0
    %2658 = vmatprep.mubr.f32.mxu0 0.0
    %2659 = vmatmul.mubr.f32.gmra.mxu0 %v813
    %v2660 = vpop.f32.mrf.mxu0
    %v2661 = vadd.f32 %v1493, %v2660
    %v2662 = vpop.f32.mrf.mxu0
    %2663 = vdwg.mxu0
    %v2664 = vcombine.low %v1566, %v1712
    %v2666 = vunpack.c.l.s4 1983009808
    %v2667 = vunpack.c.0.s8 %v2666
    %v2668 = vlaneseq
    %v2669 = vshrl.u32 %v2668, 7
    %v2670 = vsub.s32 %v2667, %v2669
    %v2671 = vrot.slane %v2664, %v2670
    %v2672 = vcombine.low %v1639, %v1785
    %v2674 = vunpack.c.l.s4 1983009808
    %v2675 = vunpack.c.0.s8 %v2674
    %v2676 = vlaneseq
    %v2677 = vshrl.u32 %v2676, 7
    %v2678 = vsub.s32 %v2675, %v2677
    %v2679 = vrot.slane %v2672, %v2678
    %v2680 = vcombine.low %v1858, %v2004
    %v2682 = vunpack.c.l.s4 1983009808
    %v2683 = vunpack.c.0.s8 %v2682
    %v2684 = vlaneseq
    %v2685 = vshrl.u32 %v2684, 7
    %v2686 = vsub.s32 %v2683, %v2685
    %v2687 = vrot.slane %v2680, %v2686
    %v2688 = vcombine.low %v1931, %v2077
    %v2690 = vunpack.c.l.s4 1983009808
    %v2691 = vunpack.c.0.s8 %v2690
    %v2692 = vlaneseq
    %v2693 = vshrl.u32 %v2692, 7
    %v2694 = vsub.s32 %v2691, %v2693
    %v2695 = vrot.slane %v2688, %v2694
    %v2696 = vcombine.low %v2671, %v2679
    %v2698 = vunpack.c.l.s4 1934713408
    %v2699 = vunpack.c.0.s8 %v2698
    %v2700 = vlaneseq
    %v2701 = vshrl.u32 %v2700, 7
    %v2702 = vsub.s32 %v2699, %v2701
    %v2703 = vrot.slane %v2696, %v2702
    %v2704 = vcombine.low %v2687, %v2695
    %v2706 = vunpack.c.l.s4 1934713408
    %v2707 = vunpack.c.0.s8 %v2706
    %v2708 = vlaneseq
    %v2709 = vshrl.u32 %v2708, 7
    %v2710 = vsub.s32 %v2707, %v2709
    %v2711 = vrot.slane %v2704, %v2710
    %v2712 = vcombine.low %v2703, %v2711
    %v2713 = vcombine.high %v2703, %v2711
    %v2714 = vcombine.low %v2150, %v2296
    %v2716 = vunpack.c.l.s4 1983009808
    %v2717 = vunpack.c.0.s8 %v2716
    %v2718 = vlaneseq
    %v2719 = vshrl.u32 %v2718, 7
    %v2720 = vsub.s32 %v2717, %v2719
    %v2721 = vrot.slane %v2714, %v2720
    %v2722 = vcombine.low %v2223, %v2369
    %v2724 = vunpack.c.l.s4 1983009808
    %v2725 = vunpack.c.0.s8 %v2724
    %v2726 = vlaneseq
    %v2727 = vshrl.u32 %v2726, 7
    %v2728 = vsub.s32 %v2725, %v2727
    %v2729 = vrot.slane %v2722, %v2728
    %v2730 = vcombine.low %v2442, %v2588
    %v2732 = vunpack.c.l.s4 1983009808
    %v2733 = vunpack.c.0.s8 %v2732
    %v2734 = vlaneseq
    %v2735 = vshrl.u32 %v2734, 7
    %v2736 = vsub.s32 %v2733, %v2735
    %v2737 = vrot.slane %v2730, %v2736
    %v2738 = vcombine.low %v2515, %v2661
    %v2740 = vunpack.c.l.s4 1983009808
    %v2741 = vunpack.c.0.s8 %v2740
    %v2742 = vlaneseq
    %v2743 = vshrl.u32 %v2742, 7
    %v2744 = vsub.s32 %v2741, %v2743
    %v2745 = vrot.slane %v2738, %v2744
    %v2746 = vcombine.low %v2721, %v2729
    %v2748 = vunpack.c.l.s4 1934713408
    %v2749 = vunpack.c.0.s8 %v2748
    %v2750 = vlaneseq
    %v2751 = vshrl.u32 %v2750, 7
    %v2752 = vsub.s32 %v2749, %v2751
    %v2753 = vrot.slane %v2746, %v2752
    %v2754 = vcombine.low %v2737, %v2745
    %v2756 = vunpack.c.l.s4 1934713408
    %v2757 = vunpack.c.0.s8 %v2756
    %v2758 = vlaneseq
    %v2759 = vshrl.u32 %v2758, 7
    %v2760 = vsub.s32 %v2757, %v2759
    %v2761 = vrot.slane %v2754, %v2760
    %v2762 = vcombine.low %v2753, %v2761
    %v2763 = vcombine.high %v2753, %v2761
    %2766 = vrot.lane.b32.xlu0 %v2713, 6
    %v2767 = vpop.permute.xlu0 %2766
    %2768 = vrot.lane.b32.xlu0 %v2763, 6
    %v2769 = vpop.permute.xlu0 %2768
    %vm2772 = vcmask 48128
    %v2773 = vsel %vm2772, %v2712, %v2767
    %v2774 = vsel %vm2772, %v2762, %v2769
    %v2775 = vld [vmem:[%s2] sm:$0xff]
    %v2776 = vld [vmem:[%s2 + $0x8] sm:$0xff]
    %v2778 = vsel %vm25, %v2775, 0
    %v2781 = vsel %vm25, %v2776, 0
    %2783 = vmatprep.subr.mxu0 0.0
    %2784 = vmatpush1.msra.mxu0 0.0
    %2785 = vmatprep.subr.mxu0 0.0
    %2786 = vmatpush1.msra.mxu0 0.0
    %2787 = vmatprep.subr.mxu0 0.0
    %2788 = vmatpush1.msra.mxu0 0.0
    %2789 = vmatprep.subr.mxu0 0.0
    %2790 = vmatpush1.msra.mxu0 0.0
    %2791 = vmatprep.subr.mxu0 0.0
    %2792 = vmatpush1.msra.mxu0 0.0
    %2793 = vmatprep.subr.mxu0 0.0
    %2794 = vmatpush1.msra.mxu0 0.0
    %2795 = vmatprep.subr.mxu0 0.0
    %2796 = vmatpush1.msra.mxu0 0.0
    %2797 = vmatprep.subr.mxu0 0.0
    %2798 = vmatpush1.msra.mxu0 0.0
    %2799 = vmatprep.subr.mxu0 0.0
    %2800 = vmatpush1.msra.mxu0 0.0
    %2801 = vmatprep.subr.mxu0 0.0
    %2802 = vmatpush1.msra.mxu0 0.0
    %2803 = vmatprep.subr.mxu0 0.0
    %2804 = vmatpush1.msra.mxu0 0.0
    %2805 = vmatprep.subr.mxu0 0.0
    %2806 = vmatpush1.msra.mxu0 0.0
    %2807 = vmatprep.subr.mxu0 0.0
    %2808 = vmatpush1.msra.mxu0 0.0
    %2809 = vmatprep.subr.mxu0 0.0
    %2810 = vmatpush1.msra.mxu0 0.0
    %2811 = vmatprep.subr.mxu0 0.0
    %2812 = vmatpush1.msra.mxu0 %v2774
    %2813 = vmatprep.subr.mxu0 0.0
    %2814 = vmatpush1.msra.mxu0 %v2773
    %2815 = vmatprep.subr.mxu0 0.0
    %2816 = vmatpush2.msra.mxu0 0.0
    %2817 = vmatprep.subr.mxu0 0.0
    %2818 = vmatpush2.msra.mxu0 0.0
    %2819 = vmatprep.subr.mxu0 0.0
    %2820 = vmatpush2.msra.mxu0 0.0
    %2821 = vmatprep.subr.mxu0 0.0
    %2822 = vmatpush2.msra.mxu0 0.0
    %2823 = vmatprep.subr.mxu0 0.0
    %2824 = vmatpush2.msra.mxu0 0.0
    %2825 = vmatprep.subr.mxu0 0.0
    %2826 = vmatpush2.msra.mxu0 0.0
    %2827 = vmatprep.subr.mxu0 0.0
    %2828 = vmatpush2.msra.mxu0 0.0
    %2829 = vmatprep.subr.mxu0 0.0
    %2830 = vmatpush2.msra.mxu0 0.0
    %2831 = vmatprep.subr.mxu0 0.0
    %2832 = vmatpush2.msra.mxu0 0.0
    %2833 = vmatprep.subr.mxu0 0.0
    %2834 = vmatpush2.msra.mxu0 0.0
    %2835 = vmatprep.subr.mxu0 0.0
    %2836 = vmatpush2.msra.mxu0 0.0
    %2837 = vmatprep.subr.mxu0 0.0
    %2838 = vmatpush2.msra.mxu0 0.0
    %2839 = vmatprep.subr.mxu0 0.0
    %2840 = vmatpush2.msra.mxu0 0.0
    %2841 = vmatprep.subr.mxu0 0.0
    %2842 = vmatpush2.msra.mxu0 0.0
    %2843 = vmatprep.subr.mxu0 0.0
    %2844 = vmatpush2.msra.mxu0 0.0
    %2845 = vmatprep.subr.mxu0 0.0
    %2846 = vmatpush2.msra.mxu0 0.0
    %2847 = vmatprep.mubr.f32.mxu0 0.0
    %2848 = vmatmul.mubr.f32.gmra.mxu0 %v2778
    %v2849 = vpop.f32.mrf.mxu0
    %v2850 = vadd.f32 0.0, %v2849
    %v2851 = vpop.f32.mrf.mxu0
    %2852 = vmatprep.mubr.f32.mxu0 0.0
    %2853 = vmatmul.mubr.f32.gmra.mxu0 %v2781
    %v2854 = vpop.f32.mrf.mxu0
    %v2855 = vadd.f32 0.0, %v2854
    %v2856 = vpop.f32.mrf.mxu0
    %2857 = vdwg.mxu0
    %vm2858 = vcmask 97280
    %2859 = vst.msk [vmem:[#allocation2] sm:$0xff] %vm2858, %v2850
    %2860 = vst.msk [vmem:[#allocation2 + $0x8] sm:$0xff] %vm2858, %v2855
    // Predicated region
    $region22: #{tpu_custom_call.1} parent=1 // pred_check
      _
    $region23: #{tpu_custom_call.1} parent=1 // pred_check_branch
      %2862 = sbr.rel (0) target = $region25
    $region24: #{tpu_custom_call.1} parent=1 // pred_region
      %s2864 = ssub.s32 256, 256
      %2865 = vsyncadd [#allocation3], %s2864
      %s2866 = sshll.u32 [#allocation2], 4
      %s2867 = int_to_ptr.vmem [resolvable:$true] %s2866
      %2872 = dma.vmem_to_hbm [thread:$0]  %s2867, 256, %s5, [#allocation3], 128, 128, 8
    $region25: #{tpu_custom_call.1} parent=1 // pred_fallthru
      _
    // Predicated region
    $region26: #{tpu_custom_call.1} parent=1 // pred_check
      _
    $region27: #{tpu_custom_call.1} parent=1 // pred_check_branch
      %2874 = sbr.rel (0) target = $region29
    $region28: #{tpu_custom_call.1} parent=1 // pred_region
      %2875 = dma.done [#allocation3], 256
    $region29: #{tpu_custom_call.1} parent=1 // pred_fallthru
      _
    %2876 = vsyncpa [#allocation3], 1

// kernel: tpu_custom_call.1
$region0: #{tpu_custom_call.1}
  #allocation0 [shape = 'u32[]', space=smem, size = 0x4, offset = 0x4, fixed_abs, tag = 'smem constant byte address 0x4 - core index']
  #allocation1 [shape = 'u32[144,128]{1,0:T(1,128)}', space=vmem, size = 0x12000, scoped, tag = 'internal scratch']
  %s0 = inlined_call_operand.vmem [shape: f32[16,8], index: 0, kind: input, shape index: {}]
  %s1 = inlined_call_operand.vmem [shape: f32[16,16], index: 1, kind: input, shape index: {}]
  %s2 = inlined_call_operand.vmem [shape: f32[16,16], index: 2, kind: input, shape index: {}]
  %s3 = inlined_call_operand.vmem [shape: f32[16,6,4], index: 3, kind: input, shape index: {}]
  %s4 = inlined_call_operand.vmem [shape: f32[16,6,4], index: 4, kind: input, shape index: {}]
  %s5 = inlined_call_operand.hbm [shape: f32[16,12], index: 5, kind: output, shape index: {}]
  %s6 = sld [smem:[#allocation0]]
  $region30: #{tpu_custom_call.1} parent=0
    _
  %s8 = ssub.s32 1, %s6
  %s9 = scalar_select 0, %s8, %s6
  $region1: #{tpu_custom_call.1} parent=0
    #allocation2 [shape = 'u8[8192]{0}', space=vmem, size = 0x2000, scoped, tag = 'output window, operand 0, single buffered']
    #allocation3 [shape = 's32[1]{0}', space=sflag, size = 0x4, scoped, tag = 'scoped memory for tpu_custom_call.1']
    %10 = vsyncpa [#allocation3], 0
    // Predicated region
    $region2: #{tpu_custom_call.1} parent=1 // pred_check
      _
    $region3: #{tpu_custom_call.1} parent=1 // pred_check_branch
      %12 = sbr.rel (0) target = $region5
    $region4: #{tpu_custom_call.1} parent=1 // pred_region
      _
    $region5: #{tpu_custom_call.1} parent=1 // pred_fallthru
      _
    // Predicated region
    $region6: #{tpu_custom_call.1} parent=1 // pred_check
      _
    $region7: #{tpu_custom_call.1} parent=1 // pred_check_branch
      %14 = sbr.rel (0) target = $region9
    $region8: #{tpu_custom_call.1} parent=1 // pred_region
      _
    $region9: #{tpu_custom_call.1} parent=1 // pred_fallthru
      _
    // Predicated region
    $region10: #{tpu_custom_call.1} parent=1 // pred_check
      _
    $region11: #{tpu_custom_call.1} parent=1 // pred_check_branch
      %16 = sbr.rel (0) target = $region13
    $region12: #{tpu_custom_call.1} parent=1 // pred_region
      _
    $region13: #{tpu_custom_call.1} parent=1 // pred_fallthru
      _
    // Predicated region
    $region14: #{tpu_custom_call.1} parent=1 // pred_check
      _
    $region15: #{tpu_custom_call.1} parent=1 // pred_check_branch
      %18 = sbr.rel (0) target = $region17
    $region16: #{tpu_custom_call.1} parent=1 // pred_region
      _
    $region17: #{tpu_custom_call.1} parent=1 // pred_fallthru
      _
    // Predicated region
    $region18: #{tpu_custom_call.1} parent=1 // pred_check
      _
    $region19: #{tpu_custom_call.1} parent=1 // pred_check_branch
      %20 = sbr.rel (0) target = $region21
    $region20: #{tpu_custom_call.1} parent=1 // pred_region
      _
    $region21: #{tpu_custom_call.1} parent=1 // pred_fallthru
      _
    %v21 = vld [vmem:[%s1] sm:$0xff]
    %v22 = vld [vmem:[%s1 + $0x8] sm:$0xff]
    %v23 = vld [vmem:[%s0] sm:$0xff]
    %v24 = vld [vmem:[%s0 + $0x8] sm:$0xff]
    %vm25 = vcmask 130048
    %v27 = vsel %vm25, %v21, 0
    %v30 = vsel %vm25, %v22, 0
    %32 = vmatprep.subr.mxu0 0.0
    %33 = vmatpush1.msra.mxu0 0.0
    %34 = vmatprep.subr.mxu0 0.0
    %35 = vmatpush1.msra.mxu0 0.0
    %36 = vmatprep.subr.mxu0 0.0
    %37 = vmatpush1.msra.mxu0 0.0
    %38 = vmatprep.subr.mxu0 0.0
    %39 = vmatpush1.msra.mxu0 0.0
    %40 = vmatprep.subr.mxu0 0.0
    %41 = vmatpush1.msra.mxu0 0.0
    %42 = vmatprep.subr.mxu0 0.0
    %43 = vmatpush1.msra.mxu0 0.0
    %44 = vmatprep.subr.mxu0 0.0
    %45 = vmatpush1.msra.mxu0 0.0
    %46 = vmatprep.subr.mxu0 0.0
    %47 = vmatpush1.msra.mxu0 0.0
    %48 = vmatprep.subr.mxu0 0.0
    %49 = vmatpush1.msra.mxu0 0.0
    %50 = vmatprep.subr.mxu0 0.0
    %51 = vmatpush1.msra.mxu0 0.0
    %52 = vmatprep.subr.mxu0 0.0
    %53 = vmatpush1.msra.mxu0 0.0
    %54 = vmatprep.subr.mxu0 0.0
    %55 = vmatpush1.msra.mxu0 0.0
    %56 = vmatprep.subr.mxu0 0.0
    %57 = vmatpush1.msra.mxu0 0.0
    %58 = vmatprep.subr.mxu0 0.0
    %59 = vmatpush1.msra.mxu0 0.0
    %60 = vmatprep.subr.mxu0 0.0
    %61 = vmatpush1.msra.mxu0 %v24
    %62 = vmatprep.subr.mxu0 0.0
    %63 = vmatpush1.msra.mxu0 %v23
    %64 = vmatprep.subr.mxu0 0.0
    %65 = vmatpush2.msra.mxu0 0.0
    %66 = vmatprep.subr.mxu0 0.0
    %67 = vmatpush2.msra.mxu0 0.0
    %68 = vmatprep.subr.mxu0 0.0
    %69 = vmatpush2.msra.mxu0 0.0
    %70 = vmatprep.subr.mxu0 0.0
    %71 = vmatpush2.msra.mxu0 0.0
    %72 = vmatprep.subr.mxu0 0.0
    %73 = vmatpush2.msra.mxu0 0.0
    %74 = vmatprep.subr.mxu0 0.0
    %75 = vmatpush2.msra.mxu0 0.0
    %76 = vmatprep.subr.mxu0 0.0
    %77 = vmatpush2.msra.mxu0 0.0
    %78 = vmatprep.subr.mxu0 0.0
    %79 = vmatpush2.msra.mxu0 0.0
    %80 = vmatprep.subr.mxu0 0.0
    %81 = vmatpush2.msra.mxu0 0.0
    %82 = vmatprep.subr.mxu0 0.0
    %83 = vmatpush2.msra.mxu0 0.0
    %84 = vmatprep.subr.mxu0 0.0
    %85 = vmatpush2.msra.mxu0 0.0
    %86 = vmatprep.subr.mxu0 0.0
    %87 = vmatpush2.msra.mxu0 0.0
    %88 = vmatprep.subr.mxu0 0.0
    %89 = vmatpush2.msra.mxu0 0.0
    %90 = vmatprep.subr.mxu0 0.0
    %91 = vmatpush2.msra.mxu0 0.0
    %92 = vmatprep.subr.mxu0 0.0
    %93 = vmatpush2.msra.mxu0 0.0
    %94 = vmatprep.subr.mxu0 0.0
    %95 = vmatpush2.msra.mxu0 0.0
    %96 = vmatprep.mubr.f32.mxu0 0.0
    %97 = vmatmul.mubr.f32.gmra.mxu0 %v27
    %v98 = vpop.f32.mrf.mxu0
    %v99 = vadd.f32 0.0, %v98
    %v100 = vpop.f32.mrf.mxu0
    %101 = vmatprep.mubr.f32.mxu0 0.0
    %102 = vmatmul.mubr.f32.gmra.mxu0 %v30
    %v103 = vpop.f32.mrf.mxu0
    %v104 = vadd.f32 0.0, %v103
    %v105 = vpop.f32.mrf.mxu0
    %106 = vdwg.mxu0
    %109 = vrot.lane.b32.xlu0 %v99, 124
    %v110 = vpop.permute.xlu0 %109
    %111 = vrot.lane.b32.xlu0 %v104, 124
    %v112 = vpop.permute.xlu0 %111
    %v115 = vcombine.high %v99, 0.0
    %v117 = vunpack.c.l.s4 1983009808
    %v118 = vunpack.c.0.s8 %v117
    %v119 = vlaneseq
    %v120 = vshrl.u32 %v119, 7
    %v121 = vsub.s32 %v118, %v120
    %v122 = vrot.slane %v99, %v121
    %v124 = vunpack.c.l.s4 1983009808
    %v125 = vunpack.c.0.s8 %v124
    %v126 = vlaneseq
    %v127 = vshrl.u32 %v126, 7
    %v128 = vsub.s32 %v125, %v127
    %v129 = vrot.slane %v115, %v128
    %v130 = vcombine.high %v110, 0.0
    %v132 = vunpack.c.l.s4 1983009808
    %v133 = vunpack.c.0.s8 %v132
    %v134 = vlaneseq
    %v135 = vshrl.u32 %v134, 7
    %v136 = vsub.s32 %v133, %v135
    %v137 = vrot.slane %v110, %v136
    %v139 = vunpack.c.l.s4 1983009808
    %v140 = vunpack.c.0.s8 %v139
    %v141 = vlaneseq
    %v142 = vshrl.u32 %v141, 7
    %v143 = vsub.s32 %v140, %v142
    %v144 = vrot.slane %v130, %v143
    %v145 = vcombine.low %v122, %v137
    %v146 = vcombine.high %v122, %v137
    %v148 = vunpack.c.l.s4 1934713408
    %v149 = vunpack.c.0.s8 %v148
    %v150 = vlaneseq
    %v151 = vshrl.u32 %v150, 7
    %v152 = vsub.s32 %v149, %v151
    %v153 = vrot.slane %v145, %v152
    %v155 = vunpack.c.l.s4 1934713408
    %v156 = vunpack.c.0.s8 %v155
    %v157 = vlaneseq
    %v158 = vshrl.u32 %v157, 7
    %v159 = vsub.s32 %v156, %v158
    %v160 = vrot.slane %v146, %v159
    %v161 = vcombine.low %v129, %v144
    %v162 = vcombine.high %v129, %v144
    %v164 = vunpack.c.l.s4 1934713408
    %v165 = vunpack.c.0.s8 %v164
    %v166 = vlaneseq
    %v167 = vshrl.u32 %v166, 7
    %v168 = vsub.s32 %v165, %v167
    %v169 = vrot.slane %v161, %v168
    %v171 = vunpack.c.l.s4 1934713408
    %v172 = vunpack.c.0.s8 %v171
    %v173 = vlaneseq
    %v174 = vshrl.u32 %v173, 7
    %v175 = vsub.s32 %v172, %v174
    %v176 = vrot.slane %v162, %v175
    %v177 = vcombine.high %v153, 0.0
    %v178 = vcombine.high %v160, 0.0
    %v179 = vcombine.high %v169, 0.0
    %v180 = vcombine.high %v176, 0.0
    %v181 = vcombine.high %v104, 0.0
    %v183 = vunpack.c.l.s4 1983009808
    %v184 = vunpack.c.0.s8 %v183
    %v185 = vlaneseq
    %v186 = vshrl.u32 %v185, 7
    %v187 = vsub.s32 %v184, %v186
    %v188 = vrot.slane %v104, %v187
    %v190 = vunpack.c.l.s4 1983009808
    %v191 = vunpack.c.0.s8 %v190
    %v192 = vlaneseq
    %v193 = vshrl.u32 %v192, 7
    %v194 = vsub.s32 %v191, %v193
    %v195 = vrot.slane %v181, %v194
    %v196 = vcombine.high %v112, 0.0
    %v198 = vunpack.c.l.s4 1983009808
    %v199 = vunpack.c.0.s8 %v198
    %v200 = vlaneseq
    %v201 = vshrl.u32 %v200, 7
    %v202 = vsub.s32 %v199, %v201
    %v203 = vrot.slane %v112, %v202
    %v205 = vunpack.c.l.s4 1983009808
    %v206 = vunpack.c.0.s8 %v205
    %v207 = vlaneseq
    %v208 = vshrl.u32 %v207, 7
    %v209 = vsub.s32 %v206, %v208
    %v210 = vrot.slane %v196, %v209
    %v211 = vcombine.low %v188, %v203
    %v212 = vcombine.high %v188, %v203
    %v214 = vunpack.c.l.s4 1934713408
    %v215 = vunpack.c.0.s8 %v214
    %v216 = vlaneseq
    %v217 = vshrl.u32 %v216, 7
    %v218 = vsub.s32 %v215, %v217
    %v219 = vrot.slane %v211, %v218
    %v221 = vunpack.c.l.s4 1934713408
    %v222 = vunpack.c.0.s8 %v221
    %v223 = vlaneseq
    %v224 = vshrl.u32 %v223, 7
    %v225 = vsub.s32 %v222, %v224
    %v226 = vrot.slane %v212, %v225
    %v227 = vcombine.low %v195, %v210
    %v228 = vcombine.high %v195, %v210
    %v230 = vunpack.c.l.s4 1934713408
    %v231 = vunpack.c.0.s8 %v230
    %v232 = vlaneseq
    %v233 = vshrl.u32 %v232, 7
    %v234 = vsub.s32 %v231, %v233
    %v235 = vrot.slane %v227, %v234
    %v237 = vunpack.c.l.s4 1934713408
    %v238 = vunpack.c.0.s8 %v237
    %v239 = vlaneseq
    %v240 = vshrl.u32 %v239, 7
    %v241 = vsub.s32 %v238, %v240
    %v242 = vrot.slane %v228, %v241
    %v243 = vcombine.high %v219, 0.0
    %v244 = vcombine.high %v226, 0.0
    %v245 = vcombine.high %v235, 0.0
    %v246 = vcombine.high %v242, 0.0
    %v247 = vld [vmem:[%s3] sm:$0x3f]
    %v248 = vld [vmem:[%s3 + $0x8] sm:$0x3f]
    %v249 = vld [vmem:[%s3 + $0x10] sm:$0x3f]
    %v250 = vld [vmem:[%s3 + $0x18] sm:$0x3f]
    %v251 = vld [vmem:[%s3 + $0x20] sm:$0x3f]
    %v252 = vld [vmem:[%s3 + $0x28] sm:$0x3f]
    %v253 = vld [vmem:[%s3 + $0x30] sm:$0x3f]
    %v254 = vld [vmem:[%s3 + $0x38] sm:$0x3f]
    %v255 = vld [vmem:[%s3 + $0x40] sm:$0x3f]
    %v256 = vld [vmem:[%s3 + $0x48] sm:$0x3f]
    %v257 = vld [vmem:[%s3 + $0x50] sm:$0x3f]
    %v258 = vld [vmem:[%s3 + $0x58] sm:$0x3f]
    %v259 = vld [vmem:[%s3 + $0x60] sm:$0x3f]
    %v260 = vld [vmem:[%s3 + $0x68] sm:$0x3f]
    %v261 = vld [vmem:[%s3 + $0x70] sm:$0x3f]
    %v262 = vld [vmem:[%s3 + $0x78] sm:$0x3f]
    %v263 = vld [vmem:[%s4] sm:$0x3f]
    %v264 = vld [vmem:[%s4 + $0x8] sm:$0x3f]
    %v265 = vld [vmem:[%s4 + $0x10] sm:$0x3f]
    %v266 = vld [vmem:[%s4 + $0x18] sm:$0x3f]
    %v267 = vld [vmem:[%s4 + $0x20] sm:$0x3f]
    %v268 = vld [vmem:[%s4 + $0x28] sm:$0x3f]
    %v269 = vld [vmem:[%s4 + $0x30] sm:$0x3f]
    %v270 = vld [vmem:[%s4 + $0x38] sm:$0x3f]
    %v271 = vld [vmem:[%s4 + $0x40] sm:$0x3f]
    %v272 = vld [vmem:[%s4 + $0x48] sm:$0x3f]
    %v273 = vld [vmem:[%s4 + $0x50] sm:$0x3f]
    %v274 = vld [vmem:[%s4 + $0x58] sm:$0x3f]
    %v275 = vld [vmem:[%s4 + $0x60] sm:$0x3f]
    %v276 = vld [vmem:[%s4 + $0x68] sm:$0x3f]
    %v277 = vld [vmem:[%s4 + $0x70] sm:$0x3f]
    %v278 = vld [vmem:[%s4 + $0x78] sm:$0x3f]
    %vm279 = vcmask 31744
    %v281 = vsel %vm279, %v219, 0
    %v284 = vsel %vm279, %v263, 0
    %286 = vmatprep.subr.mxu0 0.0
    %287 = vmatpush1.xpose.msra.mxu0 0.0
    %288 = vmatprep.subr.mxu0 0.0
    %289 = vmatpush1.xpose.msra.mxu0 0.0
    %290 = vmatprep.subr.mxu0 0.0
    %291 = vmatpush1.xpose.msra.mxu0 0.0
    %292 = vmatprep.subr.mxu0 0.0
    %293 = vmatpush1.xpose.msra.mxu0 0.0
    %294 = vmatprep.subr.mxu0 0.0
    %295 = vmatpush1.xpose.msra.mxu0 0.0
    %296 = vmatprep.subr.mxu0 0.0
    %297 = vmatpush1.xpose.msra.mxu0 0.0
    %298 = vmatprep.subr.mxu0 0.0
    %299 = vmatpush1.xpose.msra.mxu0 0.0
    %300 = vmatprep.subr.mxu0 0.0
    %301 = vmatpush1.xpose.msra.mxu0 0.0
    %302 = vmatprep.subr.mxu0 0.0
    %303 = vmatpush1.xpose.msra.mxu0 0.0
    %304 = vmatprep.subr.mxu0 0.0
    %305 = vmatpush1.xpose.msra.mxu0 0.0
    %306 = vmatprep.subr.mxu0 0.0
    %307 = vmatpush1.xpose.msra.mxu0 0.0
    %308 = vmatprep.subr.mxu0 0.0
    %309 = vmatpush1.xpose.msra.mxu0 0.0
    %310 = vmatprep.subr.mxu0 0.0
    %311 = vmatpush1.xpose.msra.mxu0 0.0
    %312 = vmatprep.subr.mxu0 0.0
    %313 = vmatpush1.xpose.msra.mxu0 0.0
    %314 = vmatprep.subr.mxu0 0.0
    %315 = vmatpush1.xpose.msra.mxu0 0.0
    %316 = vmatprep.subr.mxu0 0.0
    %317 = vmatpush1.xpose.msra.mxu0 %v284
    %318 = vmatprep.subr.mxu0 0.0
    %319 = vmatpush2.xpose.msra.mxu0 0.0
    %320 = vmatprep.subr.mxu0 0.0
    %321 = vmatpush2.xpose.msra.mxu0 0.0
    %322 = vmatprep.subr.mxu0 0.0
    %323 = vmatpush2.xpose.msra.mxu0 0.0
    %324 = vmatprep.subr.mxu0 0.0
    %325 = vmatpush2.xpose.msra.mxu0 0.0
    %326 = vmatprep.subr.mxu0 0.0
    %327 = vmatpush2.xpose.msra.mxu0 0.0
    %328 = vmatprep.subr.mxu0 0.0
    %329 = vmatpush2.xpose.msra.mxu0 0.0
    %330 = vmatprep.subr.mxu0 0.0
    %331 = vmatpush2.xpose.msra.mxu0 0.0
    %332 = vmatprep.subr.mxu0 0.0
    %333 = vmatpush2.xpose.msra.mxu0 0.0
    %334 = vmatprep.subr.mxu0 0.0
    %335 = vmatpush2.xpose.msra.mxu0 0.0
    %336 = vmatprep.subr.mxu0 0.0
    %337 = vmatpush2.xpose.msra.mxu0 0.0
    %338 = vmatprep.subr.mxu0 0.0
    %339 = vmatpush2.xpose.msra.mxu0 0.0
    %340 = vmatprep.subr.mxu0 0.0
    %341 = vmatpush2.xpose.msra.mxu0 0.0
    %342 = vmatprep.subr.mxu0 0.0
    %343 = vmatpush2.xpose.msra.mxu0 0.0
    %344 = vmatprep.subr.mxu0 0.0
    %345 = vmatpush2.xpose.msra.mxu0 0.0
    %346 = vmatprep.subr.mxu0 0.0
    %347 = vmatpush2.xpose.msra.mxu0 0.0
    %348 = vmatprep.subr.mxu0 0.0
    %349 = vmatpush2.xpose.msra.mxu0 0.0
    %350 = vmatprep.mubr.f32.mxu0 0.0
    %351 = vmatmul.mubr.f32.gmra.mxu0 %v281
    %v352 = vpop.f32.mrf.mxu0
    %v353 = vadd.f32 0.0, %v352
    %v354 = vpop.f32.mrf.mxu0
    %355 = vdwg.mxu0
    %v357 = vsel %vm279, %v243, 0
    %v360 = vsel %vm279, %v264, 0
    %362 = vmatprep.subr.mxu0 0.0
    %363 = vmatpush1.xpose.msra.mxu0 0.0
    %364 = vmatprep.subr.mxu0 0.0
    %365 = vmatpush1.xpose.msra.mxu0 0.0
    %366 = vmatprep.subr.mxu0 0.0
    %367 = vmatpush1.xpose.msra.mxu0 0.0
    %368 = vmatprep.subr.mxu0 0.0
    %369 = vmatpush1.xpose.msra.mxu0 0.0
    %370 = vmatprep.subr.mxu0 0.0
    %371 = vmatpush1.xpose.msra.mxu0 0.0
    %372 = vmatprep.subr.mxu0 0.0
    %373 = vmatpush1.xpose.msra.mxu0 0.0
    %374 = vmatprep.subr.mxu0 0.0
    %375 = vmatpush1.xpose.msra.mxu0 0.0
    %376 = vmatprep.subr.mxu0 0.0
    %377 = vmatpush1.xpose.msra.mxu0 0.0
    %378 = vmatprep.subr.mxu0 0.0
    %379 = vmatpush1.xpose.msra.mxu0 0.0
    %380 = vmatprep.subr.mxu0 0.0
    %381 = vmatpush1.xpose.msra.mxu0 0.0
    %382 = vmatprep.subr.mxu0 0.0
    %383 = vmatpush1.xpose.msra.mxu0 0.0
    %384 = vmatprep.subr.mxu0 0.0
    %385 = vmatpush1.xpose.msra.mxu0 0.0
    %386 = vmatprep.subr.mxu0 0.0
    %387 = vmatpush1.xpose.msra.mxu0 0.0
    %388 = vmatprep.subr.mxu0 0.0
    %389 = vmatpush1.xpose.msra.mxu0 0.0
    %390 = vmatprep.subr.mxu0 0.0
    %391 = vmatpush1.xpose.msra.mxu0 0.0
    %392 = vmatprep.subr.mxu0 0.0
    %393 = vmatpush1.xpose.msra.mxu0 %v360
    %394 = vmatprep.subr.mxu0 0.0
    %395 = vmatpush2.xpose.msra.mxu0 0.0
    %396 = vmatprep.subr.mxu0 0.0
    %397 = vmatpush2.xpose.msra.mxu0 0.0
    %398 = vmatprep.subr.mxu0 0.0
    %399 = vmatpush2.xpose.msra.mxu0 0.0
    %400 = vmatprep.subr.mxu0 0.0
    %401 = vmatpush2.xpose.msra.mxu0 0.0
    %402 = vmatprep.subr.mxu0 0.0
    %403 = vmatpush2.xpose.msra.mxu0 0.0
    %404 = vmatprep.subr.mxu0 0.0
    %405 = vmatpush2.xpose.msra.mxu0 0.0
    %406 = vmatprep.subr.mxu0 0.0
    %407 = vmatpush2.xpose.msra.mxu0 0.0
    %408 = vmatprep.subr.mxu0 0.0
    %409 = vmatpush2.xpose.msra.mxu0 0.0
    %410 = vmatprep.subr.mxu0 0.0
    %411 = vmatpush2.xpose.msra.mxu0 0.0
    %412 = vmatprep.subr.mxu0 0.0
    %413 = vmatpush2.xpose.msra.mxu0 0.0
    %414 = vmatprep.subr.mxu0 0.0
    %415 = vmatpush2.xpose.msra.mxu0 0.0
    %416 = vmatprep.subr.mxu0 0.0
    %417 = vmatpush2.xpose.msra.mxu0 0.0
    %418 = vmatprep.subr.mxu0 0.0
    %419 = vmatpush2.xpose.msra.mxu0 0.0
    %420 = vmatprep.subr.mxu0 0.0
    %421 = vmatpush2.xpose.msra.mxu0 0.0
    %422 = vmatprep.subr.mxu0 0.0
    %423 = vmatpush2.xpose.msra.mxu0 0.0
    %424 = vmatprep.subr.mxu0 0.0
    %425 = vmatpush2.xpose.msra.mxu0 0.0
    %426 = vmatprep.mubr.f32.mxu0 0.0
    %427 = vmatmul.mubr.f32.gmra.mxu0 %v357
    %v428 = vpop.f32.mrf.mxu0
    %v429 = vadd.f32 0.0, %v428
    %v430 = vpop.f32.mrf.mxu0
    %431 = vdwg.mxu0
    %v433 = vsel %vm279, %v226, 0
    %v436 = vsel %vm279, %v265, 0
    %438 = vmatprep.subr.mxu0 0.0
    %439 = vmatpush1.xpose.msra.mxu0 0.0
    %440 = vmatprep.subr.mxu0 0.0
    %441 = vmatpush1.xpose.msra.mxu0 0.0
    %442 = vmatprep.subr.mxu0 0.0
    %443 = vmatpush1.xpose.msra.mxu0 0.0
    %444 = vmatprep.subr.mxu0 0.0
    %445 = vmatpush1.xpose.msra.mxu0 0.0
    %446 = vmatprep.subr.mxu0 0.0
    %447 = vmatpush1.xpose.msra.mxu0 0.0
    %448 = vmatprep.subr.mxu0 0.0
    %449 = vmatpush1.xpose.msra.mxu0 0.0
    %450 = vmatprep.subr.mxu0 0.0
    %451 = vmatpush1.xpose.msra.mxu0 0.0
    %452 = vmatprep.subr.mxu0 0.0
    %453 = vmatpush1.xpose.msra.mxu0 0.0
    %454 = vmatprep.subr.mxu0 0.0
    %455 = vmatpush1.xpose.msra.mxu0 0.0
    %456 = vmatprep.subr.mxu0 0.0
    %457 = vmatpush1.xpose.msra.mxu0 0.0
    %458 = vmatprep.subr.mxu0 0.0
    %459 = vmatpush1.xpose.msra.mxu0 0.0
    %460 = vmatprep.subr.mxu0 0.0
    %461 = vmatpush1.xpose.msra.mxu0 0.0
    %462 = vmatprep.subr.mxu0 0.0
    %463 = vmatpush1.xpose.msra.mxu0 0.0
    %464 = vmatprep.subr.mxu0 0.0
    %465 = vmatpush1.xpose.msra.mxu0 0.0
    %466 = vmatprep.subr.mxu0 0.0
    %467 = vmatpush1.xpose.msra.mxu0 0.0
    %468 = vmatprep.subr.mxu0 0.0
    %469 = vmatpush1.xpose.msra.mxu0 %v436
    %470 = vmatprep.subr.mxu0 0.0
    %471 = vmatpush2.xpose.msra.mxu0 0.0
    %472 = vmatprep.subr.mxu0 0.0
    %473 = vmatpush2.xpose.msra.mxu0 0.0
    %474 = vmatprep.subr.mxu0 0.0
    %475 = vmatpush2.xpose.msra.mxu0 0.0
    %476 = vmatprep.subr.mxu0 0.0
    %477 = vmatpush2.xpose.msra.mxu0 0.0
    %478 = vmatprep.subr.mxu0 0.0
    %479 = vmatpush2.xpose.msra.mxu0 0.0
    %480 = vmatprep.subr.mxu0 0.0
    %481 = vmatpush2.xpose.msra.mxu0 0.0
    %482 = vmatprep.subr.mxu0 0.0
    %483 = vmatpush2.xpose.msra.mxu0 0.0
    %484 = vmatprep.subr.mxu0 0.0
    %485 = vmatpush2.xpose.msra.mxu0 0.0
    %486 = vmatprep.subr.mxu0 0.0
    %487 = vmatpush2.xpose.msra.mxu0 0.0
    %488 = vmatprep.subr.mxu0 0.0
    %489 = vmatpush2.xpose.msra.mxu0 0.0
    %490 = vmatprep.subr.mxu0 0.0
    %491 = vmatpush2.xpose.msra.mxu0 0.0
    %492 = vmatprep.subr.mxu0 0.0
    %493 = vmatpush2.xpose.msra.mxu0 0.0
    %494 = vmatprep.subr.mxu0 0.0
    %495 = vmatpush2.xpose.msra.mxu0 0.0
    %496 = vmatprep.subr.mxu0 0.0
    %497 = vmatpush2.xpose.msra.mxu0 0.0
    %498 = vmatprep.subr.mxu0 0.0
    %499 = vmatpush2.xpose.msra.mxu0 0.0
    %500 = vmatprep.subr.mxu0 0.0
    %501 = vmatpush2.xpose.msra.mxu0 0.0
    %502 = vmatprep.mubr.f32.mxu0 0.0
    %503 = vmatmul.mubr.f32.gmra.mxu0 %v433
    %v504 = vpop.f32.mrf.mxu0
    %v505 = vadd.f32 0.0, %v504
    %v506 = vpop.f32.mrf.mxu0
    %507 = vdwg.mxu0
    %v509 = vsel %vm279, %v244, 0
    %v512 = vsel %vm279, %v266, 0
    %514 = vmatprep.subr.mxu0 0.0
    %515 = vmatpush1.xpose.msra.mxu0 0.0
    %516 = vmatprep.subr.mxu0 0.0
    %517 = vmatpush1.xpose.msra.mxu0 0.0
    %518 = vmatprep.subr.mxu0 0.0
    %519 = vmatpush1.xpose.msra.mxu0 0.0
    %520 = vmatprep.subr.mxu0 0.0
    %521 = vmatpush1.xpose.msra.mxu0 0.0
    %522 = vmatprep.subr.mxu0 0.0
    %523 = vmatpush1.xpose.msra.mxu0 0.0
    %524 = vmatprep.subr.mxu0 0.0
    %525 = vmatpush1.xpose.msra.mxu0 0.0
    %526 = vmatprep.subr.mxu0 0.0
    %527 = vmatpush1.xpose.msra.mxu0 0.0
    %528 = vmatprep.subr.mxu0 0.0
    %529 = vmatpush1.xpose.msra.mxu0 0.0
    %530 = vmatprep.subr.mxu0 0.0
    %531 = vmatpush1.xpose.msra.mxu0 0.0
    %532 = vmatprep.subr.mxu0 0.0
    %533 = vmatpush1.xpose.msra.mxu0 0.0
    %534 = vmatprep.subr.mxu0 0.0
    %535 = vmatpush1.xpose.msra.mxu0 0.0
    %536 = vmatprep.subr.mxu0 0.0
    %537 = vmatpush1.xpose.msra.mxu0 0.0
    %538 = vmatprep.subr.mxu0 0.0
    %539 = vmatpush1.xpose.msra.mxu0 0.0
    %540 = vmatprep.subr.mxu0 0.0
    %541 = vmatpush1.xpose.msra.mxu0 0.0
    %542 = vmatprep.subr.mxu0 0.0
    %543 = vmatpush1.xpose.msra.mxu0 0.0
    %544 = vmatprep.subr.mxu0 0.0
    %545 = vmatpush1.xpose.msra.mxu0 %v512
    %546 = vmatprep.subr.mxu0 0.0
    %547 = vmatpush2.xpose.msra.mxu0 0.0
    %548 = vmatprep.subr.mxu0 0.0
    %549 = vmatpush2.xpose.msra.mxu0 0.0
    %550 = vmatprep.subr.mxu0 0.0
    %551 = vmatpush2.xpose.msra.mxu0 0.0
    %552 = vmatprep.subr.mxu0 0.0
    %553 = vmatpush2.xpose.msra.mxu0 0.0
    %554 = vmatprep.subr.mxu0 0.0
    %555 = vmatpush2.xpose.msra.mxu0 0.0
    %556 = vmatprep.subr.mxu0 0.0
    %557 = vmatpush2.xpose.msra.mxu0 0.0
    %558 = vmatprep.subr.mxu0 0.0
    %559 = vmatpush2.xpose.msra.mxu0 0.0
    %560 = vmatprep.subr.mxu0 0.0
    %561 = vmatpush2.xpose.msra.mxu0 0.0
    %562 = vmatprep.subr.mxu0 0.0
    %563 = vmatpush2.xpose.msra.mxu0 0.0
    %564 = vmatprep.subr.mxu0 0.0
    %565 = vmatpush2.xpose.msra.mxu0 0.0
    %566 = vmatprep.subr.mxu0 0.0
    %567 = vmatpush2.xpose.msra.mxu0 0.0
    %568 = vmatprep.subr.mxu0 0.0
    %569 = vmatpush2.xpose.msra.mxu0 0.0
    %570 = vmatprep.subr.mxu0 0.0
    %571 = vmatpush2.xpose.msra.mxu0 0.0
    %572 = vmatprep.subr.mxu0 0.0
    %573 = vmatpush2.xpose.msra.mxu0 0.0
    %574 = vmatprep.subr.mxu0 0.0
    %575 = vmatpush2.xpose.msra.mxu0 0.0
    %576 = vmatprep.subr.mxu0 0.0
    %577 = vmatpush2.xpose.msra.mxu0 0.0
    %578 = vmatprep.mubr.f32.mxu0 0.0
    %579 = vmatmul.mubr.f32.gmra.mxu0 %v509
    %v580 = vpop.f32.mrf.mxu0
    %v581 = vadd.f32 0.0, %v580
    %v582 = vpop.f32.mrf.mxu0
    %583 = vdwg.mxu0
    %v585 = vsel %vm279, %v235, 0
    %v588 = vsel %vm279, %v267, 0
    %590 = vmatprep.subr.mxu0 0.0
    %591 = vmatpush1.xpose.msra.mxu0 0.0
    %592 = vmatprep.subr.mxu0 0.0
    %593 = vmatpush1.xpose.msra.mxu0 0.0
    %594 = vmatprep.subr.mxu0 0.0
    %595 = vmatpush1.xpose.msra.mxu0 0.0
    %596 = vmatprep.subr.mxu0 0.0
    %597 = vmatpush1.xpose.msra.mxu0 0.0
    %598 = vmatprep.subr.mxu0 0.0
    %599 = vmatpush1.xpose.msra.mxu0 0.0
    %600 = vmatprep.subr.mxu0 0.0
    %601 = vmatpush1.xpose.msra.mxu0 0.0
    %602 = vmatprep.subr.mxu0 0.0
    %603 = vmatpush1.xpose.msra.mxu0 0.0
    %604 = vmatprep.subr.mxu0 0.0
    %605 = vmatpush1.xpose.msra.mxu0 0.0
    %606 = vmatprep.subr.mxu0 0.0
    %607 = vmatpush1.xpose.msra.mxu0 0.0
    %608 = vmatprep.subr.mxu0 0.0
    %609 = vmatpush1.xpose.msra.mxu0 0.0
    %610 = vmatprep.subr.mxu0 0.0
    %611 = vmatpush1.xpose.msra.mxu0 0.0
    %612 = vmatprep.subr.mxu0 0.0
    %613 = vmatpush1.xpose.msra.mxu0 0.0
    %614 = vmatprep.subr.mxu0 0.0
    %615 = vmatpush1.xpose.msra.mxu0 0.0
    %616 = vmatprep.subr.mxu0 0.0
    %617 = vmatpush1.xpose.msra.mxu0 0.0
    %618 = vmatprep.subr.mxu0 0.0
    %619 = vmatpush1.xpose.msra.mxu0 0.0
    %620 = vmatprep.subr.mxu0 0.0
    %621 = vmatpush1.xpose.msra.mxu0 %v588
    %622 = vmatprep.subr.mxu0 0.0
    %623 = vmatpush2.xpose.msra.mxu0 0.0
    %624 = vmatprep.subr.mxu0 0.0
    %625 = vmatpush2.xpose.msra.mxu0 0.0
    %626 = vmatprep.subr.mxu0 0.0
    %627 = vmatpush2.xpose.msra.mxu0 0.0
    %628 = vmatprep.subr.mxu0 0.0
    %629 = vmatpush2.xpose.msra.mxu0 0.0
    %630 = vmatprep.subr.mxu0 0.0
    %631 = vmatpush2.xpose.msra.mxu0 0.0
    %632 = vmatprep.subr.mxu0 0.0
    %633 = vmatpush2.xpose.msra.mxu0 0.0
    %634 = vmatprep.subr.mxu0 0.0
    %635 = vmatpush2.xpose.msra.mxu0 0.0
    %636 = vmatprep.subr.mxu0 0.0
    %637 = vmatpush2.xpose.msra.mxu0 0.0
    %638 = vmatprep.subr.mxu0 0.0
    %639 = vmatpush2.xpose.msra.mxu0 0.0
    %640 = vmatprep.subr.mxu0 0.0
    %641 = vmatpush2.xpose.msra.mxu0 0.0
    %642 = vmatprep.subr.mxu0 0.0
    %643 = vmatpush2.xpose.msra.mxu0 0.0
    %644 = vmatprep.subr.mxu0 0.0
    %645 = vmatpush2.xpose.msra.mxu0 0.0
    %646 = vmatprep.subr.mxu0 0.0
    %647 = vmatpush2.xpose.msra.mxu0 0.0
    %648 = vmatprep.subr.mxu0 0.0
    %649 = vmatpush2.xpose.msra.mxu0 0.0
    %650 = vmatprep.subr.mxu0 0.0
    %651 = vmatpush2.xpose.msra.mxu0 0.0
    %652 = vmatprep.subr.mxu0 0.0
    %653 = vmatpush2.xpose.msra.mxu0 0.0
    %654 = vmatprep.mubr.f32.mxu0 0.0
    %655 = vmatmul.mubr.f32.gmra.mxu0 %v585
    %v656 = vpop.f32.mrf.mxu0
    %v657 = vadd.f32 0.0, %v656
    %v658 = vpop.f32.mrf.mxu0
    %659 = vdwg.mxu0
    %v661 = vsel %vm279, %v245, 0
    %v664 = vsel %vm279, %v268, 0
    %666 = vmatprep.subr.mxu0 0.0
    %667 = vmatpush1.xpose.msra.mxu0 0.0
    %668 = vmatprep.subr.mxu0 0.0
    %669 = vmatpush1.xpose.msra.mxu0 0.0
    %670 = vmatprep.subr.mxu0 0.0
    %671 = vmatpush1.xpose.msra.mxu0 0.0
    %672 = vmatprep.subr.mxu0 0.0
    %673 = vmatpush1.xpose.msra.mxu0 0.0
    %674 = vmatprep.subr.mxu0 0.0
    %675 = vmatpush1.xpose.msra.mxu0 0.0
    %676 = vmatprep.subr.mxu0 0.0
    %677 = vmatpush1.xpose.msra.mxu0 0.0
    %678 = vmatprep.subr.mxu0 0.0
    %679 = vmatpush1.xpose.msra.mxu0 0.0
    %680 = vmatprep.subr.mxu0 0.0
    %681 = vmatpush1.xpose.msra.mxu0 0.0
    %682 = vmatprep.subr.mxu0 0.0
    %683 = vmatpush1.xpose.msra.mxu0 0.0
    %684 = vmatprep.subr.mxu0 0.0
    %685 = vmatpush1.xpose.msra.mxu0 0.0
    %686 = vmatprep.subr.mxu0 0.0
    %687 = vmatpush1.xpose.msra.mxu0 0.0
    %688 = vmatprep.subr.mxu0 0.0
    %689 = vmatpush1.xpose.msra.mxu0 0.0
    %690 = vmatprep.subr.mxu0 0.0
    %691 = vmatpush1.xpose.msra.mxu0 0.0
    %692 = vmatprep.subr.mxu0 0.0
    %693 = vmatpush1.xpose.msra.mxu0 0.0
    %694 = vmatprep.subr.mxu0 0.0
    %695 = vmatpush1.xpose.msra.mxu0 0.0
    %696 = vmatprep.subr.mxu0 0.0
    %697 = vmatpush1.xpose.msra.mxu0 %v664
    %698 = vmatprep.subr.mxu0 0.0
    %699 = vmatpush2.xpose.msra.mxu0 0.0
    %700 = vmatprep.subr.mxu0 0.0
    %701 = vmatpush2.xpose.msra.mxu0 0.0
    %702 = vmatprep.subr.mxu0 0.0
    %703 = vmatpush2.xpose.msra.mxu0 0.0
    %704 = vmatprep.subr.mxu0 0.0
    %705 = vmatpush2.xpose.msra.mxu0 0.0
    %706 = vmatprep.subr.mxu0 0.0
    %707 = vmatpush2.xpose.msra.mxu0 0.0
    %708 = vmatprep.subr.mxu0 0.0
    %709 = vmatpush2.xpose.msra.mxu0 0.0
    %710 = vmatprep.subr.mxu0 0.0
    %711 = vmatpush2.xpose.msra.mxu0 0.0
    %712 = vmatprep.subr.mxu0 0.0
    %713 = vmatpush2.xpose.msra.mxu0 0.0
    %714 = vmatprep.subr.mxu0 0.0
    %715 = vmatpush2.xpose.msra.mxu0 0.0
    %716 = vmatprep.subr.mxu0 0.0
    %717 = vmatpush2.xpose.msra.mxu0 0.0
    %718 = vmatprep.subr.mxu0 0.0
    %719 = vmatpush2.xpose.msra.mxu0 0.0
    %720 = vmatprep.subr.mxu0 0.0
    %721 = vmatpush2.xpose.msra.mxu0 0.0
    %722 = vmatprep.subr.mxu0 0.0
    %723 = vmatpush2.xpose.msra.mxu0 0.0
    %724 = vmatprep.subr.mxu0 0.0
    %725 = vmatpush2.xpose.msra.mxu0 0.0
    %726 = vmatprep.subr.mxu0 0.0
    %727 = vmatpush2.xpose.msra.mxu0 0.0
    %728 = vmatprep.subr.mxu0 0.0
    %729 = vmatpush2.xpose.msra.mxu0 0.0
    %730 = vmatprep.mubr.f32.mxu0 0.0
    %731 = vmatmul.mubr.f32.gmra.mxu0 %v661
    %v732 = vpop.f32.mrf.mxu0
    %v733 = vadd.f32 0.0, %v732
    %v734 = vpop.f32.mrf.mxu0
    %735 = vdwg.mxu0
    %v737 = vsel %vm279, %v242, 0
    %v740 = vsel %vm279, %v269, 0
    %742 = vmatprep.subr.mxu0 0.0
    %743 = vmatpush1.xpose.msra.mxu0 0.0
    %744 = vmatprep.subr.mxu0 0.0
    %745 = vmatpush1.xpose.msra.mxu0 0.0
    %746 = vmatprep.subr.mxu0 0.0
    %747 = vmatpush1.xpose.msra.mxu0 0.0
    %748 = vmatprep.subr.mxu0 0.0
    %749 = vmatpush1.xpose.msra.mxu0 0.0
    %750 = vmatprep.subr.mxu0 0.0
    %751 = vmatpush1.xpose.msra.mxu0 0.0
    %752 = vmatprep.subr.mxu0 0.0
    %753 = vmatpush1.xpose.msra.mxu0 0.0
    %754 = vmatprep.subr.mxu0 0.0
    %755 = vmatpush1.xpose.msra.mxu0 0.0
    %756 = vmatprep.subr.mxu0 0.0
    %757 = vmatpush1.xpose.msra.mxu0 0.0
    %758 = vmatprep.subr.mxu0 0.0
    %759 = vmatpush1.xpose.msra.mxu0 0.0
    %760 = vmatprep.subr.mxu0 0.0
    %761 = vmatpush1.xpose.msra.mxu0 0.0
    %762 = vmatprep.subr.mxu0 0.0
    %763 = vmatpush1.xpose.msra.mxu0 0.0
    %764 = vmatprep.subr.mxu0 0.0
    %765 = vmatpush1.xpose.msra.mxu0 0.0
    %766 = vmatprep.subr.mxu0 0.0
    %767 = vmatpush1.xpose.msra.mxu0 0.0
    %768 = vmatprep.subr.mxu0 0.0
    %769 = vmatpush1.xpose.msra.mxu0 0.0
    %770 = vmatprep.subr.mxu0 0.0
    %771 = vmatpush1.xpose.msra.mxu0 0.0
    %772 = vmatprep.subr.mxu0 0.0
    %773 = vmatpush1.xpose.msra.mxu0 %v740
    %774 = vmatprep.subr.mxu0 0.0
    %775 = vmatpush2.xpose.msra.mxu0 0.0
    %776 = vmatprep.subr.mxu0 0.0
    %777 = vmatpush2.xpose.msra.mxu0 0.0
    %778 = vmatprep.subr.mxu0 0.0
    %779 = vmatpush2.xpose.msra.mxu0 0.0
    %780 = vmatprep.subr.mxu0 0.0
    %781 = vmatpush2.xpose.msra.mxu0 0.0
    %782 = vmatprep.subr.mxu0 0.0
    %783 = vmatpush2.xpose.msra.mxu0 0.0
    %784 = vmatprep.subr.mxu0 0.0
    %785 = vmatpush2.xpose.msra.mxu0 0.0
    %786 = vmatprep.subr.mxu0 0.0
    %787 = vmatpush2.xpose.msra.mxu0 0.0
    %788 = vmatprep.subr.mxu0 0.0
    %789 = vmatpush2.xpose.msra.mxu0 0.0
    %790 = vmatprep.subr.mxu0 0.0
    %791 = vmatpush2.xpose.msra.mxu0 0.0
    %792 = vmatprep.subr.mxu0 0.0
    %793 = vmatpush2.xpose.msra.mxu0 0.0
    %794 = vmatprep.subr.mxu0 0.0
    %795 = vmatpush2.xpose.msra.mxu0 0.0
    %796 = vmatprep.subr.mxu0 0.0
    %797 = vmatpush2.xpose.msra.mxu0 0.0
    %798 = vmatprep.subr.mxu0 0.0
    %799 = vmatpush2.xpose.msra.mxu0 0.0
    %800 = vmatprep.subr.mxu0 0.0
    %801 = vmatpush2.xpose.msra.mxu0 0.0
    %802 = vmatprep.subr.mxu0 0.0
    %803 = vmatpush2.xpose.msra.mxu0 0.0
    %804 = vmatprep.subr.mxu0 0.0
    %805 = vmatpush2.xpose.msra.mxu0 0.0
    %806 = vmatprep.mubr.f32.mxu0 0.0
    %807 = vmatmul.mubr.f32.gmra.mxu0 %v737
    %v808 = vpop.f32.mrf.mxu0
    %v809 = vadd.f32 0.0, %v808
    %v810 = vpop.f32.mrf.mxu0
    %811 = vdwg.mxu0
    %v813 = vsel %vm279, %v246, 0
    %v816 = vsel %vm279, %v270, 0
    %818 = vmatprep.subr.mxu0 0.0
    %819 = vmatpush1.xpose.msra.mxu0 0.0
    %820 = vmatprep.subr.mxu0 0.0
    %821 = vmatpush1.xpose.msra.mxu0 0.0
    %822 = vmatprep.subr.mxu0 0.0
    %823 = vmatpush1.xpose.msra.mxu0 0.0
    %824 = vmatprep.subr.mxu0 0.0
    %825 = vmatpush1.xpose.msra.mxu0 0.0
    %826 = vmatprep.subr.mxu0 0.0
    %827 = vmatpush1.xpose.msra.mxu0 0.0
    %828 = vmatprep.subr.mxu0 0.0
    %829 = vmatpush1.xpose.msra.mxu0 0.0
    %830 = vmatprep.subr.mxu0 0.0
    %831 = vmatpush1.xpose.msra.mxu0 0.0
    %832 = vmatprep.subr.mxu0 0.0
    %833 = vmatpush1.xpose.msra.mxu0 0.0
    %834 = vmatprep.subr.mxu0 0.0
    %835 = vmatpush1.xpose.msra.mxu0 0.0
    %836 = vmatprep.subr.mxu0 0.0
    %837 = vmatpush1.xpose.msra.mxu0 0.0
    %838 = vmatprep.subr.mxu0 0.0
    %839 = vmatpush1.xpose.msra.mxu0 0.0
    %840 = vmatprep.subr.mxu0 0.0
    %841 = vmatpush1.xpose.msra.mxu0 0.0
    %842 = vmatprep.subr.mxu0 0.0
    %843 = vmatpush1.xpose.msra.mxu0 0.0
    %844 = vmatprep.subr.mxu0 0.0
    %845 = vmatpush1.xpose.msra.mxu0 0.0
    %846 = vmatprep.subr.mxu0 0.0
    %847 = vmatpush1.xpose.msra.mxu0 0.0
    %848 = vmatprep.subr.mxu0 0.0
    %849 = vmatpush1.xpose.msra.mxu0 %v816
    %850 = vmatprep.subr.mxu0 0.0
    %851 = vmatpush2.xpose.msra.mxu0 0.0
    %852 = vmatprep.subr.mxu0 0.0
    %853 = vmatpush2.xpose.msra.mxu0 0.0
    %854 = vmatprep.subr.mxu0 0.0
    %855 = vmatpush2.xpose.msra.mxu0 0.0
    %856 = vmatprep.subr.mxu0 0.0
    %857 = vmatpush2.xpose.msra.mxu0 0.0
    %858 = vmatprep.subr.mxu0 0.0
    %859 = vmatpush2.xpose.msra.mxu0 0.0
    %860 = vmatprep.subr.mxu0 0.0
    %861 = vmatpush2.xpose.msra.mxu0 0.0
    %862 = vmatprep.subr.mxu0 0.0
    %863 = vmatpush2.xpose.msra.mxu0 0.0
    %864 = vmatprep.subr.mxu0 0.0
    %865 = vmatpush2.xpose.msra.mxu0 0.0
    %866 = vmatprep.subr.mxu0 0.0
    %867 = vmatpush2.xpose.msra.mxu0 0.0
    %868 = vmatprep.subr.mxu0 0.0
    %869 = vmatpush2.xpose.msra.mxu0 0.0
    %870 = vmatprep.subr.mxu0 0.0
    %871 = vmatpush2.xpose.msra.mxu0 0.0
    %872 = vmatprep.subr.mxu0 0.0
    %873 = vmatpush2.xpose.msra.mxu0 0.0
    %874 = vmatprep.subr.mxu0 0.0
    %875 = vmatpush2.xpose.msra.mxu0 0.0
    %876 = vmatprep.subr.mxu0 0.0
    %877 = vmatpush2.xpose.msra.mxu0 0.0
    %878 = vmatprep.subr.mxu0 0.0
    %879 = vmatpush2.xpose.msra.mxu0 0.0
    %880 = vmatprep.subr.mxu0 0.0
    %881 = vmatpush2.xpose.msra.mxu0 0.0
    %882 = vmatprep.mubr.f32.mxu0 0.0
    %883 = vmatmul.mubr.f32.gmra.mxu0 %v813
    %v884 = vpop.f32.mrf.mxu0
    %v885 = vadd.f32 0.0, %v884
    %v886 = vpop.f32.mrf.mxu0
    %887 = vdwg.mxu0
    %v889 = vsel %vm279, %v153, 0
    %v892 = vsel %vm279, %v271, 0
    %894 = vmatprep.subr.mxu0 0.0
    %895 = vmatpush1.xpose.msra.mxu0 0.0
    %896 = vmatprep.subr.mxu0 0.0
    %897 = vmatpush1.xpose.msra.mxu0 0.0
    %898 = vmatprep.subr.mxu0 0.0
    %899 = vmatpush1.xpose.msra.mxu0 0.0
    %900 = vmatprep.subr.mxu0 0.0
    %901 = vmatpush1.xpose.msra.mxu0 0.0
    %902 = vmatprep.subr.mxu0 0.0
    %903 = vmatpush1.xpose.msra.mxu0 0.0
    %904 = vmatprep.subr.mxu0 0.0
    %905 = vmatpush1.xpose.msra.mxu0 0.0
    %906 = vmatprep.subr.mxu0 0.0
    %907 = vmatpush1.xpose.msra.mxu0 0.0
    %908 = vmatprep.subr.mxu0 0.0
    %909 = vmatpush1.xpose.msra.mxu0 0.0
    %910 = vmatprep.subr.mxu0 0.0
    %911 = vmatpush1.xpose.msra.mxu0 0.0
    %912 = vmatprep.subr.mxu0 0.0
    %913 = vmatpush1.xpose.msra.mxu0 0.0
    %914 = vmatprep.subr.mxu0 0.0
    %915 = vmatpush1.xpose.msra.mxu0 0.0
    %916 = vmatprep.subr.mxu0 0.0
    %917 = vmatpush1.xpose.msra.mxu0 0.0
    %918 = vmatprep.subr.mxu0 0.0
    %919 = vmatpush1.xpose.msra.mxu0 0.0
    %920 = vmatprep.subr.mxu0 0.0
    %921 = vmatpush1.xpose.msra.mxu0 0.0
    %922 = vmatprep.subr.mxu0 0.0
    %923 = vmatpush1.xpose.msra.mxu0 0.0
    %924 = vmatprep.subr.mxu0 0.0
    %925 = vmatpush1.xpose.msra.mxu0 %v892
    %926 = vmatprep.subr.mxu0 0.0
    %927 = vmatpush2.xpose.msra.mxu0 0.0
    %928 = vmatprep.subr.mxu0 0.0
    %929 = vmatpush2.xpose.msra.mxu0 0.0
    %930 = vmatprep.subr.mxu0 0.0
    %931 = vmatpush2.xpose.msra.mxu0 0.0
    %932 = vmatprep.subr.mxu0 0.0
    %933 = vmatpush2.xpose.msra.mxu0 0.0
    %934 = vmatprep.subr.mxu0 0.0
    %935 = vmatpush2.xpose.msra.mxu0 0.0
    %936 = vmatprep.subr.mxu0 0.0
    %937 = vmatpush2.xpose.msra.mxu0 0.0
    %938 = vmatprep.subr.mxu0 0.0
    %939 = vmatpush2.xpose.msra.mxu0 0.0
    %940 = vmatprep.subr.mxu0 0.0
    %941 = vmatpush2.xpose.msra.mxu0 0.0
    %942 = vmatprep.subr.mxu0 0.0
    %943 = vmatpush2.xpose.msra.mxu0 0.0
    %944 = vmatprep.subr.mxu0 0.0
    %945 = vmatpush2.xpose.msra.mxu0 0.0
    %946 = vmatprep.subr.mxu0 0.0
    %947 = vmatpush2.xpose.msra.mxu0 0.0
    %948 = vmatprep.subr.mxu0 0.0
    %949 = vmatpush2.xpose.msra.mxu0 0.0
    %950 = vmatprep.subr.mxu0 0.0
    %951 = vmatpush2.xpose.msra.mxu0 0.0
    %952 = vmatprep.subr.mxu0 0.0
    %953 = vmatpush2.xpose.msra.mxu0 0.0
    %954 = vmatprep.subr.mxu0 0.0
    %955 = vmatpush2.xpose.msra.mxu0 0.0
    %956 = vmatprep.subr.mxu0 0.0
    %957 = vmatpush2.xpose.msra.mxu0 0.0
    %958 = vmatprep.mubr.f32.mxu0 0.0
    %959 = vmatmul.mubr.f32.gmra.mxu0 %v889
    %v960 = vpop.f32.mrf.mxu0
    %v961 = vadd.f32 0.0, %v960
    %v962 = vpop.f32.mrf.mxu0
    %963 = vdwg.mxu0
    %v965 = vsel %vm279, %v177, 0
    %v968 = vsel %vm279, %v272, 0
    %970 = vmatprep.subr.mxu0 0.0
    %971 = vmatpush1.xpose.msra.mxu0 0.0
    %972 = vmatprep.subr.mxu0 0.0
    %973 = vmatpush1.xpose.msra.mxu0 0.0
    %974 = vmatprep.subr.mxu0 0.0
    %975 = vmatpush1.xpose.msra.mxu0 0.0
    %976 = vmatprep.subr.mxu0 0.0
    %977 = vmatpush1.xpose.msra.mxu0 0.0
    %978 = vmatprep.subr.mxu0 0.0
    %979 = vmatpush1.xpose.msra.mxu0 0.0
    %980 = vmatprep.subr.mxu0 0.0
    %981 = vmatpush1.xpose.msra.mxu0 0.0
    %982 = vmatprep.subr.mxu0 0.0
    %983 = vmatpush1.xpose.msra.mxu0 0.0
    %984 = vmatprep.subr.mxu0 0.0
    %985 = vmatpush1.xpose.msra.mxu0 0.0
    %986 = vmatprep.subr.mxu0 0.0
    %987 = vmatpush1.xpose.msra.mxu0 0.0
    %988 = vmatprep.subr.mxu0 0.0
    %989 = vmatpush1.xpose.msra.mxu0 0.0
    %990 = vmatprep.subr.mxu0 0.0
    %991 = vmatpush1.xpose.msra.mxu0 0.0
    %992 = vmatprep.subr.mxu0 0.0
    %993 = vmatpush1.xpose.msra.mxu0 0.0
    %994 = vmatprep.subr.mxu0 0.0
    %995 = vmatpush1.xpose.msra.mxu0 0.0
    %996 = vmatprep.subr.mxu0 0.0
    %997 = vmatpush1.xpose.msra.mxu0 0.0
    %998 = vmatprep.subr.mxu0 0.0
    %999 = vmatpush1.xpose.msra.mxu0 0.0
    %1000 = vmatprep.subr.mxu0 0.0
    %1001 = vmatpush1.xpose.msra.mxu0 %v968
    %1002 = vmatprep.subr.mxu0 0.0
    %1003 = vmatpush2.xpose.msra.mxu0 0.0
    %1004 = vmatprep.subr.mxu0 0.0
    %1005 = vmatpush2.xpose.msra.mxu0 0.0
    %1006 = vmatprep.subr.mxu0 0.0
    %1007 = vmatpush2.xpose.msra.mxu0 0.0
    %1008 = vmatprep.subr.mxu0 0.0
    %1009 = vmatpush2.xpose.msra.mxu0 0.0
    %1010 = vmatprep.subr.mxu0 0.0
    %1011 = vmatpush2.xpose.msra.mxu0 0.0
    %1012 = vmatprep.subr.mxu0 0.0
    %1013 = vmatpush2.xpose.msra.mxu0 0.0
    %1014 = vmatprep.subr.mxu0 0.0
    %1015 = vmatpush2.xpose.msra.mxu0 0.0
    %1016 = vmatprep.subr.mxu0 0.0
    %1017 = vmatpush2.xpose.msra.mxu0 0.0
    %1018 = vmatprep.subr.mxu0 0.0
    %1019 = vmatpush2.xpose.msra.mxu0 0.0
    %1020 = vmatprep.subr.mxu0 0.0
    %1021 = vmatpush2.xpose.msra.mxu0 0.0
    %1022 = vmatprep.subr.mxu0 0.0
    %1023 = vmatpush2.xpose.msra.mxu0 0.0
    %1024 = vmatprep.subr.mxu0 0.0
    %1025 = vmatpush2.xpose.msra.mxu0 0.0
    %1026 = vmatprep.subr.mxu0 0.0
    %1027 = vmatpush2.xpose.msra.mxu0 0.0
    %1028 = vmatprep.subr.mxu0 0.0
    %1029 = vmatpush2.xpose.msra.mxu0 0.0
    %1030 = vmatprep.subr.mxu0 0.0
    %1031 = vmatpush2.xpose.msra.mxu0 0.0
    %1032 = vmatprep.subr.mxu0 0.0
    %1033 = vmatpush2.xpose.msra.mxu0 0.0
    %1034 = vmatprep.mubr.f32.mxu0 0.0
    %1035 = vmatmul.mubr.f32.gmra.mxu0 %v965
    %v1036 = vpop.f32.mrf.mxu0
    %v1037 = vadd.f32 0.0, %v1036
    %v1038 = vpop.f32.mrf.mxu0
    %1039 = vdwg.mxu0
    %v1041 = vsel %vm279, %v160, 0
    %v1044 = vsel %vm279, %v273, 0
    %1046 = vmatprep.subr.mxu0 0.0
    %1047 = vmatpush1.xpose.msra.mxu0 0.0
    %1048 = vmatprep.subr.mxu0 0.0
    %1049 = vmatpush1.xpose.msra.mxu0 0.0
    %1050 = vmatprep.subr.mxu0 0.0
    %1051 = vmatpush1.xpose.msra.mxu0 0.0
    %1052 = vmatprep.subr.mxu0 0.0
    %1053 = vmatpush1.xpose.msra.mxu0 0.0
    %1054 = vmatprep.subr.mxu0 0.0
    %1055 = vmatpush1.xpose.msra.mxu0 0.0
    %1056 = vmatprep.subr.mxu0 0.0
    %1057 = vmatpush1.xpose.msra.mxu0 0.0
    %1058 = vmatprep.subr.mxu0 0.0
    %1059 = vmatpush1.xpose.msra.mxu0 0.0
    %1060 = vmatprep.subr.mxu0 0.0
    %1061 = vmatpush1.xpose.msra.mxu0 0.0
    %1062 = vmatprep.subr.mxu0 0.0
    %1063 = vmatpush1.xpose.msra.mxu0 0.0
    %1064 = vmatprep.subr.mxu0 0.0
    %1065 = vmatpush1.xpose.msra.mxu0 0.0
    %1066 = vmatprep.subr.mxu0 0.0
    %1067 = vmatpush1.xpose.msra.mxu0 0.0
    %1068 = vmatprep.subr.mxu0 0.0
    %1069 = vmatpush1.xpose.msra.mxu0 0.0
    %1070 = vmatprep.subr.mxu0 0.0
    %1071 = vmatpush1.xpose.msra.mxu0 0.0
    %1072 = vmatprep.subr.mxu0 0.0
    %1073 = vmatpush1.xpose.msra.mxu0 0.0
    %1074 = vmatprep.subr.mxu0 0.0
    %1075 = vmatpush1.xpose.msra.mxu0 0.0
    %1076 = vmatprep.subr.mxu0 0.0
    %1077 = vmatpush1.xpose.msra.mxu0 %v1044
    %1078 = vmatprep.subr.mxu0 0.0
    %1079 = vmatpush2.xpose.msra.mxu0 0.0
    %1080 = vmatprep.subr.mxu0 0.0
    %1081 = vmatpush2.xpose.msra.mxu0 0.0
    %1082 = vmatprep.subr.mxu0 0.0
    %1083 = vmatpush2.xpose.msra.mxu0 0.0
    %1084 = vmatprep.subr.mxu0 0.0
    %1085 = vmatpush2.xpose.msra.mxu0 0.0
    %1086 = vmatprep.subr.mxu0 0.0
    %1087 = vmatpush2.xpose.msra.mxu0 0.0
    %1088 = vmatprep.subr.mxu0 0.0
    %1089 = vmatpush2.xpose.msra.mxu0 0.0
    %1090 = vmatprep.subr.mxu0 0.0
    %1091 = vmatpush2.xpose.msra.mxu0 0.0
    %1092 = vmatprep.subr.mxu0 0.0
    %1093 = vmatpush2.xpose.msra.mxu0 0.0
    %1094 = vmatprep.subr.mxu0 0.0
    %1095 = vmatpush2.xpose.msra.mxu0 0.0
    %1096 = vmatprep.subr.mxu0 0.0
    %1097 = vmatpush2.xpose.msra.mxu0 0.0
    %1098 = vmatprep.subr.mxu0 0.0
    %1099 = vmatpush2.xpose.msra.mxu0 0.0
    %1100 = vmatprep.subr.mxu0 0.0
    %1101 = vmatpush2.xpose.msra.mxu0 0.0
    %1102 = vmatprep.subr.mxu0 0.0
    %1103 = vmatpush2.xpose.msra.mxu0 0.0
    %1104 = vmatprep.subr.mxu0 0.0
    %1105 = vmatpush2.xpose.msra.mxu0 0.0
    %1106 = vmatprep.subr.mxu0 0.0
    %1107 = vmatpush2.xpose.msra.mxu0 0.0
    %1108 = vmatprep.subr.mxu0 0.0
    %1109 = vmatpush2.xpose.msra.mxu0 0.0
    %1110 = vmatprep.mubr.f32.mxu0 0.0
    %1111 = vmatmul.mubr.f32.gmra.mxu0 %v1041
    %v1112 = vpop.f32.mrf.mxu0
    %v1113 = vadd.f32 0.0, %v1112
    %v1114 = vpop.f32.mrf.mxu0
    %1115 = vdwg.mxu0
    %v1117 = vsel %vm279, %v178, 0
    %v1120 = vsel %vm279, %v274, 0
    %1122 = vmatprep.subr.mxu0 0.0
    %1123 = vmatpush1.xpose.msra.mxu0 0.0
    %1124 = vmatprep.subr.mxu0 0.0
    %1125 = vmatpush1.xpose.msra.mxu0 0.0
    %1126 = vmatprep.subr.mxu0 0.0
    %1127 = vmatpush1.xpose.msra.mxu0 0.0
    %1128 = vmatprep.subr.mxu0 0.0
    %1129 = vmatpush1.xpose.msra.mxu0 0.0
    %1130 = vmatprep.subr.mxu0 0.0
    %1131 = vmatpush1.xpose.msra.mxu0 0.0
    %1132 = vmatprep.subr.mxu0 0.0
    %1133 = vmatpush1.xpose.msra.mxu0 0.0
    %1134 = vmatprep.subr.mxu0 0.0
    %1135 = vmatpush1.xpose.msra.mxu0 0.0
    %1136 = vmatprep.subr.mxu0 0.0
    %1137 = vmatpush1.xpose.msra.mxu0 0.0
    %1138 = vmatprep.subr.mxu0 0.0
    %1139 = vmatpush1.xpose.msra.mxu0 0.0
    %1140 = vmatprep.subr.mxu0 0.0
    %1141 = vmatpush1.xpose.msra.mxu0 0.0
    %1142 = vmatprep.subr.mxu0 0.0
    %1143 = vmatpush1.xpose.msra.mxu0 0.0
    %1144 = vmatprep.subr.mxu0 0.0
    %1145 = vmatpush1.xpose.msra.mxu0 0.0
    %1146 = vmatprep.subr.mxu0 0.0
    %1147 = vmatpush1.xpose.msra.mxu0 0.0
    %1148 = vmatprep.subr.mxu0 0.0
    %1149 = vmatpush1.xpose.msra.mxu0 0.0
    %1150 = vmatprep.subr.mxu0 0.0
    %1151 = vmatpush1.xpose.msra.mxu0 0.0
    %1152 = vmatprep.subr.mxu0 0.0
    %1153 = vmatpush1.xpose.msra.mxu0 %v1120
    %1154 = vmatprep.subr.mxu0 0.0
    %1155 = vmatpush2.xpose.msra.mxu0 0.0
    %1156 = vmatprep.subr.mxu0 0.0
    %1157 = vmatpush2.xpose.msra.mxu0 0.0
    %1158 = vmatprep.subr.mxu0 0.0
    %1159 = vmatpush2.xpose.msra.mxu0 0.0
    %1160 = vmatprep.subr.mxu0 0.0
    %1161 = vmatpush2.xpose.msra.mxu0 0.0
    %1162 = vmatprep.subr.mxu0 0.0
    %1163 = vmatpush2.xpose.msra.mxu0 0.0
    %1164 = vmatprep.subr.mxu0 0.0
    %1165 = vmatpush2.xpose.msra.mxu0 0.0
    %1166 = vmatprep.subr.mxu0 0.0
    %1167 = vmatpush2.xpose.msra.mxu0 0.0
    %1168 = vmatprep.subr.mxu0 0.0
    %1169 = vmatpush2.xpose.msra.mxu0 0.0
    %1170 = vmatprep.subr.mxu0 0.0
    %1171 = vmatpush2.xpose.msra.mxu0 0.0
    %1172 = vmatprep.subr.mxu0 0.0
    %1173 = vmatpush2.xpose.msra.mxu0 0.0
    %1174 = vmatprep.subr.mxu0 0.0
    %1175 = vmatpush2.xpose.msra.mxu0 0.0
    %1176 = vmatprep.subr.mxu0 0.0
    %1177 = vmatpush2.xpose.msra.mxu0 0.0
    %1178 = vmatprep.subr.mxu0 0.0
    %1179 = vmatpush2.xpose.msra.mxu0 0.0
    %1180 = vmatprep.subr.mxu0 0.0
    %1181 = vmatpush2.xpose.msra.mxu0 0.0
    %1182 = vmatprep.subr.mxu0 0.0
    %1183 = vmatpush2.xpose.msra.mxu0 0.0
    %1184 = vmatprep.subr.mxu0 0.0
    %1185 = vmatpush2.xpose.msra.mxu0 0.0
    %1186 = vmatprep.mubr.f32.mxu0 0.0
    %1187 = vmatmul.mubr.f32.gmra.mxu0 %v1117
    %v1188 = vpop.f32.mrf.mxu0
    %v1189 = vadd.f32 0.0, %v1188
    %v1190 = vpop.f32.mrf.mxu0
    %1191 = vdwg.mxu0
    %v1193 = vsel %vm279, %v169, 0
    %v1196 = vsel %vm279, %v275, 0
    %1198 = vmatprep.subr.mxu0 0.0
    %1199 = vmatpush1.xpose.msra.mxu0 0.0
    %1200 = vmatprep.subr.mxu0 0.0
    %1201 = vmatpush1.xpose.msra.mxu0 0.0
    %1202 = vmatprep.subr.mxu0 0.0
    %1203 = vmatpush1.xpose.msra.mxu0 0.0
    %1204 = vmatprep.subr.mxu0 0.0
    %1205 = vmatpush1.xpose.msra.mxu0 0.0
    %1206 = vmatprep.subr.mxu0 0.0
    %1207 = vmatpush1.xpose.msra.mxu0 0.0
    %1208 = vmatprep.subr.mxu0 0.0
    %1209 = vmatpush1.xpose.msra.mxu0 0.0
    %1210 = vmatprep.subr.mxu0 0.0
    %1211 = vmatpush1.xpose.msra.mxu0 0.0
    %1212 = vmatprep.subr.mxu0 0.0
    %1213 = vmatpush1.xpose.msra.mxu0 0.0
    %1214 = vmatprep.subr.mxu0 0.0
    %1215 = vmatpush1.xpose.msra.mxu0 0.0
    %1216 = vmatprep.subr.mxu0 0.0
    %1217 = vmatpush1.xpose.msra.mxu0 0.0
    %1218 = vmatprep.subr.mxu0 0.0
    %1219 = vmatpush1.xpose.msra.mxu0 0.0
    %1220 = vmatprep.subr.mxu0 0.0
    %1221 = vmatpush1.xpose.msra.mxu0 0.0
    %1222 = vmatprep.subr.mxu0 0.0
    %1223 = vmatpush1.xpose.msra.mxu0 0.0
    %1224 = vmatprep.subr.mxu0 0.0
    %1225 = vmatpush1.xpose.msra.mxu0 0.0
    %1226 = vmatprep.subr.mxu0 0.0
    %1227 = vmatpush1.xpose.msra.mxu0 0.0
    %1228 = vmatprep.subr.mxu0 0.0
    %1229 = vmatpush1.xpose.msra.mxu0 %v1196
    %1230 = vmatprep.subr.mxu0 0.0
    %1231 = vmatpush2.xpose.msra.mxu0 0.0
    %1232 = vmatprep.subr.mxu0 0.0
    %1233 = vmatpush2.xpose.msra.mxu0 0.0
    %1234 = vmatprep.subr.mxu0 0.0
    %1235 = vmatpush2.xpose.msra.mxu0 0.0
    %1236 = vmatprep.subr.mxu0 0.0
    %1237 = vmatpush2.xpose.msra.mxu0 0.0
    %1238 = vmatprep.subr.mxu0 0.0
    %1239 = vmatpush2.xpose.msra.mxu0 0.0
    %1240 = vmatprep.subr.mxu0 0.0
    %1241 = vmatpush2.xpose.msra.mxu0 0.0
    %1242 = vmatprep.subr.mxu0 0.0
    %1243 = vmatpush2.xpose.msra.mxu0 0.0
    %1244 = vmatprep.subr.mxu0 0.0
    %1245 = vmatpush2.xpose.msra.mxu0 0.0
    %1246 = vmatprep.subr.mxu0 0.0
    %1247 = vmatpush2.xpose.msra.mxu0 0.0
    %1248 = vmatprep.subr.mxu0 0.0
    %1249 = vmatpush2.xpose.msra.mxu0 0.0
    %1250 = vmatprep.subr.mxu0 0.0
    %1251 = vmatpush2.xpose.msra.mxu0 0.0
    %1252 = vmatprep.subr.mxu0 0.0
    %1253 = vmatpush2.xpose.msra.mxu0 0.0
    %1254 = vmatprep.subr.mxu0 0.0
    %1255 = vmatpush2.xpose.msra.mxu0 0.0
    %1256 = vmatprep.subr.mxu0 0.0
    %1257 = vmatpush2.xpose.msra.mxu0 0.0
    %1258 = vmatprep.subr.mxu0 0.0
    %1259 = vmatpush2.xpose.msra.mxu0 0.0
    %1260 = vmatprep.subr.mxu0 0.0
    %1261 = vmatpush2.xpose.msra.mxu0 0.0
    %1262 = vmatprep.mubr.f32.mxu0 0.0
    %1263 = vmatmul.mubr.f32.gmra.mxu0 %v1193
    %v1264 = vpop.f32.mrf.mxu0
    %v1265 = vadd.f32 0.0, %v1264
    %v1266 = vpop.f32.mrf.mxu0
    %1267 = vdwg.mxu0
    %v1269 = vsel %vm279, %v179, 0
    %v1272 = vsel %vm279, %v276, 0
    %1274 = vmatprep.subr.mxu0 0.0
    %1275 = vmatpush1.xpose.msra.mxu0 0.0
    %1276 = vmatprep.subr.mxu0 0.0
    %1277 = vmatpush1.xpose.msra.mxu0 0.0
    %1278 = vmatprep.subr.mxu0 0.0
    %1279 = vmatpush1.xpose.msra.mxu0 0.0
    %1280 = vmatprep.subr.mxu0 0.0
    %1281 = vmatpush1.xpose.msra.mxu0 0.0
    %1282 = vmatprep.subr.mxu0 0.0
    %1283 = vmatpush1.xpose.msra.mxu0 0.0
    %1284 = vmatprep.subr.mxu0 0.0
    %1285 = vmatpush1.xpose.msra.mxu0 0.0
    %1286 = vmatprep.subr.mxu0 0.0
    %1287 = vmatpush1.xpose.msra.mxu0 0.0
    %1288 = vmatprep.subr.mxu0 0.0
    %1289 = vmatpush1.xpose.msra.mxu0 0.0
    %1290 = vmatprep.subr.mxu0 0.0
    %1291 = vmatpush1.xpose.msra.mxu0 0.0
    %1292 = vmatprep.subr.mxu0 0.0
    %1293 = vmatpush1.xpose.msra.mxu0 0.0
    %1294 = vmatprep.subr.mxu0 0.0
    %1295 = vmatpush1.xpose.msra.mxu0 0.0
    %1296 = vmatprep.subr.mxu0 0.0
    %1297 = vmatpush1.xpose.msra.mxu0 0.0
    %1298 = vmatprep.subr.mxu0 0.0
    %1299 = vmatpush1.xpose.msra.mxu0 0.0
    %1300 = vmatprep.subr.mxu0 0.0
    %1301 = vmatpush1.xpose.msra.mxu0 0.0
    %1302 = vmatprep.subr.mxu0 0.0
    %1303 = vmatpush1.xpose.msra.mxu0 0.0
    %1304 = vmatprep.subr.mxu0 0.0
    %1305 = vmatpush1.xpose.msra.mxu0 %v1272
    %1306 = vmatprep.subr.mxu0 0.0
    %1307 = vmatpush2.xpose.msra.mxu0 0.0
    %1308 = vmatprep.subr.mxu0 0.0
    %1309 = vmatpush2.xpose.msra.mxu0 0.0
    %1310 = vmatprep.subr.mxu0 0.0
    %1311 = vmatpush2.xpose.msra.mxu0 0.0
    %1312 = vmatprep.subr.mxu0 0.0
    %1313 = vmatpush2.xpose.msra.mxu0 0.0
    %1314 = vmatprep.subr.mxu0 0.0
    %1315 = vmatpush2.xpose.msra.mxu0 0.0
    %1316 = vmatprep.subr.mxu0 0.0
    %1317 = vmatpush2.xpose.msra.mxu0 0.0
    %1318 = vmatprep.subr.mxu0 0.0
    %1319 = vmatpush2.xpose.msra.mxu0 0.0
    %1320 = vmatprep.subr.mxu0 0.0
    %1321 = vmatpush2.xpose.msra.mxu0 0.0
    %1322 = vmatprep.subr.mxu0 0.0
    %1323 = vmatpush2.xpose.msra.mxu0 0.0
    %1324 = vmatprep.subr.mxu0 0.0
    %1325 = vmatpush2.xpose.msra.mxu0 0.0
    %1326 = vmatprep.subr.mxu0 0.0
    %1327 = vmatpush2.xpose.msra.mxu0 0.0
    %1328 = vmatprep.subr.mxu0 0.0
    %1329 = vmatpush2.xpose.msra.mxu0 0.0
    %1330 = vmatprep.subr.mxu0 0.0
    %1331 = vmatpush2.xpose.msra.mxu0 0.0
    %1332 = vmatprep.subr.mxu0 0.0
    %1333 = vmatpush2.xpose.msra.mxu0 0.0
    %1334 = vmatprep.subr.mxu0 0.0
    %1335 = vmatpush2.xpose.msra.mxu0 0.0
    %1336 = vmatprep.subr.mxu0 0.0
    %1337 = vmatpush2.xpose.msra.mxu0 0.0
    %1338 = vmatprep.mubr.f32.mxu0 0.0
    %1339 = vmatmul.mubr.f32.gmra.mxu0 %v1269
    %v1340 = vpop.f32.mrf.mxu0
    %v1341 = vadd.f32 0.0, %v1340
    %v1342 = vpop.f32.mrf.mxu0
    %1343 = vdwg.mxu0
    %v1345 = vsel %vm279, %v176, 0
    %v1348 = vsel %vm279, %v277, 0
    %1350 = vmatprep.subr.mxu0 0.0
    %1351 = vmatpush1.xpose.msra.mxu0 0.0
    %1352 = vmatprep.subr.mxu0 0.0
    %1353 = vmatpush1.xpose.msra.mxu0 0.0
    %1354 = vmatprep.subr.mxu0 0.0
    %1355 = vmatpush1.xpose.msra.mxu0 0.0
    %1356 = vmatprep.subr.mxu0 0.0
    %1357 = vmatpush1.xpose.msra.mxu0 0.0
    %1358 = vmatprep.subr.mxu0 0.0
    %1359 = vmatpush1.xpose.msra.mxu0 0.0
    %1360 = vmatprep.subr.mxu0 0.0
    %1361 = vmatpush1.xpose.msra.mxu0 0.0
    %1362 = vmatprep.subr.mxu0 0.0
    %1363 = vmatpush1.xpose.msra.mxu0 0.0
    %1364 = vmatprep.subr.mxu0 0.0
    %1365 = vmatpush1.xpose.msra.mxu0 0.0
    %1366 = vmatprep.subr.mxu0 0.0
    %1367 = vmatpush1.xpose.msra.mxu0 0.0
    %1368 = vmatprep.subr.mxu0 0.0
    %1369 = vmatpush1.xpose.msra.mxu0 0.0
    %1370 = vmatprep.subr.mxu0 0.0
    %1371 = vmatpush1.xpose.msra.mxu0 0.0
    %1372 = vmatprep.subr.mxu0 0.0
    %1373 = vmatpush1.xpose.msra.mxu0 0.0
    %1374 = vmatprep.subr.mxu0 0.0
    %1375 = vmatpush1.xpose.msra.mxu0 0.0
    %1376 = vmatprep.subr.mxu0 0.0
    %1377 = vmatpush1.xpose.msra.mxu0 0.0
    %1378 = vmatprep.subr.mxu0 0.0
    %1379 = vmatpush1.xpose.msra.mxu0 0.0
    %1380 = vmatprep.subr.mxu0 0.0
    %1381 = vmatpush1.xpose.msra.mxu0 %v1348
    %1382 = vmatprep.subr.mxu0 0.0
    %1383 = vmatpush2.xpose.msra.mxu0 0.0
    %1384 = vmatprep.subr.mxu0 0.0
    %1385 = vmatpush2.xpose.msra.mxu0 0.0
    %1386 = vmatprep.subr.mxu0 0.0
    %1387 = vmatpush2.xpose.msra.mxu0 0.0
    %1388 = vmatprep.subr.mxu0 0.0
    %1389 = vmatpush2.xpose.msra.mxu0 0.0
    %1390 = vmatprep.subr.mxu0 0.0
    %1391 = vmatpush2.xpose.msra.mxu0 0.0
    %1392 = vmatprep.subr.mxu0 0.0
    %1393 = vmatpush2.xpose.msra.mxu0 0.0
    %1394 = vmatprep.subr.mxu0 0.0
    %1395 = vmatpush2.xpose.msra.mxu0 0.0
    %1396 = vmatprep.subr.mxu0 0.0
    %1397 = vmatpush2.xpose.msra.mxu0 0.0
    %1398 = vmatprep.subr.mxu0 0.0
    %1399 = vmatpush2.xpose.msra.mxu0 0.0
    %1400 = vmatprep.subr.mxu0 0.0
    %1401 = vmatpush2.xpose.msra.mxu0 0.0
    %1402 = vmatprep.subr.mxu0 0.0
    %1403 = vmatpush2.xpose.msra.mxu0 0.0
    %1404 = vmatprep.subr.mxu0 0.0
    %1405 = vmatpush2.xpose.msra.mxu0 0.0
    %1406 = vmatprep.subr.mxu0 0.0
    %1407 = vmatpush2.xpose.msra.mxu0 0.0
    %1408 = vmatprep.subr.mxu0 0.0
    %1409 = vmatpush2.xpose.msra.mxu0 0.0
    %1410 = vmatprep.subr.mxu0 0.0
    %1411 = vmatpush2.xpose.msra.mxu0 0.0
    %1412 = vmatprep.subr.mxu0 0.0
    %1413 = vmatpush2.xpose.msra.mxu0 0.0
    %1414 = vmatprep.mubr.f32.mxu0 0.0
    %1415 = vmatmul.mubr.f32.gmra.mxu0 %v1345
    %v1416 = vpop.f32.mrf.mxu0
    %v1417 = vadd.f32 0.0, %v1416
    %v1418 = vpop.f32.mrf.mxu0
    %1419 = vdwg.mxu0
    %v1421 = vsel %vm279, %v180, 0
    %v1424 = vsel %vm279, %v278, 0
    %1426 = vmatprep.subr.mxu0 0.0
    %1427 = vmatpush1.xpose.msra.mxu0 0.0
    %1428 = vmatprep.subr.mxu0 0.0
    %1429 = vmatpush1.xpose.msra.mxu0 0.0
    %1430 = vmatprep.subr.mxu0 0.0
    %1431 = vmatpush1.xpose.msra.mxu0 0.0
    %1432 = vmatprep.subr.mxu0 0.0
    %1433 = vmatpush1.xpose.msra.mxu0 0.0
    %1434 = vmatprep.subr.mxu0 0.0
    %1435 = vmatpush1.xpose.msra.mxu0 0.0
    %1436 = vmatprep.subr.mxu0 0.0
    %1437 = vmatpush1.xpose.msra.mxu0 0.0
    %1438 = vmatprep.subr.mxu0 0.0
    %1439 = vmatpush1.xpose.msra.mxu0 0.0
    %1440 = vmatprep.subr.mxu0 0.0
    %1441 = vmatpush1.xpose.msra.mxu0 0.0
    %1442 = vmatprep.subr.mxu0 0.0
    %1443 = vmatpush1.xpose.msra.mxu0 0.0
    %1444 = vmatprep.subr.mxu0 0.0
    %1445 = vmatpush1.xpose.msra.mxu0 0.0
    %1446 = vmatprep.subr.mxu0 0.0
    %1447 = vmatpush1.xpose.msra.mxu0 0.0
    %1448 = vmatprep.subr.mxu0 0.0
    %1449 = vmatpush1.xpose.msra.mxu0 0.0
    %1450 = vmatprep.subr.mxu0 0.0
    %1451 = vmatpush1.xpose.msra.mxu0 0.0
    %1452 = vmatprep.subr.mxu0 0.0
    %1453 = vmatpush1.xpose.msra.mxu0 0.0
    %1454 = vmatprep.subr.mxu0 0.0
    %1455 = vmatpush1.xpose.msra.mxu0 0.0
    %1456 = vmatprep.subr.mxu0 0.0
    %1457 = vmatpush1.xpose.msra.mxu0 %v1424
    %1458 = vmatprep.subr.mxu0 0.0
    %1459 = vmatpush2.xpose.msra.mxu0 0.0
    %1460 = vmatprep.subr.mxu0 0.0
    %1461 = vmatpush2.xpose.msra.mxu0 0.0
    %1462 = vmatprep.subr.mxu0 0.0
    %1463 = vmatpush2.xpose.msra.mxu0 0.0
    %1464 = vmatprep.subr.mxu0 0.0
    %1465 = vmatpush2.xpose.msra.mxu0 0.0
    %1466 = vmatprep.subr.mxu0 0.0
    %1467 = vmatpush2.xpose.msra.mxu0 0.0
    %1468 = vmatprep.subr.mxu0 0.0
    %1469 = vmatpush2.xpose.msra.mxu0 0.0
    %1470 = vmatprep.subr.mxu0 0.0
    %1471 = vmatpush2.xpose.msra.mxu0 0.0
    %1472 = vmatprep.subr.mxu0 0.0
    %1473 = vmatpush2.xpose.msra.mxu0 0.0
    %1474 = vmatprep.subr.mxu0 0.0
    %1475 = vmatpush2.xpose.msra.mxu0 0.0
    %1476 = vmatprep.subr.mxu0 0.0
    %1477 = vmatpush2.xpose.msra.mxu0 0.0
    %1478 = vmatprep.subr.mxu0 0.0
    %1479 = vmatpush2.xpose.msra.mxu0 0.0
    %1480 = vmatprep.subr.mxu0 0.0
    %1481 = vmatpush2.xpose.msra.mxu0 0.0
    %1482 = vmatprep.subr.mxu0 0.0
    %1483 = vmatpush2.xpose.msra.mxu0 0.0
    %1484 = vmatprep.subr.mxu0 0.0
    %1485 = vmatpush2.xpose.msra.mxu0 0.0
    %1486 = vmatprep.subr.mxu0 0.0
    %1487 = vmatpush2.xpose.msra.mxu0 0.0
    %1488 = vmatprep.subr.mxu0 0.0
    %1489 = vmatpush2.xpose.msra.mxu0 0.0
    %1490 = vmatprep.mubr.f32.mxu0 0.0
    %1491 = vmatmul.mubr.f32.gmra.mxu0 %v1421
    %v1492 = vpop.f32.mrf.mxu0
    %v1493 = vadd.f32 0.0, %v1492
    %v1494 = vpop.f32.mrf.mxu0
    %1495 = vdwg.mxu0
    %v1497 = vsel %vm279, %v247, 0
    %1499 = vmatprep.subr.mxu0 0.0
    %1500 = vmatpush1.xpose.msra.mxu0 0.0
    %1501 = vmatprep.subr.mxu0 0.0
    %1502 = vmatpush1.xpose.msra.mxu0 0.0
    %1503 = vmatprep.subr.mxu0 0.0
    %1504 = vmatpush1.xpose.msra.mxu0 0.0
    %1505 = vmatprep.subr.mxu0 0.0
    %1506 = vmatpush1.xpose.msra.mxu0 0.0
    %1507 = vmatprep.subr.mxu0 0.0
    %1508 = vmatpush1.xpose.msra.mxu0 0.0
    %1509 = vmatprep.subr.mxu0 0.0
    %1510 = vmatpush1.xpose.msra.mxu0 0.0
    %1511 = vmatprep.subr.mxu0 0.0
    %1512 = vmatpush1.xpose.msra.mxu0 0.0
    %1513 = vmatprep.subr.mxu0 0.0
    %1514 = vmatpush1.xpose.msra.mxu0 0.0
    %1515 = vmatprep.subr.mxu0 0.0
    %1516 = vmatpush1.xpose.msra.mxu0 0.0
    %1517 = vmatprep.subr.mxu0 0.0
    %1518 = vmatpush1.xpose.msra.mxu0 0.0
    %1519 = vmatprep.subr.mxu0 0.0
    %1520 = vmatpush1.xpose.msra.mxu0 0.0
    %1521 = vmatprep.subr.mxu0 0.0
    %1522 = vmatpush1.xpose.msra.mxu0 0.0
    %1523 = vmatprep.subr.mxu0 0.0
    %1524 = vmatpush1.xpose.msra.mxu0 0.0
    %1525 = vmatprep.subr.mxu0 0.0
    %1526 = vmatpush1.xpose.msra.mxu0 0.0
    %1527 = vmatprep.subr.mxu0 0.0
    %1528 = vmatpush1.xpose.msra.mxu0 0.0
    %1529 = vmatprep.subr.mxu0 0.0
    %1530 = vmatpush1.xpose.msra.mxu0 %v1497
    %1531 = vmatprep.subr.mxu0 0.0
    %1532 = vmatpush2.xpose.msra.mxu0 0.0
    %1533 = vmatprep.subr.mxu0 0.0
    %1534 = vmatpush2.xpose.msra.mxu0 0.0
    %1535 = vmatprep.subr.mxu0 0.0
    %1536 = vmatpush2.xpose.msra.mxu0 0.0
    %1537 = vmatprep.subr.mxu0 0.0
    %1538 = vmatpush2.xpose.msra.mxu0 0.0
    %1539 = vmatprep.subr.mxu0 0.0
    %1540 = vmatpush2.xpose.msra.mxu0 0.0
    %1541 = vmatprep.subr.mxu0 0.0
    %1542 = vmatpush2.xpose.msra.mxu0 0.0
    %1543 = vmatprep.subr.mxu0 0.0
    %1544 = vmatpush2.xpose.msra.mxu0 0.0
    %1545 = vmatprep.subr.mxu0 0.0
    %1546 = vmatpush2.xpose.msra.mxu0 0.0
    %1547 = vmatprep.subr.mxu0 0.0
    %1548 = vmatpush2.xpose.msra.mxu0 0.0
    %1549 = vmatprep.subr.mxu0 0.0
    %1550 = vmatpush2.xpose.msra.mxu0 0.0
    %1551 = vmatprep.subr.mxu0 0.0
    %1552 = vmatpush2.xpose.msra.mxu0 0.0
    %1553 = vmatprep.subr.mxu0 0.0
    %1554 = vmatpush2.xpose.msra.mxu0 0.0
    %1555 = vmatprep.subr.mxu0 0.0
    %1556 = vmatpush2.xpose.msra.mxu0 0.0
    %1557 = vmatprep.subr.mxu0 0.0
    %1558 = vmatpush2.xpose.msra.mxu0 0.0
    %1559 = vmatprep.subr.mxu0 0.0
    %1560 = vmatpush2.xpose.msra.mxu0 0.0
    %1561 = vmatprep.subr.mxu0 0.0
    %1562 = vmatpush2.xpose.msra.mxu0 0.0
    %1563 = vmatprep.mubr.f32.mxu0 0.0
    %1564 = vmatmul.mubr.f32.gmra.mxu0 %v889
    %v1565 = vpop.f32.mrf.mxu0
    %v1566 = vadd.f32 %v353, %v1565
    %v1567 = vpop.f32.mrf.mxu0
    %1568 = vdwg.mxu0
    %v1570 = vsel %vm279, %v248, 0
    %1572 = vmatprep.subr.mxu0 0.0
    %1573 = vmatpush1.xpose.msra.mxu0 0.0
    %1574 = vmatprep.subr.mxu0 0.0
    %1575 = vmatpush1.xpose.msra.mxu0 0.0
    %1576 = vmatprep.subr.mxu0 0.0
    %1577 = vmatpush1.xpose.msra.mxu0 0.0
    %1578 = vmatprep.subr.mxu0 0.0
    %1579 = vmatpush1.xpose.msra.mxu0 0.0
    %1580 = vmatprep.subr.mxu0 0.0
    %1581 = vmatpush1.xpose.msra.mxu0 0.0
    %1582 = vmatprep.subr.mxu0 0.0
    %1583 = vmatpush1.xpose.msra.mxu0 0.0
    %1584 = vmatprep.subr.mxu0 0.0
    %1585 = vmatpush1.xpose.msra.mxu0 0.0
    %1586 = vmatprep.subr.mxu0 0.0
    %1587 = vmatpush1.xpose.msra.mxu0 0.0
    %1588 = vmatprep.subr.mxu0 0.0
    %1589 = vmatpush1.xpose.msra.mxu0 0.0
    %1590 = vmatprep.subr.mxu0 0.0
    %1591 = vmatpush1.xpose.msra.mxu0 0.0
    %1592 = vmatprep.subr.mxu0 0.0
    %1593 = vmatpush1.xpose.msra.mxu0 0.0
    %1594 = vmatprep.subr.mxu0 0.0
    %1595 = vmatpush1.xpose.msra.mxu0 0.0
    %1596 = vmatprep.subr.mxu0 0.0
    %1597 = vmatpush1.xpose.msra.mxu0 0.0
    %1598 = vmatprep.subr.mxu0 0.0
    %1599 = vmatpush1.xpose.msra.mxu0 0.0
    %1600 = vmatprep.subr.mxu0 0.0
    %1601 = vmatpush1.xpose.msra.mxu0 0.0
    %1602 = vmatprep.subr.mxu0 0.0
    %1603 = vmatpush1.xpose.msra.mxu0 %v1570
    %1604 = vmatprep.subr.mxu0 0.0
    %1605 = vmatpush2.xpose.msra.mxu0 0.0
    %1606 = vmatprep.subr.mxu0 0.0
    %1607 = vmatpush2.xpose.msra.mxu0 0.0
    %1608 = vmatprep.subr.mxu0 0.0
    %1609 = vmatpush2.xpose.msra.mxu0 0.0
    %1610 = vmatprep.subr.mxu0 0.0
    %1611 = vmatpush2.xpose.msra.mxu0 0.0
    %1612 = vmatprep.subr.mxu0 0.0
    %1613 = vmatpush2.xpose.msra.mxu0 0.0
    %1614 = vmatprep.subr.mxu0 0.0
    %1615 = vmatpush2.xpose.msra.mxu0 0.0
    %1616 = vmatprep.subr.mxu0 0.0
    %1617 = vmatpush2.xpose.msra.mxu0 0.0
    %1618 = vmatprep.subr.mxu0 0.0
    %1619 = vmatpush2.xpose.msra.mxu0 0.0
    %1620 = vmatprep.subr.mxu0 0.0
    %1621 = vmatpush2.xpose.msra.mxu0 0.0
    %1622 = vmatprep.subr.mxu0 0.0
    %1623 = vmatpush2.xpose.msra.mxu0 0.0
    %1624 = vmatprep.subr.mxu0 0.0
    %1625 = vmatpush2.xpose.msra.mxu0 0.0
    %1626 = vmatprep.subr.mxu0 0.0
    %1627 = vmatpush2.xpose.msra.mxu0 0.0
    %1628 = vmatprep.subr.mxu0 0.0
    %1629 = vmatpush2.xpose.msra.mxu0 0.0
    %1630 = vmatprep.subr.mxu0 0.0
    %1631 = vmatpush2.xpose.msra.mxu0 0.0
    %1632 = vmatprep.subr.mxu0 0.0
    %1633 = vmatpush2.xpose.msra.mxu0 0.0
    %1634 = vmatprep.subr.mxu0 0.0
    %1635 = vmatpush2.xpose.msra.mxu0 0.0
    %1636 = vmatprep.mubr.f32.mxu0 0.0
    %1637 = vmatmul.mubr.f32.gmra.mxu0 %v965
    %v1638 = vpop.f32.mrf.mxu0
    %v1639 = vadd.f32 %v429, %v1638
    %v1640 = vpop.f32.mrf.mxu0
    %1641 = vdwg.mxu0
    %v1643 = vsel %vm279, %v249, 0
    %1645 = vmatprep.subr.mxu0 0.0
    %1646 = vmatpush1.xpose.msra.mxu0 0.0
    %1647 = vmatprep.subr.mxu0 0.0
    %1648 = vmatpush1.xpose.msra.mxu0 0.0
    %1649 = vmatprep.subr.mxu0 0.0
    %1650 = vmatpush1.xpose.msra.mxu0 0.0
    %1651 = vmatprep.subr.mxu0 0.0
    %1652 = vmatpush1.xpose.msra.mxu0 0.0
    %1653 = vmatprep.subr.mxu0 0.0
    %1654 = vmatpush1.xpose.msra.mxu0 0.0
    %1655 = vmatprep.subr.mxu0 0.0
    %1656 = vmatpush1.xpose.msra.mxu0 0.0
    %1657 = vmatprep.subr.mxu0 0.0
    %1658 = vmatpush1.xpose.msra.mxu0 0.0
    %1659 = vmatprep.subr.mxu0 0.0
    %1660 = vmatpush1.xpose.msra.mxu0 0.0
    %1661 = vmatprep.subr.mxu0 0.0
    %1662 = vmatpush1.xpose.msra.mxu0 0.0
    %1663 = vmatprep.subr.mxu0 0.0
    %1664 = vmatpush1.xpose.msra.mxu0 0.0
    %1665 = vmatprep.subr.mxu0 0.0
    %1666 = vmatpush1.xpose.msra.mxu0 0.0
    %1667 = vmatprep.subr.mxu0 0.0
    %1668 = vmatpush1.xpose.msra.mxu0 0.0
    %1669 = vmatprep.subr.mxu0 0.0
    %1670 = vmatpush1.xpose.msra.mxu0 0.0
    %1671 = vmatprep.subr.mxu0 0.0
    %1672 = vmatpush1.xpose.msra.mxu0 0.0
    %1673 = vmatprep.subr.mxu0 0.0
    %1674 = vmatpush1.xpose.msra.mxu0 0.0
    %1675 = vmatprep.subr.mxu0 0.0
    %1676 = vmatpush1.xpose.msra.mxu0 %v1643
    %1677 = vmatprep.subr.mxu0 0.0
    %1678 = vmatpush2.xpose.msra.mxu0 0.0
    %1679 = vmatprep.subr.mxu0 0.0
    %1680 = vmatpush2.xpose.msra.mxu0 0.0
    %1681 = vmatprep.subr.mxu0 0.0
    %1682 = vmatpush2.xpose.msra.mxu0 0.0
    %1683 = vmatprep.subr.mxu0 0.0
    %1684 = vmatpush2.xpose.msra.mxu0 0.0
    %1685 = vmatprep.subr.mxu0 0.0
    %1686 = vmatpush2.xpose.msra.mxu0 0.0
    %1687 = vmatprep.subr.mxu0 0.0
    %1688 = vmatpush2.xpose.msra.mxu0 0.0
    %1689 = vmatprep.subr.mxu0 0.0
    %1690 = vmatpush2.xpose.msra.mxu0 0.0
    %1691 = vmatprep.subr.mxu0 0.0
    %1692 = vmatpush2.xpose.msra.mxu0 0.0
    %1693 = vmatprep.subr.mxu0 0.0
    %1694 = vmatpush2.xpose.msra.mxu0 0.0
    %1695 = vmatprep.subr.mxu0 0.0
    %1696 = vmatpush2.xpose.msra.mxu0 0.0
    %1697 = vmatprep.subr.mxu0 0.0
    %1698 = vmatpush2.xpose.msra.mxu0 0.0
    %1699 = vmatprep.subr.mxu0 0.0
    %1700 = vmatpush2.xpose.msra.mxu0 0.0
    %1701 = vmatprep.subr.mxu0 0.0
    %1702 = vmatpush2.xpose.msra.mxu0 0.0
    %1703 = vmatprep.subr.mxu0 0.0
    %1704 = vmatpush2.xpose.msra.mxu0 0.0
    %1705 = vmatprep.subr.mxu0 0.0
    %1706 = vmatpush2.xpose.msra.mxu0 0.0
    %1707 = vmatprep.subr.mxu0 0.0
    %1708 = vmatpush2.xpose.msra.mxu0 0.0
    %1709 = vmatprep.mubr.f32.mxu0 0.0
    %1710 = vmatmul.mubr.f32.gmra.mxu0 %v1041
    %v1711 = vpop.f32.mrf.mxu0
    %v1712 = vadd.f32 %v505, %v1711
    %v1713 = vpop.f32.mrf.mxu0
    %1714 = vdwg.mxu0
    %v1716 = vsel %vm279, %v250, 0
    %1718 = vmatprep.subr.mxu0 0.0
    %1719 = vmatpush1.xpose.msra.mxu0 0.0
    %1720 = vmatprep.subr.mxu0 0.0
    %1721 = vmatpush1.xpose.msra.mxu0 0.0
    %1722 = vmatprep.subr.mxu0 0.0
    %1723 = vmatpush1.xpose.msra.mxu0 0.0
    %1724 = vmatprep.subr.mxu0 0.0
    %1725 = vmatpush1.xpose.msra.mxu0 0.0
    %1726 = vmatprep.subr.mxu0 0.0
    %1727 = vmatpush1.xpose.msra.mxu0 0.0
    %1728 = vmatprep.subr.mxu0 0.0
    %1729 = vmatpush1.xpose.msra.mxu0 0.0
    %1730 = vmatprep.subr.mxu0 0.0
    %1731 = vmatpush1.xpose.msra.mxu0 0.0
    %1732 = vmatprep.subr.mxu0 0.0
    %1733 = vmatpush1.xpose.msra.mxu0 0.0
    %1734 = vmatprep.subr.mxu0 0.0
    %1735 = vmatpush1.xpose.msra.mxu0 0.0
    %1736 = vmatprep.subr.mxu0 0.0
    %1737 = vmatpush1.xpose.msra.mxu0 0.0
    %1738 = vmatprep.subr.mxu0 0.0
    %1739 = vmatpush1.xpose.msra.mxu0 0.0
    %1740 = vmatprep.subr.mxu0 0.0
    %1741 = vmatpush1.xpose.msra.mxu0 0.0
    %1742 = vmatprep.subr.mxu0 0.0
    %1743 = vmatpush1.xpose.msra.mxu0 0.0
    %1744 = vmatprep.subr.mxu0 0.0
    %1745 = vmatpush1.xpose.msra.mxu0 0.0
    %1746 = vmatprep.subr.mxu0 0.0
    %1747 = vmatpush1.xpose.msra.mxu0 0.0
    %1748 = vmatprep.subr.mxu0 0.0
    %1749 = vmatpush1.xpose.msra.mxu0 %v1716
    %1750 = vmatprep.subr.mxu0 0.0
    %1751 = vmatpush2.xpose.msra.mxu0 0.0
    %1752 = vmatprep.subr.mxu0 0.0
    %1753 = vmatpush2.xpose.msra.mxu0 0.0
    %1754 = vmatprep.subr.mxu0 0.0
    %1755 = vmatpush2.xpose.msra.mxu0 0.0
    %1756 = vmatprep.subr.mxu0 0.0
    %1757 = vmatpush2.xpose.msra.mxu0 0.0
    %1758 = vmatprep.subr.mxu0 0.0
    %1759 = vmatpush2.xpose.msra.mxu0 0.0
    %1760 = vmatprep.subr.mxu0 0.0
    %1761 = vmatpush2.xpose.msra.mxu0 0.0
    %1762 = vmatprep.subr.mxu0 0.0
    %1763 = vmatpush2.xpose.msra.mxu0 0.0
    %1764 = vmatprep.subr.mxu0 0.0
    %1765 = vmatpush2.xpose.msra.mxu0 0.0
    %1766 = vmatprep.subr.mxu0 0.0
    %1767 = vmatpush2.xpose.msra.mxu0 0.0
    %1768 = vmatprep.subr.mxu0 0.0
    %1769 = vmatpush2.xpose.msra.mxu0 0.0
    %1770 = vmatprep.subr.mxu0 0.0
    %1771 = vmatpush2.xpose.msra.mxu0 0.0
    %1772 = vmatprep.subr.mxu0 0.0
    %1773 = vmatpush2.xpose.msra.mxu0 0.0
    %1774 = vmatprep.subr.mxu0 0.0
    %1775 = vmatpush2.xpose.msra.mxu0 0.0
    %1776 = vmatprep.subr.mxu0 0.0
    %1777 = vmatpush2.xpose.msra.mxu0 0.0
    %1778 = vmatprep.subr.mxu0 0.0
    %1779 = vmatpush2.xpose.msra.mxu0 0.0
    %1780 = vmatprep.subr.mxu0 0.0
    %1781 = vmatpush2.xpose.msra.mxu0 0.0
    %1782 = vmatprep.mubr.f32.mxu0 0.0
    %1783 = vmatmul.mubr.f32.gmra.mxu0 %v1117
    %v1784 = vpop.f32.mrf.mxu0
    %v1785 = vadd.f32 %v581, %v1784
    %v1786 = vpop.f32.mrf.mxu0
    %1787 = vdwg.mxu0
    %v1789 = vsel %vm279, %v251, 0
    %1791 = vmatprep.subr.mxu0 0.0
    %1792 = vmatpush1.xpose.msra.mxu0 0.0
    %1793 = vmatprep.subr.mxu0 0.0
    %1794 = vmatpush1.xpose.msra.mxu0 0.0
    %1795 = vmatprep.subr.mxu0 0.0
    %1796 = vmatpush1.xpose.msra.mxu0 0.0
    %1797 = vmatprep.subr.mxu0 0.0
    %1798 = vmatpush1.xpose.msra.mxu0 0.0
    %1799 = vmatprep.subr.mxu0 0.0
    %1800 = vmatpush1.xpose.msra.mxu0 0.0
    %1801 = vmatprep.subr.mxu0 0.0
    %1802 = vmatpush1.xpose.msra.mxu0 0.0
    %1803 = vmatprep.subr.mxu0 0.0
    %1804 = vmatpush1.xpose.msra.mxu0 0.0
    %1805 = vmatprep.subr.mxu0 0.0
    %1806 = vmatpush1.xpose.msra.mxu0 0.0
    %1807 = vmatprep.subr.mxu0 0.0
    %1808 = vmatpush1.xpose.msra.mxu0 0.0
    %1809 = vmatprep.subr.mxu0 0.0
    %1810 = vmatpush1.xpose.msra.mxu0 0.0
    %1811 = vmatprep.subr.mxu0 0.0
    %1812 = vmatpush1.xpose.msra.mxu0 0.0
    %1813 = vmatprep.subr.mxu0 0.0
    %1814 = vmatpush1.xpose.msra.mxu0 0.0
    %1815 = vmatprep.subr.mxu0 0.0
    %1816 = vmatpush1.xpose.msra.mxu0 0.0
    %1817 = vmatprep.subr.mxu0 0.0
    %1818 = vmatpush1.xpose.msra.mxu0 0.0
    %1819 = vmatprep.subr.mxu0 0.0
    %1820 = vmatpush1.xpose.msra.mxu0 0.0
    %1821 = vmatprep.subr.mxu0 0.0
    %1822 = vmatpush1.xpose.msra.mxu0 %v1789
    %1823 = vmatprep.subr.mxu0 0.0
    %1824 = vmatpush2.xpose.msra.mxu0 0.0
    %1825 = vmatprep.subr.mxu0 0.0
    %1826 = vmatpush2.xpose.msra.mxu0 0.0
    %1827 = vmatprep.subr.mxu0 0.0
    %1828 = vmatpush2.xpose.msra.mxu0 0.0
    %1829 = vmatprep.subr.mxu0 0.0
    %1830 = vmatpush2.xpose.msra.mxu0 0.0
    %1831 = vmatprep.subr.mxu0 0.0
    %1832 = vmatpush2.xpose.msra.mxu0 0.0
    %1833 = vmatprep.subr.mxu0 0.0
    %1834 = vmatpush2.xpose.msra.mxu0 0.0
    %1835 = vmatprep.subr.mxu0 0.0
    %1836 = vmatpush2.xpose.msra.mxu0 0.0
    %1837 = vmatprep.subr.mxu0 0.0
    %1838 = vmatpush2.xpose.msra.mxu0 0.0
    %1839 = vmatprep.subr.mxu0 0.0
    %1840 = vmatpush2.xpose.msra.mxu0 0.0
    %1841 = vmatprep.subr.mxu0 0.0
    %1842 = vmatpush2.xpose.msra.mxu0 0.0
    %1843 = vmatprep.subr.mxu0 0.0
    %1844 = vmatpush2.xpose.msra.mxu0 0.0
    %1845 = vmatprep.subr.mxu0 0.0
    %1846 = vmatpush2.xpose.msra.mxu0 0.0
    %1847 = vmatprep.subr.mxu0 0.0
    %1848 = vmatpush2.xpose.msra.mxu0 0.0
    %1849 = vmatprep.subr.mxu0 0.0
    %1850 = vmatpush2.xpose.msra.mxu0 0.0
    %1851 = vmatprep.subr.mxu0 0.0
    %1852 = vmatpush2.xpose.msra.mxu0 0.0
    %1853 = vmatprep.subr.mxu0 0.0
    %1854 = vmatpush2.xpose.msra.mxu0 0.0
    %1855 = vmatprep.mubr.f32.mxu0 0.0
    %1856 = vmatmul.mubr.f32.gmra.mxu0 %v1193
    %v1857 = vpop.f32.mrf.mxu0
    %v1858 = vadd.f32 %v657, %v1857
    %v1859 = vpop.f32.mrf.mxu0
    %1860 = vdwg.mxu0
    %v1862 = vsel %vm279, %v252, 0
    %1864 = vmatprep.subr.mxu0 0.0
    %1865 = vmatpush1.xpose.msra.mxu0 0.0
    %1866 = vmatprep.subr.mxu0 0.0
    %1867 = vmatpush1.xpose.msra.mxu0 0.0
    %1868 = vmatprep.subr.mxu0 0.0
    %1869 = vmatpush1.xpose.msra.mxu0 0.0
    %1870 = vmatprep.subr.mxu0 0.0
    %1871 = vmatpush1.xpose.msra.mxu0 0.0
    %1872 = vmatprep.subr.mxu0 0.0
    %1873 = vmatpush1.xpose.msra.mxu0 0.0
    %1874 = vmatprep.subr.mxu0 0.0
    %1875 = vmatpush1.xpose.msra.mxu0 0.0
    %1876 = vmatprep.subr.mxu0 0.0
    %1877 = vmatpush1.xpose.msra.mxu0 0.0
    %1878 = vmatprep.subr.mxu0 0.0
    %1879 = vmatpush1.xpose.msra.mxu0 0.0
    %1880 = vmatprep.subr.mxu0 0.0
    %1881 = vmatpush1.xpose.msra.mxu0 0.0
    %1882 = vmatprep.subr.mxu0 0.0
    %1883 = vmatpush1.xpose.msra.mxu0 0.0
    %1884 = vmatprep.subr.mxu0 0.0
    %1885 = vmatpush1.xpose.msra.mxu0 0.0
    %1886 = vmatprep.subr.mxu0 0.0
    %1887 = vmatpush1.xpose.msra.mxu0 0.0
    %1888 = vmatprep.subr.mxu0 0.0
    %1889 = vmatpush1.xpose.msra.mxu0 0.0
    %1890 = vmatprep.subr.mxu0 0.0
    %1891 = vmatpush1.xpose.msra.mxu0 0.0
    %1892 = vmatprep.subr.mxu0 0.0
    %1893 = vmatpush1.xpose.msra.mxu0 0.0
    %1894 = vmatprep.subr.mxu0 0.0
    %1895 = vmatpush1.xpose.msra.mxu0 %v1862
    %1896 = vmatprep.subr.mxu0 0.0
    %1897 = vmatpush2.xpose.msra.mxu0 0.0
    %1898 = vmatprep.subr.mxu0 0.0
    %1899 = vmatpush2.xpose.msra.mxu0 0.0
    %1900 = vmatprep.subr.mxu0 0.0
    %1901 = vmatpush2.xpose.msra.mxu0 0.0
    %1902 = vmatprep.subr.mxu0 0.0
    %1903 = vmatpush2.xpose.msra.mxu0 0.0
    %1904 = vmatprep.subr.mxu0 0.0
    %1905 = vmatpush2.xpose.msra.mxu0 0.0
    %1906 = vmatprep.subr.mxu0 0.0
    %1907 = vmatpush2.xpose.msra.mxu0 0.0
    %1908 = vmatprep.subr.mxu0 0.0
    %1909 = vmatpush2.xpose.msra.mxu0 0.0
    %1910 = vmatprep.subr.mxu0 0.0
    %1911 = vmatpush2.xpose.msra.mxu0 0.0
    %1912 = vmatprep.subr.mxu0 0.0
    %1913 = vmatpush2.xpose.msra.mxu0 0.0
    %1914 = vmatprep.subr.mxu0 0.0
    %1915 = vmatpush2.xpose.msra.mxu0 0.0
    %1916 = vmatprep.subr.mxu0 0.0
    %1917 = vmatpush2.xpose.msra.mxu0 0.0
    %1918 = vmatprep.subr.mxu0 0.0
    %1919 = vmatpush2.xpose.msra.mxu0 0.0
    %1920 = vmatprep.subr.mxu0 0.0
    %1921 = vmatpush2.xpose.msra.mxu0 0.0
    %1922 = vmatprep.subr.mxu0 0.0
    %1923 = vmatpush2.xpose.msra.mxu0 0.0
    %1924 = vmatprep.subr.mxu0 0.0
    %1925 = vmatpush2.xpose.msra.mxu0 0.0
    %1926 = vmatprep.subr.mxu0 0.0
    %1927 = vmatpush2.xpose.msra.mxu0 0.0
    %1928 = vmatprep.mubr.f32.mxu0 0.0
    %1929 = vmatmul.mubr.f32.gmra.mxu0 %v1269
    %v1930 = vpop.f32.mrf.mxu0
    %v1931 = vadd.f32 %v733, %v1930
    %v1932 = vpop.f32.mrf.mxu0
    %1933 = vdwg.mxu0
    %v1935 = vsel %vm279, %v253, 0
    %1937 = vmatprep.subr.mxu0 0.0
    %1938 = vmatpush1.xpose.msra.mxu0 0.0
    %1939 = vmatprep.subr.mxu0 0.0
    %1940 = vmatpush1.xpose.msra.mxu0 0.0
    %1941 = vmatprep.subr.mxu0 0.0
    %1942 = vmatpush1.xpose.msra.mxu0 0.0
    %1943 = vmatprep.subr.mxu0 0.0
    %1944 = vmatpush1.xpose.msra.mxu0 0.0
    %1945 = vmatprep.subr.mxu0 0.0
    %1946 = vmatpush1.xpose.msra.mxu0 0.0
    %1947 = vmatprep.subr.mxu0 0.0
    %1948 = vmatpush1.xpose.msra.mxu0 0.0
    %1949 = vmatprep.subr.mxu0 0.0
    %1950 = vmatpush1.xpose.msra.mxu0 0.0
    %1951 = vmatprep.subr.mxu0 0.0
    %1952 = vmatpush1.xpose.msra.mxu0 0.0
    %1953 = vmatprep.subr.mxu0 0.0
    %1954 = vmatpush1.xpose.msra.mxu0 0.0
    %1955 = vmatprep.subr.mxu0 0.0
    %1956 = vmatpush1.xpose.msra.mxu0 0.0
    %1957 = vmatprep.subr.mxu0 0.0
    %1958 = vmatpush1.xpose.msra.mxu0 0.0
    %1959 = vmatprep.subr.mxu0 0.0
    %1960 = vmatpush1.xpose.msra.mxu0 0.0
    %1961 = vmatprep.subr.mxu0 0.0
    %1962 = vmatpush1.xpose.msra.mxu0 0.0
    %1963 = vmatprep.subr.mxu0 0.0
    %1964 = vmatpush1.xpose.msra.mxu0 0.0
    %1965 = vmatprep.subr.mxu0 0.0
    %1966 = vmatpush1.xpose.msra.mxu0 0.0
    %1967 = vmatprep.subr.mxu0 0.0
    %1968 = vmatpush1.xpose.msra.mxu0 %v1935
    %1969 = vmatprep.subr.mxu0 0.0
    %1970 = vmatpush2.xpose.msra.mxu0 0.0
    %1971 = vmatprep.subr.mxu0 0.0
    %1972 = vmatpush2.xpose.msra.mxu0 0.0
    %1973 = vmatprep.subr.mxu0 0.0
    %1974 = vmatpush2.xpose.msra.mxu0 0.0
    %1975 = vmatprep.subr.mxu0 0.0
    %1976 = vmatpush2.xpose.msra.mxu0 0.0
    %1977 = vmatprep.subr.mxu0 0.0
    %1978 = vmatpush2.xpose.msra.mxu0 0.0
    %1979 = vmatprep.subr.mxu0 0.0
    %1980 = vmatpush2.xpose.msra.mxu0 0.0
    %1981 = vmatprep.subr.mxu0 0.0
    %1982 = vmatpush2.xpose.msra.mxu0 0.0
    %1983 = vmatprep.subr.mxu0 0.0
    %1984 = vmatpush2.xpose.msra.mxu0 0.0
    %1985 = vmatprep.subr.mxu0 0.0
    %1986 = vmatpush2.xpose.msra.mxu0 0.0
    %1987 = vmatprep.subr.mxu0 0.0
    %1988 = vmatpush2.xpose.msra.mxu0 0.0
    %1989 = vmatprep.subr.mxu0 0.0
    %1990 = vmatpush2.xpose.msra.mxu0 0.0
    %1991 = vmatprep.subr.mxu0 0.0
    %1992 = vmatpush2.xpose.msra.mxu0 0.0
    %1993 = vmatprep.subr.mxu0 0.0
    %1994 = vmatpush2.xpose.msra.mxu0 0.0
    %1995 = vmatprep.subr.mxu0 0.0
    %1996 = vmatpush2.xpose.msra.mxu0 0.0
    %1997 = vmatprep.subr.mxu0 0.0
    %1998 = vmatpush2.xpose.msra.mxu0 0.0
    %1999 = vmatprep.subr.mxu0 0.0
    %2000 = vmatpush2.xpose.msra.mxu0 0.0
    %2001 = vmatprep.mubr.f32.mxu0 0.0
    %2002 = vmatmul.mubr.f32.gmra.mxu0 %v1345
    %v2003 = vpop.f32.mrf.mxu0
    %v2004 = vadd.f32 %v809, %v2003
    %v2005 = vpop.f32.mrf.mxu0
    %2006 = vdwg.mxu0
    %v2008 = vsel %vm279, %v254, 0
    %2010 = vmatprep.subr.mxu0 0.0
    %2011 = vmatpush1.xpose.msra.mxu0 0.0
    %2012 = vmatprep.subr.mxu0 0.0
    %2013 = vmatpush1.xpose.msra.mxu0 0.0
    %2014 = vmatprep.subr.mxu0 0.0
    %2015 = vmatpush1.xpose.msra.mxu0 0.0
    %2016 = vmatprep.subr.mxu0 0.0
    %2017 = vmatpush1.xpose.msra.mxu0 0.0
    %2018 = vmatprep.subr.mxu0 0.0
    %2019 = vmatpush1.xpose.msra.mxu0 0.0
    %2020 = vmatprep.subr.mxu0 0.0
    %2021 = vmatpush1.xpose.msra.mxu0 0.0
    %2022 = vmatprep.subr.mxu0 0.0
    %2023 = vmatpush1.xpose.msra.mxu0 0.0
    %2024 = vmatprep.subr.mxu0 0.0
    %2025 = vmatpush1.xpose.msra.mxu0 0.0
    %2026 = vmatprep.subr.mxu0 0.0
    %2027 = vmatpush1.xpose.msra.mxu0 0.0
    %2028 = vmatprep.subr.mxu0 0.0
    %2029 = vmatpush1.xpose.msra.mxu0 0.0
    %2030 = vmatprep.subr.mxu0 0.0
    %2031 = vmatpush1.xpose.msra.mxu0 0.0
    %2032 = vmatprep.subr.mxu0 0.0
    %2033 = vmatpush1.xpose.msra.mxu0 0.0
    %2034 = vmatprep.subr.mxu0 0.0
    %2035 = vmatpush1.xpose.msra.mxu0 0.0
    %2036 = vmatprep.subr.mxu0 0.0
    %2037 = vmatpush1.xpose.msra.mxu0 0.0
    %2038 = vmatprep.subr.mxu0 0.0
    %2039 = vmatpush1.xpose.msra.mxu0 0.0
    %2040 = vmatprep.subr.mxu0 0.0
    %2041 = vmatpush1.xpose.msra.mxu0 %v2008
    %2042 = vmatprep.subr.mxu0 0.0
    %2043 = vmatpush2.xpose.msra.mxu0 0.0
    %2044 = vmatprep.subr.mxu0 0.0
    %2045 = vmatpush2.xpose.msra.mxu0 0.0
    %2046 = vmatprep.subr.mxu0 0.0
    %2047 = vmatpush2.xpose.msra.mxu0 0.0
    %2048 = vmatprep.subr.mxu0 0.0
    %2049 = vmatpush2.xpose.msra.mxu0 0.0
    %2050 = vmatprep.subr.mxu0 0.0
    %2051 = vmatpush2.xpose.msra.mxu0 0.0
    %2052 = vmatprep.subr.mxu0 0.0
    %2053 = vmatpush2.xpose.msra.mxu0 0.0
    %2054 = vmatprep.subr.mxu0 0.0
    %2055 = vmatpush2.xpose.msra.mxu0 0.0
    %2056 = vmatprep.subr.mxu0 0.0
    %2057 = vmatpush2.xpose.msra.mxu0 0.0
    %2058 = vmatprep.subr.mxu0 0.0
    %2059 = vmatpush2.xpose.msra.mxu0 0.0
    %2060 = vmatprep.subr.mxu0 0.0
    %2061 = vmatpush2.xpose.msra.mxu0 0.0
    %2062 = vmatprep.subr.mxu0 0.0
    %2063 = vmatpush2.xpose.msra.mxu0 0.0
    %2064 = vmatprep.subr.mxu0 0.0
    %2065 = vmatpush2.xpose.msra.mxu0 0.0
    %2066 = vmatprep.subr.mxu0 0.0
    %2067 = vmatpush2.xpose.msra.mxu0 0.0
    %2068 = vmatprep.subr.mxu0 0.0
    %2069 = vmatpush2.xpose.msra.mxu0 0.0
    %2070 = vmatprep.subr.mxu0 0.0
    %2071 = vmatpush2.xpose.msra.mxu0 0.0
    %2072 = vmatprep.subr.mxu0 0.0
    %2073 = vmatpush2.xpose.msra.mxu0 0.0
    %2074 = vmatprep.mubr.f32.mxu0 0.0
    %2075 = vmatmul.mubr.f32.gmra.mxu0 %v1421
    %v2076 = vpop.f32.mrf.mxu0
    %v2077 = vadd.f32 %v885, %v2076
    %v2078 = vpop.f32.mrf.mxu0
    %2079 = vdwg.mxu0
    %v2081 = vsel %vm279, %v255, 0
    %2083 = vmatprep.subr.mxu0 0.0
    %2084 = vmatpush1.xpose.msra.mxu0 0.0
    %2085 = vmatprep.subr.mxu0 0.0
    %2086 = vmatpush1.xpose.msra.mxu0 0.0
    %2087 = vmatprep.subr.mxu0 0.0
    %2088 = vmatpush1.xpose.msra.mxu0 0.0
    %2089 = vmatprep.subr.mxu0 0.0
    %2090 = vmatpush1.xpose.msra.mxu0 0.0
    %2091 = vmatprep.subr.mxu0 0.0
    %2092 = vmatpush1.xpose.msra.mxu0 0.0
    %2093 = vmatprep.subr.mxu0 0.0
    %2094 = vmatpush1.xpose.msra.mxu0 0.0
    %2095 = vmatprep.subr.mxu0 0.0
    %2096 = vmatpush1.xpose.msra.mxu0 0.0
    %2097 = vmatprep.subr.mxu0 0.0
    %2098 = vmatpush1.xpose.msra.mxu0 0.0
    %2099 = vmatprep.subr.mxu0 0.0
    %2100 = vmatpush1.xpose.msra.mxu0 0.0
    %2101 = vmatprep.subr.mxu0 0.0
    %2102 = vmatpush1.xpose.msra.mxu0 0.0
    %2103 = vmatprep.subr.mxu0 0.0
    %2104 = vmatpush1.xpose.msra.mxu0 0.0
    %2105 = vmatprep.subr.mxu0 0.0
    %2106 = vmatpush1.xpose.msra.mxu0 0.0
    %2107 = vmatprep.subr.mxu0 0.0
    %2108 = vmatpush1.xpose.msra.mxu0 0.0
    %2109 = vmatprep.subr.mxu0 0.0
    %2110 = vmatpush1.xpose.msra.mxu0 0.0
    %2111 = vmatprep.subr.mxu0 0.0
    %2112 = vmatpush1.xpose.msra.mxu0 0.0
    %2113 = vmatprep.subr.mxu0 0.0
    %2114 = vmatpush1.xpose.msra.mxu0 %v2081
    %2115 = vmatprep.subr.mxu0 0.0
    %2116 = vmatpush2.xpose.msra.mxu0 0.0
    %2117 = vmatprep.subr.mxu0 0.0
    %2118 = vmatpush2.xpose.msra.mxu0 0.0
    %2119 = vmatprep.subr.mxu0 0.0
    %2120 = vmatpush2.xpose.msra.mxu0 0.0
    %2121 = vmatprep.subr.mxu0 0.0
    %2122 = vmatpush2.xpose.msra.mxu0 0.0
    %2123 = vmatprep.subr.mxu0 0.0
    %2124 = vmatpush2.xpose.msra.mxu0 0.0
    %2125 = vmatprep.subr.mxu0 0.0
    %2126 = vmatpush2.xpose.msra.mxu0 0.0
    %2127 = vmatprep.subr.mxu0 0.0
    %2128 = vmatpush2.xpose.msra.mxu0 0.0
    %2129 = vmatprep.subr.mxu0 0.0
    %2130 = vmatpush2.xpose.msra.mxu0 0.0
    %2131 = vmatprep.subr.mxu0 0.0
    %2132 = vmatpush2.xpose.msra.mxu0 0.0
    %2133 = vmatprep.subr.mxu0 0.0
    %2134 = vmatpush2.xpose.msra.mxu0 0.0
    %2135 = vmatprep.subr.mxu0 0.0
    %2136 = vmatpush2.xpose.msra.mxu0 0.0
    %2137 = vmatprep.subr.mxu0 0.0
    %2138 = vmatpush2.xpose.msra.mxu0 0.0
    %2139 = vmatprep.subr.mxu0 0.0
    %2140 = vmatpush2.xpose.msra.mxu0 0.0
    %2141 = vmatprep.subr.mxu0 0.0
    %2142 = vmatpush2.xpose.msra.mxu0 0.0
    %2143 = vmatprep.subr.mxu0 0.0
    %2144 = vmatpush2.xpose.msra.mxu0 0.0
    %2145 = vmatprep.subr.mxu0 0.0
    %2146 = vmatpush2.xpose.msra.mxu0 0.0
    %2147 = vmatprep.mubr.f32.mxu0 0.0
    %2148 = vmatmul.mubr.f32.gmra.mxu0 %v281
    %v2149 = vpop.f32.mrf.mxu0
    %v2150 = vadd.f32 %v961, %v2149
    %v2151 = vpop.f32.mrf.mxu0
    %2152 = vdwg.mxu0
    %v2154 = vsel %vm279, %v256, 0
    %2156 = vmatprep.subr.mxu0 0.0
    %2157 = vmatpush1.xpose.msra.mxu0 0.0
    %2158 = vmatprep.subr.mxu0 0.0
    %2159 = vmatpush1.xpose.msra.mxu0 0.0
    %2160 = vmatprep.subr.mxu0 0.0
    %2161 = vmatpush1.xpose.msra.mxu0 0.0
    %2162 = vmatprep.subr.mxu0 0.0
    %2163 = vmatpush1.xpose.msra.mxu0 0.0
    %2164 = vmatprep.subr.mxu0 0.0
    %2165 = vmatpush1.xpose.msra.mxu0 0.0
    %2166 = vmatprep.subr.mxu0 0.0
    %2167 = vmatpush1.xpose.msra.mxu0 0.0
    %2168 = vmatprep.subr.mxu0 0.0
    %2169 = vmatpush1.xpose.msra.mxu0 0.0
    %2170 = vmatprep.subr.mxu0 0.0
    %2171 = vmatpush1.xpose.msra.mxu0 0.0
    %2172 = vmatprep.subr.mxu0 0.0
    %2173 = vmatpush1.xpose.msra.mxu0 0.0
    %2174 = vmatprep.subr.mxu0 0.0
    %2175 = vmatpush1.xpose.msra.mxu0 0.0
    %2176 = vmatprep.subr.mxu0 0.0
    %2177 = vmatpush1.xpose.msra.mxu0 0.0
    %2178 = vmatprep.subr.mxu0 0.0
    %2179 = vmatpush1.xpose.msra.mxu0 0.0
    %2180 = vmatprep.subr.mxu0 0.0
    %2181 = vmatpush1.xpose.msra.mxu0 0.0
    %2182 = vmatprep.subr.mxu0 0.0
    %2183 = vmatpush1.xpose.msra.mxu0 0.0
    %2184 = vmatprep.subr.mxu0 0.0
    %2185 = vmatpush1.xpose.msra.mxu0 0.0
    %2186 = vmatprep.subr.mxu0 0.0
    %2187 = vmatpush1.xpose.msra.mxu0 %v2154
    %2188 = vmatprep.subr.mxu0 0.0
    %2189 = vmatpush2.xpose.msra.mxu0 0.0
    %2190 = vmatprep.subr.mxu0 0.0
    %2191 = vmatpush2.xpose.msra.mxu0 0.0
    %2192 = vmatprep.subr.mxu0 0.0
    %2193 = vmatpush2.xpose.msra.mxu0 0.0
    %2194 = vmatprep.subr.mxu0 0.0
    %2195 = vmatpush2.xpose.msra.mxu0 0.0
    %2196 = vmatprep.subr.mxu0 0.0
    %2197 = vmatpush2.xpose.msra.mxu0 0.0
    %2198 = vmatprep.subr.mxu0 0.0
    %2199 = vmatpush2.xpose.msra.mxu0 0.0
    %2200 = vmatprep.subr.mxu0 0.0
    %2201 = vmatpush2.xpose.msra.mxu0 0.0
    %2202 = vmatprep.subr.mxu0 0.0
    %2203 = vmatpush2.xpose.msra.mxu0 0.0
    %2204 = vmatprep.subr.mxu0 0.0
    %2205 = vmatpush2.xpose.msra.mxu0 0.0
    %2206 = vmatprep.subr.mxu0 0.0
    %2207 = vmatpush2.xpose.msra.mxu0 0.0
    %2208 = vmatprep.subr.mxu0 0.0
    %2209 = vmatpush2.xpose.msra.mxu0 0.0
    %2210 = vmatprep.subr.mxu0 0.0
    %2211 = vmatpush2.xpose.msra.mxu0 0.0
    %2212 = vmatprep.subr.mxu0 0.0
    %2213 = vmatpush2.xpose.msra.mxu0 0.0
    %2214 = vmatprep.subr.mxu0 0.0
    %2215 = vmatpush2.xpose.msra.mxu0 0.0
    %2216 = vmatprep.subr.mxu0 0.0
    %2217 = vmatpush2.xpose.msra.mxu0 0.0
    %2218 = vmatprep.subr.mxu0 0.0
    %2219 = vmatpush2.xpose.msra.mxu0 0.0
    %2220 = vmatprep.mubr.f32.mxu0 0.0
    %2221 = vmatmul.mubr.f32.gmra.mxu0 %v357
    %v2222 = vpop.f32.mrf.mxu0
    %v2223 = vadd.f32 %v1037, %v2222
    %v2224 = vpop.f32.mrf.mxu0
    %2225 = vdwg.mxu0
    %v2227 = vsel %vm279, %v257, 0
    %2229 = vmatprep.subr.mxu0 0.0
    %2230 = vmatpush1.xpose.msra.mxu0 0.0
    %2231 = vmatprep.subr.mxu0 0.0
    %2232 = vmatpush1.xpose.msra.mxu0 0.0
    %2233 = vmatprep.subr.mxu0 0.0
    %2234 = vmatpush1.xpose.msra.mxu0 0.0
    %2235 = vmatprep.subr.mxu0 0.0
    %2236 = vmatpush1.xpose.msra.mxu0 0.0
    %2237 = vmatprep.subr.mxu0 0.0
    %2238 = vmatpush1.xpose.msra.mxu0 0.0
    %2239 = vmatprep.subr.mxu0 0.0
    %2240 = vmatpush1.xpose.msra.mxu0 0.0
    %2241 = vmatprep.subr.mxu0 0.0
    %2242 = vmatpush1.xpose.msra.mxu0 0.0
    %2243 = vmatprep.subr.mxu0 0.0
    %2244 = vmatpush1.xpose.msra.mxu0 0.0
    %2245 = vmatprep.subr.mxu0 0.0
    %2246 = vmatpush1.xpose.msra.mxu0 0.0
    %2247 = vmatprep.subr.mxu0 0.0
    %2248 = vmatpush1.xpose.msra.mxu0 0.0
    %2249 = vmatprep.subr.mxu0 0.0
    %2250 = vmatpush1.xpose.msra.mxu0 0.0
    %2251 = vmatprep.subr.mxu0 0.0
    %2252 = vmatpush1.xpose.msra.mxu0 0.0
    %2253 = vmatprep.subr.mxu0 0.0
    %2254 = vmatpush1.xpose.msra.mxu0 0.0
    %2255 = vmatprep.subr.mxu0 0.0
    %2256 = vmatpush1.xpose.msra.mxu0 0.0
    %2257 = vmatprep.subr.mxu0 0.0
    %2258 = vmatpush1.xpose.msra.mxu0 0.0
    %2259 = vmatprep.subr.mxu0 0.0
    %2260 = vmatpush1.xpose.msra.mxu0 %v2227
    %2261 = vmatprep.subr.mxu0 0.0
    %2262 = vmatpush2.xpose.msra.mxu0 0.0
    %2263 = vmatprep.subr.mxu0 0.0
    %2264 = vmatpush2.xpose.msra.mxu0 0.0
    %2265 = vmatprep.subr.mxu0 0.0
    %2266 = vmatpush2.xpose.msra.mxu0 0.0
    %2267 = vmatprep.subr.mxu0 0.0
    %2268 = vmatpush2.xpose.msra.mxu0 0.0
    %2269 = vmatprep.subr.mxu0 0.0
    %2270 = vmatpush2.xpose.msra.mxu0 0.0
    %2271 = vmatprep.subr.mxu0 0.0
    %2272 = vmatpush2.xpose.msra.mxu0 0.0
    %2273 = vmatprep.subr.mxu0 0.0
    %2274 = vmatpush2.xpose.msra.mxu0 0.0
    %2275 = vmatprep.subr.mxu0 0.0
    %2276 = vmatpush2.xpose.msra.mxu0 0.0
    %2277 = vmatprep.subr.mxu0 0.0
    %2278 = vmatpush2.xpose.msra.mxu0 0.0
    %2279 = vmatprep.subr.mxu0 0.0
    %2280 = vmatpush2.xpose.msra.mxu0 0.0
    %2281 = vmatprep.subr.mxu0 0.0
    %2282 = vmatpush2.xpose.msra.mxu0 0.0
    %2283 = vmatprep.subr.mxu0 0.0
    %2284 = vmatpush2.xpose.msra.mxu0 0.0
    %2285 = vmatprep.subr.mxu0 0.0
    %2286 = vmatpush2.xpose.msra.mxu0 0.0
    %2287 = vmatprep.subr.mxu0 0.0
    %2288 = vmatpush2.xpose.msra.mxu0 0.0
    %2289 = vmatprep.subr.mxu0 0.0
    %2290 = vmatpush2.xpose.msra.mxu0 0.0
    %2291 = vmatprep.subr.mxu0 0.0
    %2292 = vmatpush2.xpose.msra.mxu0 0.0
    %2293 = vmatprep.mubr.f32.mxu0 0.0
    %2294 = vmatmul.mubr.f32.gmra.mxu0 %v433
    %v2295 = vpop.f32.mrf.mxu0
    %v2296 = vadd.f32 %v1113, %v2295
    %v2297 = vpop.f32.mrf.mxu0
    %2298 = vdwg.mxu0
    %v2300 = vsel %vm279, %v258, 0
    %2302 = vmatprep.subr.mxu0 0.0
    %2303 = vmatpush1.xpose.msra.mxu0 0.0
    %2304 = vmatprep.subr.mxu0 0.0
    %2305 = vmatpush1.xpose.msra.mxu0 0.0
    %2306 = vmatprep.subr.mxu0 0.0
    %2307 = vmatpush1.xpose.msra.mxu0 0.0
    %2308 = vmatprep.subr.mxu0 0.0
    %2309 = vmatpush1.xpose.msra.mxu0 0.0
    %2310 = vmatprep.subr.mxu0 0.0
    %2311 = vmatpush1.xpose.msra.mxu0 0.0
    %2312 = vmatprep.subr.mxu0 0.0
    %2313 = vmatpush1.xpose.msra.mxu0 0.0
    %2314 = vmatprep.subr.mxu0 0.0
    %2315 = vmatpush1.xpose.msra.mxu0 0.0
    %2316 = vmatprep.subr.mxu0 0.0
    %2317 = vmatpush1.xpose.msra.mxu0 0.0
    %2318 = vmatprep.subr.mxu0 0.0
    %2319 = vmatpush1.xpose.msra.mxu0 0.0
    %2320 = vmatprep.subr.mxu0 0.0
    %2321 = vmatpush1.xpose.msra.mxu0 0.0
    %2322 = vmatprep.subr.mxu0 0.0
    %2323 = vmatpush1.xpose.msra.mxu0 0.0
    %2324 = vmatprep.subr.mxu0 0.0
    %2325 = vmatpush1.xpose.msra.mxu0 0.0
    %2326 = vmatprep.subr.mxu0 0.0
    %2327 = vmatpush1.xpose.msra.mxu0 0.0
    %2328 = vmatprep.subr.mxu0 0.0
    %2329 = vmatpush1.xpose.msra.mxu0 0.0
    %2330 = vmatprep.subr.mxu0 0.0
    %2331 = vmatpush1.xpose.msra.mxu0 0.0
    %2332 = vmatprep.subr.mxu0 0.0
    %2333 = vmatpush1.xpose.msra.mxu0 %v2300
    %2334 = vmatprep.subr.mxu0 0.0
    %2335 = vmatpush2.xpose.msra.mxu0 0.0
    %2336 = vmatprep.subr.mxu0 0.0
    %2337 = vmatpush2.xpose.msra.mxu0 0.0
    %2338 = vmatprep.subr.mxu0 0.0
    %2339 = vmatpush2.xpose.msra.mxu0 0.0
    %2340 = vmatprep.subr.mxu0 0.0
    %2341 = vmatpush2.xpose.msra.mxu0 0.0
    %2342 = vmatprep.subr.mxu0 0.0
    %2343 = vmatpush2.xpose.msra.mxu0 0.0
    %2344 = vmatprep.subr.mxu0 0.0
    %2345 = vmatpush2.xpose.msra.mxu0 0.0
    %2346 = vmatprep.subr.mxu0 0.0
    %2347 = vmatpush2.xpose.msra.mxu0 0.0
    %2348 = vmatprep.subr.mxu0 0.0
    %2349 = vmatpush2.xpose.msra.mxu0 0.0
    %2350 = vmatprep.subr.mxu0 0.0
    %2351 = vmatpush2.xpose.msra.mxu0 0.0
    %2352 = vmatprep.subr.mxu0 0.0
    %2353 = vmatpush2.xpose.msra.mxu0 0.0
    %2354 = vmatprep.subr.mxu0 0.0
    %2355 = vmatpush2.xpose.msra.mxu0 0.0
    %2356 = vmatprep.subr.mxu0 0.0
    %2357 = vmatpush2.xpose.msra.mxu0 0.0
    %2358 = vmatprep.subr.mxu0 0.0
    %2359 = vmatpush2.xpose.msra.mxu0 0.0
    %2360 = vmatprep.subr.mxu0 0.0
    %2361 = vmatpush2.xpose.msra.mxu0 0.0
    %2362 = vmatprep.subr.mxu0 0.0
    %2363 = vmatpush2.xpose.msra.mxu0 0.0
    %2364 = vmatprep.subr.mxu0 0.0
    %2365 = vmatpush2.xpose.msra.mxu0 0.0
    %2366 = vmatprep.mubr.f32.mxu0 0.0
    %2367 = vmatmul.mubr.f32.gmra.mxu0 %v509
    %v2368 = vpop.f32.mrf.mxu0
    %v2369 = vadd.f32 %v1189, %v2368
    %v2370 = vpop.f32.mrf.mxu0
    %2371 = vdwg.mxu0
    %v2373 = vsel %vm279, %v259, 0
    %2375 = vmatprep.subr.mxu0 0.0
    %2376 = vmatpush1.xpose.msra.mxu0 0.0
    %2377 = vmatprep.subr.mxu0 0.0
    %2378 = vmatpush1.xpose.msra.mxu0 0.0
    %2379 = vmatprep.subr.mxu0 0.0
    %2380 = vmatpush1.xpose.msra.mxu0 0.0
    %2381 = vmatprep.subr.mxu0 0.0
    %2382 = vmatpush1.xpose.msra.mxu0 0.0
    %2383 = vmatprep.subr.mxu0 0.0
    %2384 = vmatpush1.xpose.msra.mxu0 0.0
    %2385 = vmatprep.subr.mxu0 0.0
    %2386 = vmatpush1.xpose.msra.mxu0 0.0
    %2387 = vmatprep.subr.mxu0 0.0
    %2388 = vmatpush1.xpose.msra.mxu0 0.0
    %2389 = vmatprep.subr.mxu0 0.0
    %2390 = vmatpush1.xpose.msra.mxu0 0.0
    %2391 = vmatprep.subr.mxu0 0.0
    %2392 = vmatpush1.xpose.msra.mxu0 0.0
    %2393 = vmatprep.subr.mxu0 0.0
    %2394 = vmatpush1.xpose.msra.mxu0 0.0
    %2395 = vmatprep.subr.mxu0 0.0
    %2396 = vmatpush1.xpose.msra.mxu0 0.0
    %2397 = vmatprep.subr.mxu0 0.0
    %2398 = vmatpush1.xpose.msra.mxu0 0.0
    %2399 = vmatprep.subr.mxu0 0.0
    %2400 = vmatpush1.xpose.msra.mxu0 0.0
    %2401 = vmatprep.subr.mxu0 0.0
    %2402 = vmatpush1.xpose.msra.mxu0 0.0
    %2403 = vmatprep.subr.mxu0 0.0
    %2404 = vmatpush1.xpose.msra.mxu0 0.0
    %2405 = vmatprep.subr.mxu0 0.0
    %2406 = vmatpush1.xpose.msra.mxu0 %v2373
    %2407 = vmatprep.subr.mxu0 0.0
    %2408 = vmatpush2.xpose.msra.mxu0 0.0
    %2409 = vmatprep.subr.mxu0 0.0
    %2410 = vmatpush2.xpose.msra.mxu0 0.0
    %2411 = vmatprep.subr.mxu0 0.0
    %2412 = vmatpush2.xpose.msra.mxu0 0.0
    %2413 = vmatprep.subr.mxu0 0.0
    %2414 = vmatpush2.xpose.msra.mxu0 0.0
    %2415 = vmatprep.subr.mxu0 0.0
    %2416 = vmatpush2.xpose.msra.mxu0 0.0
    %2417 = vmatprep.subr.mxu0 0.0
    %2418 = vmatpush2.xpose.msra.mxu0 0.0
    %2419 = vmatprep.subr.mxu0 0.0
    %2420 = vmatpush2.xpose.msra.mxu0 0.0
    %2421 = vmatprep.subr.mxu0 0.0
    %2422 = vmatpush2.xpose.msra.mxu0 0.0
    %2423 = vmatprep.subr.mxu0 0.0
    %2424 = vmatpush2.xpose.msra.mxu0 0.0
    %2425 = vmatprep.subr.mxu0 0.0
    %2426 = vmatpush2.xpose.msra.mxu0 0.0
    %2427 = vmatprep.subr.mxu0 0.0
    %2428 = vmatpush2.xpose.msra.mxu0 0.0
    %2429 = vmatprep.subr.mxu0 0.0
    %2430 = vmatpush2.xpose.msra.mxu0 0.0
    %2431 = vmatprep.subr.mxu0 0.0
    %2432 = vmatpush2.xpose.msra.mxu0 0.0
    %2433 = vmatprep.subr.mxu0 0.0
    %2434 = vmatpush2.xpose.msra.mxu0 0.0
    %2435 = vmatprep.subr.mxu0 0.0
    %2436 = vmatpush2.xpose.msra.mxu0 0.0
    %2437 = vmatprep.subr.mxu0 0.0
    %2438 = vmatpush2.xpose.msra.mxu0 0.0
    %2439 = vmatprep.mubr.f32.mxu0 0.0
    %2440 = vmatmul.mubr.f32.gmra.mxu0 %v585
    %v2441 = vpop.f32.mrf.mxu0
    %v2442 = vadd.f32 %v1265, %v2441
    %v2443 = vpop.f32.mrf.mxu0
    %2444 = vdwg.mxu0
    %v2446 = vsel %vm279, %v260, 0
    %2448 = vmatprep.subr.mxu0 0.0
    %2449 = vmatpush1.xpose.msra.mxu0 0.0
    %2450 = vmatprep.subr.mxu0 0.0
    %2451 = vmatpush1.xpose.msra.mxu0 0.0
    %2452 = vmatprep.subr.mxu0 0.0
    %2453 = vmatpush1.xpose.msra.mxu0 0.0
    %2454 = vmatprep.subr.mxu0 0.0
    %2455 = vmatpush1.xpose.msra.mxu0 0.0
    %2456 = vmatprep.subr.mxu0 0.0
    %2457 = vmatpush1.xpose.msra.mxu0 0.0
    %2458 = vmatprep.subr.mxu0 0.0
    %2459 = vmatpush1.xpose.msra.mxu0 0.0
    %2460 = vmatprep.subr.mxu0 0.0
    %2461 = vmatpush1.xpose.msra.mxu0 0.0
    %2462 = vmatprep.subr.mxu0 0.0
    %2463 = vmatpush1.xpose.msra.mxu0 0.0
    %2464 = vmatprep.subr.mxu0 0.0
    %2465 = vmatpush1.xpose.msra.mxu0 0.0
    %2466 = vmatprep.subr.mxu0 0.0
    %2467 = vmatpush1.xpose.msra.mxu0 0.0
    %2468 = vmatprep.subr.mxu0 0.0
    %2469 = vmatpush1.xpose.msra.mxu0 0.0
    %2470 = vmatprep.subr.mxu0 0.0
    %2471 = vmatpush1.xpose.msra.mxu0 0.0
    %2472 = vmatprep.subr.mxu0 0.0
    %2473 = vmatpush1.xpose.msra.mxu0 0.0
    %2474 = vmatprep.subr.mxu0 0.0
    %2475 = vmatpush1.xpose.msra.mxu0 0.0
    %2476 = vmatprep.subr.mxu0 0.0
    %2477 = vmatpush1.xpose.msra.mxu0 0.0
    %2478 = vmatprep.subr.mxu0 0.0
    %2479 = vmatpush1.xpose.msra.mxu0 %v2446
    %2480 = vmatprep.subr.mxu0 0.0
    %2481 = vmatpush2.xpose.msra.mxu0 0.0
    %2482 = vmatprep.subr.mxu0 0.0
    %2483 = vmatpush2.xpose.msra.mxu0 0.0
    %2484 = vmatprep.subr.mxu0 0.0
    %2485 = vmatpush2.xpose.msra.mxu0 0.0
    %2486 = vmatprep.subr.mxu0 0.0
    %2487 = vmatpush2.xpose.msra.mxu0 0.0
    %2488 = vmatprep.subr.mxu0 0.0
    %2489 = vmatpush2.xpose.msra.mxu0 0.0
    %2490 = vmatprep.subr.mxu0 0.0
    %2491 = vmatpush2.xpose.msra.mxu0 0.0
    %2492 = vmatprep.subr.mxu0 0.0
    %2493 = vmatpush2.xpose.msra.mxu0 0.0
    %2494 = vmatprep.subr.mxu0 0.0
    %2495 = vmatpush2.xpose.msra.mxu0 0.0
    %2496 = vmatprep.subr.mxu0 0.0
    %2497 = vmatpush2.xpose.msra.mxu0 0.0
    %2498 = vmatprep.subr.mxu0 0.0
    %2499 = vmatpush2.xpose.msra.mxu0 0.0
    %2500 = vmatprep.subr.mxu0 0.0
    %2501 = vmatpush2.xpose.msra.mxu0 0.0
    %2502 = vmatprep.subr.mxu0 0.0
    %2503 = vmatpush2.xpose.msra.mxu0 0.0
    %2504 = vmatprep.subr.mxu0 0.0
    %2505 = vmatpush2.xpose.msra.mxu0 0.0
    %2506 = vmatprep.subr.mxu0 0.0
    %2507 = vmatpush2.xpose.msra.mxu0 0.0
    %2508 = vmatprep.subr.mxu0 0.0
    %2509 = vmatpush2.xpose.msra.mxu0 0.0
    %2510 = vmatprep.subr.mxu0 0.0
    %2511 = vmatpush2.xpose.msra.mxu0 0.0
    %2512 = vmatprep.mubr.f32.mxu0 0.0
    %2513 = vmatmul.mubr.f32.gmra.mxu0 %v661
    %v2514 = vpop.f32.mrf.mxu0
    %v2515 = vadd.f32 %v1341, %v2514
    %v2516 = vpop.f32.mrf.mxu0
    %2517 = vdwg.mxu0
    %v2519 = vsel %vm279, %v261, 0
    %2521 = vmatprep.subr.mxu0 0.0
    %2522 = vmatpush1.xpose.msra.mxu0 0.0
    %2523 = vmatprep.subr.mxu0 0.0
    %2524 = vmatpush1.xpose.msra.mxu0 0.0
    %2525 = vmatprep.subr.mxu0 0.0
    %2526 = vmatpush1.xpose.msra.mxu0 0.0
    %2527 = vmatprep.subr.mxu0 0.0
    %2528 = vmatpush1.xpose.msra.mxu0 0.0
    %2529 = vmatprep.subr.mxu0 0.0
    %2530 = vmatpush1.xpose.msra.mxu0 0.0
    %2531 = vmatprep.subr.mxu0 0.0
    %2532 = vmatpush1.xpose.msra.mxu0 0.0
    %2533 = vmatprep.subr.mxu0 0.0
    %2534 = vmatpush1.xpose.msra.mxu0 0.0
    %2535 = vmatprep.subr.mxu0 0.0
    %2536 = vmatpush1.xpose.msra.mxu0 0.0
    %2537 = vmatprep.subr.mxu0 0.0
    %2538 = vmatpush1.xpose.msra.mxu0 0.0
    %2539 = vmatprep.subr.mxu0 0.0
    %2540 = vmatpush1.xpose.msra.mxu0 0.0
    %2541 = vmatprep.subr.mxu0 0.0
    %2542 = vmatpush1.xpose.msra.mxu0 0.0
    %2543 = vmatprep.subr.mxu0 0.0
    %2544 = vmatpush1.xpose.msra.mxu0 0.0
    %2545 = vmatprep.subr.mxu0 0.0
    %2546 = vmatpush1.xpose.msra.mxu0 0.0
    %2547 = vmatprep.subr.mxu0 0.0
    %2548 = vmatpush1.xpose.msra.mxu0 0.0
    %2549 = vmatprep.subr.mxu0 0.0
    %2550 = vmatpush1.xpose.msra.mxu0 0.0
    %2551 = vmatprep.subr.mxu0 0.0
    %2552 = vmatpush1.xpose.msra.mxu0 %v2519
    %2553 = vmatprep.subr.mxu0 0.0
    %2554 = vmatpush2.xpose.msra.mxu0 0.0
    %2555 = vmatprep.subr.mxu0 0.0
    %2556 = vmatpush2.xpose.msra.mxu0 0.0
    %2557 = vmatprep.subr.mxu0 0.0
    %2558 = vmatpush2.xpose.msra.mxu0 0.0
    %2559 = vmatprep.subr.mxu0 0.0
    %2560 = vmatpush2.xpose.msra.mxu0 0.0
    %2561 = vmatprep.subr.mxu0 0.0
    %2562 = vmatpush2.xpose.msra.mxu0 0.0
    %2563 = vmatprep.subr.mxu0 0.0
    %2564 = vmatpush2.xpose.msra.mxu0 0.0
    %2565 = vmatprep.subr.mxu0 0.0
    %2566 = vmatpush2.xpose.msra.mxu0 0.0
    %2567 = vmatprep.subr.mxu0 0.0
    %2568 = vmatpush2.xpose.msra.mxu0 0.0
    %2569 = vmatprep.subr.mxu0 0.0
    %2570 = vmatpush2.xpose.msra.mxu0 0.0
    %2571 = vmatprep.subr.mxu0 0.0
    %2572 = vmatpush2.xpose.msra.mxu0 0.0
    %2573 = vmatprep.subr.mxu0 0.0
    %2574 = vmatpush2.xpose.msra.mxu0 0.0
    %2575 = vmatprep.subr.mxu0 0.0
    %2576 = vmatpush2.xpose.msra.mxu0 0.0
    %2577 = vmatprep.subr.mxu0 0.0
    %2578 = vmatpush2.xpose.msra.mxu0 0.0
    %2579 = vmatprep.subr.mxu0 0.0
    %2580 = vmatpush2.xpose.msra.mxu0 0.0
    %2581 = vmatprep.subr.mxu0 0.0
    %2582 = vmatpush2.xpose.msra.mxu0 0.0
    %2583 = vmatprep.subr.mxu0 0.0
    %2584 = vmatpush2.xpose.msra.mxu0 0.0
    %2585 = vmatprep.mubr.f32.mxu0 0.0
    %2586 = vmatmul.mubr.f32.gmra.mxu0 %v737
    %v2587 = vpop.f32.mrf.mxu0
    %v2588 = vadd.f32 %v1417, %v2587
    %v2589 = vpop.f32.mrf.mxu0
    %2590 = vdwg.mxu0
    %v2592 = vsel %vm279, %v262, 0
    %2594 = vmatprep.subr.mxu0 0.0
    %2595 = vmatpush1.xpose.msra.mxu0 0.0
    %2596 = vmatprep.subr.mxu0 0.0
    %2597 = vmatpush1.xpose.msra.mxu0 0.0
    %2598 = vmatprep.subr.mxu0 0.0
    %2599 = vmatpush1.xpose.msra.mxu0 0.0
    %2600 = vmatprep.subr.mxu0 0.0
    %2601 = vmatpush1.xpose.msra.mxu0 0.0
    %2602 = vmatprep.subr.mxu0 0.0
    %2603 = vmatpush1.xpose.msra.mxu0 0.0
    %2604 = vmatprep.subr.mxu0 0.0
    %2605 = vmatpush1.xpose.msra.mxu0 0.0
    %2606 = vmatprep.subr.mxu0 0.0
    %2607 = vmatpush1.xpose.msra.mxu0 0.0
    %2608 = vmatprep.subr.mxu0 0.0
    %2609 = vmatpush1.xpose.msra.mxu0 0.0
    %2610 = vmatprep.subr.mxu0 0.0
    %2611 = vmatpush1.xpose.msra.mxu0 0.0
    %2612 = vmatprep.subr.mxu0 0.0
    %2613 = vmatpush1.xpose.msra.mxu0 0.0
    %2614 = vmatprep.subr.mxu0 0.0
    %2615 = vmatpush1.xpose.msra.mxu0 0.0
    %2616 = vmatprep.subr.mxu0 0.0
    %2617 = vmatpush1.xpose.msra.mxu0 0.0
    %2618 = vmatprep.subr.mxu0 0.0
    %2619 = vmatpush1.xpose.msra.mxu0 0.0
    %2620 = vmatprep.subr.mxu0 0.0
    %2621 = vmatpush1.xpose.msra.mxu0 0.0
    %2622 = vmatprep.subr.mxu0 0.0
    %2623 = vmatpush1.xpose.msra.mxu0 0.0
    %2624 = vmatprep.subr.mxu0 0.0
    %2625 = vmatpush1.xpose.msra.mxu0 %v2592
    %2626 = vmatprep.subr.mxu0 0.0
    %2627 = vmatpush2.xpose.msra.mxu0 0.0
    %2628 = vmatprep.subr.mxu0 0.0
    %2629 = vmatpush2.xpose.msra.mxu0 0.0
    %2630 = vmatprep.subr.mxu0 0.0
    %2631 = vmatpush2.xpose.msra.mxu0 0.0
    %2632 = vmatprep.subr.mxu0 0.0
    %2633 = vmatpush2.xpose.msra.mxu0 0.0
    %2634 = vmatprep.subr.mxu0 0.0
    %2635 = vmatpush2.xpose.msra.mxu0 0.0
    %2636 = vmatprep.subr.mxu0 0.0
    %2637 = vmatpush2.xpose.msra.mxu0 0.0
    %2638 = vmatprep.subr.mxu0 0.0
    %2639 = vmatpush2.xpose.msra.mxu0 0.0
    %2640 = vmatprep.subr.mxu0 0.0
    %2641 = vmatpush2.xpose.msra.mxu0 0.0
    %2642 = vmatprep.subr.mxu0 0.0
    %2643 = vmatpush2.xpose.msra.mxu0 0.0
    %2644 = vmatprep.subr.mxu0 0.0
    %2645 = vmatpush2.xpose.msra.mxu0 0.0
    %2646 = vmatprep.subr.mxu0 0.0
    %2647 = vmatpush2.xpose.msra.mxu0 0.0
    %2648 = vmatprep.subr.mxu0 0.0
    %2649 = vmatpush2.xpose.msra.mxu0 0.0
    %2650 = vmatprep.subr.mxu0 0.0
    %2651 = vmatpush2.xpose.msra.mxu0 0.0
    %2652 = vmatprep.subr.mxu0 0.0
    %2653 = vmatpush2.xpose.msra.mxu0 0.0
    %2654 = vmatprep.subr.mxu0 0.0
    %2655 = vmatpush2.xpose.msra.mxu0 0.0
    %2656 = vmatprep.subr.mxu0 0.0
    %2657 = vmatpush2.xpose.msra.mxu0 0.0
    %2658 = vmatprep.mubr.f32.mxu0 0.0
    %2659 = vmatmul.mubr.f32.gmra.mxu0 %v813
    %v2660 = vpop.f32.mrf.mxu0
    %v2661 = vadd.f32 %v1493, %v2660
    %v2662 = vpop.f32.mrf.mxu0
    %2663 = vdwg.mxu0
    %v2664 = vcombine.low %v1566, %v1712
    %v2666 = vunpack.c.l.s4 1983009808
    %v2667 = vunpack.c.0.s8 %v2666
    %v2668 = vlaneseq
    %v2669 = vshrl.u32 %v2668, 7
    %v2670 = vsub.s32 %v2667, %v2669
    %v2671 = vrot.slane %v2664, %v2670
    %v2672 = vcombine.low %v1639, %v1785
    %v2674 = vunpack.c.l.s4 1983009808
    %v2675 = vunpack.c.0.s8 %v2674
    %v2676 = vlaneseq
    %v2677 = vshrl.u32 %v2676, 7
    %v2678 = vsub.s32 %v2675, %v2677
    %v2679 = vrot.slane %v2672, %v2678
    %v2680 = vcombine.low %v1858, %v2004
    %v2682 = vunpack.c.l.s4 1983009808
    %v2683 = vunpack.c.0.s8 %v2682
    %v2684 = vlaneseq
    %v2685 = vshrl.u32 %v2684, 7
    %v2686 = vsub.s32 %v2683, %v2685
    %v2687 = vrot.slane %v2680, %v2686
    %v2688 = vcombine.low %v1931, %v2077
    %v2690 = vunpack.c.l.s4 1983009808
    %v2691 = vunpack.c.0.s8 %v2690
    %v2692 = vlaneseq
    %v2693 = vshrl.u32 %v2692, 7
    %v2694 = vsub.s32 %v2691, %v2693
    %v2695 = vrot.slane %v2688, %v2694
    %v2696 = vcombine.low %v2671, %v2679
    %v2698 = vunpack.c.l.s4 1934713408
    %v2699 = vunpack.c.0.s8 %v2698
    %v2700 = vlaneseq
    %v2701 = vshrl.u32 %v2700, 7
    %v2702 = vsub.s32 %v2699, %v2701
    %v2703 = vrot.slane %v2696, %v2702
    %v2704 = vcombine.low %v2687, %v2695
    %v2706 = vunpack.c.l.s4 1934713408
    %v2707 = vunpack.c.0.s8 %v2706
    %v2708 = vlaneseq
    %v2709 = vshrl.u32 %v2708, 7
    %v2710 = vsub.s32 %v2707, %v2709
    %v2711 = vrot.slane %v2704, %v2710
    %v2712 = vcombine.low %v2703, %v2711
    %v2713 = vcombine.high %v2703, %v2711
    %v2714 = vcombine.low %v2150, %v2296
    %v2716 = vunpack.c.l.s4 1983009808
    %v2717 = vunpack.c.0.s8 %v2716
    %v2718 = vlaneseq
    %v2719 = vshrl.u32 %v2718, 7
    %v2720 = vsub.s32 %v2717, %v2719
    %v2721 = vrot.slane %v2714, %v2720
    %v2722 = vcombine.low %v2223, %v2369
    %v2724 = vunpack.c.l.s4 1983009808
    %v2725 = vunpack.c.0.s8 %v2724
    %v2726 = vlaneseq
    %v2727 = vshrl.u32 %v2726, 7
    %v2728 = vsub.s32 %v2725, %v2727
    %v2729 = vrot.slane %v2722, %v2728
    %v2730 = vcombine.low %v2442, %v2588
    %v2732 = vunpack.c.l.s4 1983009808
    %v2733 = vunpack.c.0.s8 %v2732
    %v2734 = vlaneseq
    %v2735 = vshrl.u32 %v2734, 7
    %v2736 = vsub.s32 %v2733, %v2735
    %v2737 = vrot.slane %v2730, %v2736
    %v2738 = vcombine.low %v2515, %v2661
    %v2740 = vunpack.c.l.s4 1983009808
    %v2741 = vunpack.c.0.s8 %v2740
    %v2742 = vlaneseq
    %v2743 = vshrl.u32 %v2742, 7
    %v2744 = vsub.s32 %v2741, %v2743
    %v2745 = vrot.slane %v2738, %v2744
    %v2746 = vcombine.low %v2721, %v2729
    %v2748 = vunpack.c.l.s4 1934713408
    %v2749 = vunpack.c.0.s8 %v2748
    %v2750 = vlaneseq
    %v2751 = vshrl.u32 %v2750, 7
    %v2752 = vsub.s32 %v2749, %v2751
    %v2753 = vrot.slane %v2746, %v2752
    %v2754 = vcombine.low %v2737, %v2745
    %v2756 = vunpack.c.l.s4 1934713408
    %v2757 = vunpack.c.0.s8 %v2756
    %v2758 = vlaneseq
    %v2759 = vshrl.u32 %v2758, 7
    %v2760 = vsub.s32 %v2757, %v2759
    %v2761 = vrot.slane %v2754, %v2760
    %v2762 = vcombine.low %v2753, %v2761
    %v2763 = vcombine.high %v2753, %v2761
    %2766 = vrot.lane.b32.xlu0 %v2713, 6
    %v2767 = vpop.permute.xlu0 %2766
    %2768 = vrot.lane.b32.xlu0 %v2763, 6
    %v2769 = vpop.permute.xlu0 %2768
    %vm2772 = vcmask 48128
    %v2773 = vsel %vm2772, %v2712, %v2767
    %v2774 = vsel %vm2772, %v2762, %v2769
    %v2775 = vld [vmem:[%s2] sm:$0xff]
    %v2776 = vld [vmem:[%s2 + $0x8] sm:$0xff]
    %v2778 = vsel %vm25, %v2775, 0
    %v2781 = vsel %vm25, %v2776, 0
    %2783 = vmatprep.subr.mxu0 0.0
    %2784 = vmatpush1.msra.mxu0 0.0
    %2785 = vmatprep.subr.mxu0 0.0
    %2786 = vmatpush1.msra.mxu0 0.0
    %2787 = vmatprep.subr.mxu0 0.0
    %2788 = vmatpush1.msra.mxu0 0.0
    %2789 = vmatprep.subr.mxu0 0.0
    %2790 = vmatpush1.msra.mxu0 0.0
    %2791 = vmatprep.subr.mxu0 0.0
    %2792 = vmatpush1.msra.mxu0 0.0
    %2793 = vmatprep.subr.mxu0 0.0
    %2794 = vmatpush1.msra.mxu0 0.0
    %2795 = vmatprep.subr.mxu0 0.0
    %2796 = vmatpush1.msra.mxu0 0.0
    %2797 = vmatprep.subr.mxu0 0.0
    %2798 = vmatpush1.msra.mxu0 0.0
    %2799 = vmatprep.subr.mxu0 0.0
    %2800 = vmatpush1.msra.mxu0 0.0
    %2801 = vmatprep.subr.mxu0 0.0
    %2802 = vmatpush1.msra.mxu0 0.0
    %2803 = vmatprep.subr.mxu0 0.0
    %2804 = vmatpush1.msra.mxu0 0.0
    %2805 = vmatprep.subr.mxu0 0.0
    %2806 = vmatpush1.msra.mxu0 0.0
    %2807 = vmatprep.subr.mxu0 0.0
    %2808 = vmatpush1.msra.mxu0 0.0
    %2809 = vmatprep.subr.mxu0 0.0
    %2810 = vmatpush1.msra.mxu0 0.0
    %2811 = vmatprep.subr.mxu0 0.0
    %2812 = vmatpush1.msra.mxu0 %v2774
    %2813 = vmatprep.subr.mxu0 0.0
    %2814 = vmatpush1.msra.mxu0 %v2773
    %2815 = vmatprep.subr.mxu0 0.0
    %2816 = vmatpush2.msra.mxu0 0.0
    %2817 = vmatprep.subr.mxu0 0.0
    %2818 = vmatpush2.msra.mxu0 0.0
    %2819 = vmatprep.subr.mxu0 0.0
    %2820 = vmatpush2.msra.mxu0 0.0
    %2821 = vmatprep.subr.mxu0 0.0
    %2822 = vmatpush2.msra.mxu0 0.0
    %2823 = vmatprep.subr.mxu0 0.0
    %2824 = vmatpush2.msra.mxu0 0.0
    %2825 = vmatprep.subr.mxu0 0.0
    %2826 = vmatpush2.msra.mxu0 0.0
    %2827 = vmatprep.subr.mxu0 0.0
    %2828 = vmatpush2.msra.mxu0 0.0
    %2829 = vmatprep.subr.mxu0 0.0
    %2830 = vmatpush2.msra.mxu0 0.0
    %2831 = vmatprep.subr.mxu0 0.0
    %2832 = vmatpush2.msra.mxu0 0.0
    %2833 = vmatprep.subr.mxu0 0.0
    %2834 = vmatpush2.msra.mxu0 0.0
    %2835 = vmatprep.subr.mxu0 0.0
    %2836 = vmatpush2.msra.mxu0 0.0
    %2837 = vmatprep.subr.mxu0 0.0
    %2838 = vmatpush2.msra.mxu0 0.0
    %2839 = vmatprep.subr.mxu0 0.0
    %2840 = vmatpush2.msra.mxu0 0.0
    %2841 = vmatprep.subr.mxu0 0.0
    %2842 = vmatpush2.msra.mxu0 0.0
    %2843 = vmatprep.subr.mxu0 0.0
    %2844 = vmatpush2.msra.mxu0 0.0
    %2845 = vmatprep.subr.mxu0 0.0
    %2846 = vmatpush2.msra.mxu0 0.0
    %2847 = vmatprep.mubr.f32.mxu0 0.0
    %2848 = vmatmul.mubr.f32.gmra.mxu0 %v2778
    %v2849 = vpop.f32.mrf.mxu0
    %v2850 = vadd.f32 0.0, %v2849
    %v2851 = vpop.f32.mrf.mxu0
    %2852 = vmatprep.mubr.f32.mxu0 0.0
    %2853 = vmatmul.mubr.f32.gmra.mxu0 %v2781
    %v2854 = vpop.f32.mrf.mxu0
    %v2855 = vadd.f32 0.0, %v2854
    %v2856 = vpop.f32.mrf.mxu0
    %2857 = vdwg.mxu0
    %vm2858 = vcmask 97280
    %2859 = vst.msk [vmem:[#allocation2] sm:$0xff] %vm2858, %v2850
    %2860 = vst.msk [vmem:[#allocation2 + $0x8] sm:$0xff] %vm2858, %v2855
    // Predicated region
    $region22: #{tpu_custom_call.1} parent=1 // pred_check
      _
    $region23: #{tpu_custom_call.1} parent=1 // pred_check_branch
      %2862 = sbr.rel (0) target = $region25
    $region24: #{tpu_custom_call.1} parent=1 // pred_region
      %s2864 = ssub.s32 256, 256
      %2865 = vsyncadd [#allocation3], %s2864
      %s2866 = sshll.u32 [#allocation2], 4
      %s2867 = int_to_ptr.vmem [resolvable:$true] %s2866
      %2872 = dma.vmem_to_hbm [thread:$0]  %s2867, 256, %s5, [#allocation3], 128, 128, 8
    $region25: #{tpu_custom_call.1} parent=1 // pred_fallthru
      _
    // Predicated region
    $region26: #{tpu_custom_call.1} parent=1 // pred_check
      _
    $region27: #{tpu_custom_call.1} parent=1 // pred_check_branch
      %2874 = sbr.rel (0) target = $region29
    $region28: #{tpu_custom_call.1} parent=1 // pred_region
      %2875 = dma.done [#allocation3], 256
    $region29: #{tpu_custom_call.1} parent=1 // pred_fallthru
      _
    %2876 = vsyncpa [#allocation3], 1

</llo_original>
